<compile_context>
chip_gen: v6e
topology: v6e:2x2x1
jax: 0.10.0
libtpu: 0.0.40
codegen_flags: <defaults>
</compile_context>

<pallas_src>
import functools

import jax
import jax.numpy as jnp
from jax import lax
from jax.experimental import pallas as pl
from jax.experimental.pallas import tpu as pltpu


def _bottleneck_kernel(x_ref, xh_ref, w1_ref, b1_ref, w2_ref, b2_ref,
                       w3_ref, b3_ref, o_ref, t1p_ref,
                       *, TH, W, Cin, P, d, nH):
    """One (batch, row-tile) grid step of the fused bottleneck."""
    r = pl.program_id(1)
    M = TH * W                       # flattened output rows of this tile
    dW = d * W
    Lp = M + 2 * dW                  # rows including the conv2 halo

    # ---- load tile (bf16) --------------------------------------------------
    xm = x_ref[...].reshape(M, Cin)               # (TH*W, Cin)  main rows
    xh = xh_ref[...].reshape(2 * dW, Cin)         # (2d*W, Cin)  halo rows

    # ---- conv1 (1x1, BN1 scale folded into w1) + bias + ReLU ---------------
    w1 = w1_ref[...]
    b1 = b1_ref[...]
    t1m = jnp.maximum(
        jnp.dot(xm, w1, preferred_element_type=jnp.float32) + b1, 0.0)
    t1h = jnp.maximum(
        jnp.dot(xh, w1, preferred_element_type=jnp.float32) + b1, 0.0)

    # Halo rows outside the image must act like conv2's zero padding of t1.
    # Write the three pieces straight into the haloed scratch buffer (no
    # concatenate copy).
    top_keep = (r > 0).astype(jnp.float32)
    bot_keep = (r < nH - 1).astype(jnp.float32)
    t1p_ref[0:dW, :] = t1h[:dW] * top_keep
    t1p_ref[dW:dW + M, :] = t1m
    t1p_ref[dW + M:Lp, :] = t1h[dW:] * bot_keep
    t1p = t1p_ref[...]                            # (Lp, P) f32

    # ---- conv2 (3x3, stride=1, padding=dilation=d) -------------------------
    # W-direction taps: rotate the flat buffer on the XLU; columns that wrapped
    # across a row boundary are zero-filled via an in-kernel iota mask (bf16
    # select).  H-direction taps are aligned slices (offsets kh*d*W).
    col = lax.broadcasted_iota(jnp.int32, (Lp, 1), 0) % W
    zero = jnp.zeros((), jnp.bfloat16)
    mid = t1p.astype(jnp.bfloat16)
    left = jnp.where(col >= d,
                     pltpu.roll(t1p, d, 0).astype(jnp.bfloat16), zero)       # w-d
    right = jnp.where(col < W - d,
                      pltpu.roll(t1p, Lp - d, 0).astype(jnp.bfloat16), zero)  # w+d
    shifted = (left, mid, right)

    # 9 small MXU matmuls accumulated in f32 instead of an im2col concatenate
    # of 64-wide lane chunks (avoids lane-relayout copies; MXU has slack here).
    # NOTE: tap slice offsets kh*d*W are bf16 sublane-aligned when d*W % 16 == 0
    # (true for typical ResNet W); otherwise the compiler inserts relayouts.
    acc = jnp.zeros((M, P), jnp.float32)
    for kh in range(3):
        oh = kh * dW
        for kw in range(3):
            acc = acc + jnp.dot(shifted[kw][oh:oh + M], w2_ref[kh * 3 + kw],
                                preferred_element_type=jnp.float32)
    t2 = jnp.maximum(acc + b2_ref[...], 0.0).astype(jnp.bfloat16)             # (M, P)

    # ---- conv3 (1x1, BN3 scale folded) + bias + residual + ReLU ------------
    t3 = jnp.dot(t2, w3_ref[...], preferred_element_type=jnp.float32) + b3_ref[...]
    out = jnp.maximum(t3 + xm.astype(jnp.float32), 0.0)                       # (M, 4P)
    o_ref[...] = out.astype(jnp.bfloat16).reshape(1, TH, W, 4 * P)


def _pick_vmem_limit():
    """<= 96 MiB and <= 3/4 of physical VMEM (so ~48 MiB on v7x's 64 MiB)."""
    try:
        cap = int(pltpu.get_tpu_info().vmem_capacity_bytes)
        return min(96 * 1024 * 1024, cap * 3 // 4)
    except Exception:
        return 48 * 1024 * 1024


def _auto_row_tile(B, H, W, Cin, P, d, budget_bytes):
    """Largest row tile that fits the VMEM budget; prefer an even total grid."""
    per_row = W * (2 * 2 * Cin            # x tile, double buffered, bf16
                   + 2 * 2 * 4 * P        # out tile, double buffered, bf16
                   + 4 * P                # t1p f32 scratch
                   + 3 * 2 * P            # left/mid/right bf16 copies
                   + 2 * 4 * P            # conv2 f32 acc + t2
                   + 2 * 4 * 4 * P)       # conv3 f32 result + residual add
    fits = [c for c in range(1, H + 1)
            if H % c == 0 and per_row * (c + 2 * d) <= budget_bytes]
    if not fits:
        return 1
    best = max(fits)
    even = [c for c in fits if (B * (H // c)) % 2 == 0]
    if even and max(even) * 2 >= best:
        return max(even)                  # keep grid even for v7x's 2 TCs
    return best


def bottleneck_forward_nhwc(x_nhwc, params, *, dilation=1, row_tile=None,
                            vmem_limit=None):
    """NHWC -> NHWC(bf16) Bottleneck forward (downsample=None, stride=1, eval BN)."""
    B, H, W, Cin = x_nhwc.shape
    P = params['w1'].shape[1]
    assert Cin == 4 * P, "downsample=None requires inplanes == planes * expansion"
    d = dilation
    assert 0 < d < W, "roll-based W taps require dilation < W"

    if vmem_limit is None:
        vmem_limit = _pick_vmem_limit()
    TH = row_tile if row_tile is not None else _auto_row_tile(
        B, H, W, Cin, P, d, vmem_limit // 2)
    assert H % TH == 0, "row_tile must divide H"
    nH = H // TH

    # bf16 activations (MXU-native; halves HBM/VMEM traffic).
    x = x_nhwc.astype(jnp.bfloat16)

    # Per-row-tile halo rows (d above + d below; zero rows at the image edge),
    # gathered with one jnp.take.  conv1 is recomputed on these in-kernel.
    xp = jnp.pad(x, ((0, 0), (d, d), (0, 0), (0, 0)))
    off = jnp.concatenate([jnp.arange(d), jnp.arange(TH + d, TH + 2 * d)])
    rows = (jnp.arange(nH)[:, None] * TH + off[None, :]).reshape(-1)
    halo = jnp.take(xp, rows, axis=1).reshape(B, nH, 2 * d, W, Cin)

    # Fold eval-mode BN scales into the conv weights (bf16); biases stay f32.
    w1 = (params['w1'] * params['s1'][None, :]).astype(jnp.bfloat16)            # (Cin, P)
    w2 = (params['w2'] * params['s2'][None, None, None, :]
          ).reshape(9, P, P).astype(jnp.bfloat16)                               # (9, P, P)
    w3 = (params['w3'] * params['s3'][None, :]).astype(jnp.bfloat16)            # (P, 4P)
    b1 = params['b1'].reshape(1, P).astype(jnp.float32)
    b2 = params['b2'].reshape(1, P).astype(jnp.float32)
    b3 = params['b3'].reshape(1, 4 * P).astype(jnp.float32)

    kernel = functools.partial(_bottleneck_kernel, TH=TH, W=W, Cin=Cin, P=P,
                               d=d, nH=nH)

    def _full(a):
        return pl.BlockSpec(a.shape, lambda b, r, n=a.ndim: (0,) * n)

    Mtot = B * H * W
    flops = 2 * Mtot * (Cin * P + 9 * P * P + P * 4 * P)
    bytes_accessed = int(x.size * 2 + halo.size * 2 + Mtot * 4 * P * 2
                         + (w1.size + w2.size + w3.size) * 2
                         + (b1.size + b2.size + b3.size) * 4)

    out_nhwc = pl.pallas_call(
        kernel,
        out_shape=jax.ShapeDtypeStruct((B, H, W, 4 * P), jnp.bfloat16),
        grid=(B, nH),
        in_specs=[
            pl.BlockSpec((1, TH, W, Cin), lambda b, r: (b, r, 0, 0)),           # x
            pl.BlockSpec((1, 1, 2 * d, W, Cin), lambda b, r: (b, r, 0, 0, 0)),  # halo
            _full(w1), _full(b1), _full(w2), _full(b2), _full(w3), _full(b3),
        ],
        out_specs=pl.BlockSpec((1, TH, W, 4 * P), lambda b, r: (b, r, 0, 0)),
        scratch_shapes=[pltpu.VMEM(((TH + 2 * d) * W, P), jnp.float32)],        # t1p
        compiler_params=pltpu.CompilerParams(
            dimension_semantics=("parallel", "parallel"),
            vmem_limit_bytes=vmem_limit),
        cost_estimate=pl.CostEstimate(flops=flops, transcendentals=0,
                                      bytes_accessed=bytes_accessed),
    )(x, halo, w1, b1, w2, b2, w3, b3)

    return out_nhwc


def bottleneck_forward(x_nchw, params, *, dilation=1, row_tile=None):
    """NCHW adapter matching the PyTorch module.  In a full network keep
    activations NHWC and call bottleneck_forward_nhwc directly — each of these
    transposes is an extra full HBM round trip done by XLA."""
    x = jnp.transpose(x_nchw, (0, 2, 3, 1))
    out = bottleneck_forward_nhwc(x, params, dilation=dilation, row_tile=row_tile)
    return jnp.transpose(out, (0, 3, 1, 2))          # bf16 output


def make_params(key, inplanes, planes, eps=1e-5):
    keys = jax.random.split(key, 15)

    def bn_fold(kg, kb, km, kv, c):
        gamma = jax.random.uniform(kg, (c,), minval=0.5, maxval=1.5)
        beta = jax.random.normal(kb, (c,)) * 0.1
        mean = jax.random.normal(km, (c,)) * 0.1
        var = jax.random.uniform(kv, (c,), minval=0.5, maxval=1.5)
        scale = gamma / jnp.sqrt(var + eps)
        bias = beta - mean * scale
        return scale.astype(jnp.float32), bias.astype(jnp.float32)

    w1 = (jax.random.normal(keys[0], (inplanes, planes)) * 0.1).astype(jnp.float32)
    w2 = (jax.random.normal(keys[1], (3, 3, planes, planes)) * 0.1).astype(jnp.float32)  # HWIO
    w3 = (jax.random.normal(keys[2], (planes, planes * 4)) * 0.1).astype(jnp.float32)
    s1, b1 = bn_fold(keys[3], keys[4], keys[5], keys[6], planes)
    s2, b2 = bn_fold(keys[7], keys[8], keys[9], keys[10], planes)
    s3, b3 = bn_fold(keys[11], keys[12], keys[13], keys[14], planes * 4)
    return dict(w1=w1, w2=w2, w3=w3, s1=s1, b1=b1, s2=s2, b2=b2, s3=s3, b3=b3)


def bottleneck_reference(x_nchw, p, *, dilation=1):
    """Pure-JAX f32 reference using lax.conv (correctness check)."""
    x = jnp.transpose(x_nchw, (0, 2, 3, 1)).astype(jnp.float32)
    dn = ('NHWC', 'HWIO', 'NHWC')

    def conv1x1(t, w):
        return lax.conv_general_dilated(t, w[None, None], (1, 1), 'VALID',
                                        dimension_numbers=dn)

    t = jnp.maximum(conv1x1(x, p['w1']) * p['s1'] + p['b1'], 0.0)
    t = lax.conv_general_dilated(t, p['w2'], (1, 1),
                                 [(dilation, dilation), (dilation, dilation)],
                                 rhs_dilation=(dilation, dilation),
                                 dimension_numbers=dn)
    t = jnp.maximum(t * p['s2'] + p['b2'], 0.0)
    t = conv1x1(t, p['w3']) * p['s3'] + p['b3']
    out = jnp.maximum(t + x, 0.0)
    return jnp.transpose(out, (0, 3, 1, 2))


if __name__ == "__main__":
    # Small ResNet-C2-like block: batch=2, planes=64 -> inplanes=256, 16x16.
    B, planes, H, W = 2, 64, 16, 16
    inplanes = planes * 4

    key = jax.random.PRNGKey(0)
    kx, kp = jax.random.split(key)
    x = jax.random.normal(kx, (B, inplanes, H, W), jnp.float32)
    params = make_params(kp, inplanes, planes)

    # row_tile=8 exercises the halo / multi-row-tile path; grid = (2, 2).
    out = bottleneck_forward(x, params, dilation=1, row_tile=8)
    out = jax.block_until_ready(out)

    ref = bottleneck_reference(x, params, dilation=1)
    assert out.shape == (B, inplanes, H, W)
    # bf16 matmul operands + bf16 residual/output -> loosened tolerance.
    err = float(jnp.max(jnp.abs(out.astype(jnp.float32) - ref)))
    assert jnp.allclose(out.astype(jnp.float32), ref, rtol=5e-2, atol=2e-1), \
        f"max abs err = {err}"

    print("KERNEL_OK")
</pallas_src>

<mosaic_0001>
module attributes {stable_mosaic.version = 11 : i64} {
  func.func @_bottleneck_kernel(%arg0: i32, %arg1: i32, %arg2: memref<1x8x16x256xbf16, #tpu.memory_space<vmem>>, %arg3: memref<1x1x2x16x256xbf16, #tpu.memory_space<vmem>>, %arg4: memref<256x64xbf16, #tpu.memory_space<vmem>>, %arg5: memref<1x64xf32, #tpu.memory_space<vmem>>, %arg6: memref<9x64x64xbf16, #tpu.memory_space<vmem>>, %arg7: memref<1x64xf32, #tpu.memory_space<vmem>>, %arg8: memref<64x256xbf16, #tpu.memory_space<vmem>>, %arg9: memref<1x256xf32, #tpu.memory_space<vmem>>, %arg10: memref<1x8x16x256xbf16, #tpu.memory_space<vmem>>, %arg11: memref<160x64xf32, #tpu.memory_space<vmem>>) attributes {dimension_semantics = [#tpu.dimension_semantics<parallel>, #tpu.dimension_semantics<parallel>], iteration_bounds = array<i64: 2, 2>, scalar_prefetch = 0 : i64, scratch_operands = 1 : i64, tpu.core_type = #tpu.core_type<tc>, window_params = [{transform_indices = @transform_0, window_bounds = array<i64: 1, 8, 16, 256>}, {transform_indices = @transform_1, window_bounds = array<i64: 1, 1, 2, 16, 256>}, {pipeline_mode = #tpu.pipeline_mode<synchronous>, transform_indices = @transform_2, window_bounds = array<i64: 256, 64>}, {pipeline_mode = #tpu.pipeline_mode<synchronous>, transform_indices = @transform_3, window_bounds = array<i64: 1, 64>}, {pipeline_mode = #tpu.pipeline_mode<synchronous>, transform_indices = @transform_4, window_bounds = array<i64: 9, 64, 64>}, {pipeline_mode = #tpu.pipeline_mode<synchronous>, transform_indices = @transform_5, window_bounds = array<i64: 1, 64>}, {pipeline_mode = #tpu.pipeline_mode<synchronous>, transform_indices = @transform_6, window_bounds = array<i64: 64, 256>}, {pipeline_mode = #tpu.pipeline_mode<synchronous>, transform_indices = @transform_7, window_bounds = array<i64: 1, 256>}, {transform_indices = @transform_8, window_bounds = array<i64: 1, 8, 16, 256>}]} {
    %c0 = arith.constant 0 : index
    %c0_0 = arith.constant 0 : index
    %c0_1 = arith.constant 0 : index
    %c0_2 = arith.constant 0 : index
    %0 = vector.load %arg2[%c0, %c0_0, %c0_1, %c0_2] : memref<1x8x16x256xbf16, #tpu.memory_space<vmem>>, vector<1x8x16x256xbf16>
    %1 = vector.shape_cast %0 : vector<1x8x16x256xbf16> to vector<128x256xbf16>
    %c0_3 = arith.constant 0 : index
    %c0_4 = arith.constant 0 : index
    %c0_5 = arith.constant 0 : index
    %c0_6 = arith.constant 0 : index
    %c0_7 = arith.constant 0 : index
    %2 = vector.load %arg3[%c0_3, %c0_4, %c0_5, %c0_6, %c0_7] : memref<1x1x2x16x256xbf16, #tpu.memory_space<vmem>>, vector<1x1x2x16x256xbf16>
    %3 = vector.shape_cast %2 : vector<1x1x2x16x256xbf16> to vector<32x256xbf16>
    %c0_8 = arith.constant 0 : index
    %c0_9 = arith.constant 0 : index
    %4 = vector.load %arg4[%c0_8, %c0_9] : memref<256x64xbf16, #tpu.memory_space<vmem>>, vector<256x64xbf16>
    %c0_10 = arith.constant 0 : index
    %c0_11 = arith.constant 0 : index
    %5 = vector.load %arg5[%c0_10, %c0_11] : memref<1x64xf32, #tpu.memory_space<vmem>>, vector<1x64xf32>
    %cst = arith.constant dense<0.000000e+00> : vector<128x64xf32>
    %6 = tpu.matmul %1, %4, %cst {dimension_numbers = #tpu.dot_dimension_numbers<[1], [0], [0], [1], [0, 0, 1, 1], [], []>} : vector<128x256xbf16>, vector<256x64xbf16>, vector<128x64xf32> -> vector<128x64xf32>
    %7 = vector.broadcast %5 : vector<1x64xf32> to vector<128x64xf32>
    %8 = arith.addf %6, %7 : vector<128x64xf32>
    %cst_12 = arith.constant 0.000000e+00 : f32
    %9 = vector.broadcast %cst_12 : f32 to vector<128x64xf32>
    %10 = arith.maximumf %8, %9 : vector<128x64xf32>
    %cst_13 = arith.constant dense<0.000000e+00> : vector<32x64xf32>
    %11 = tpu.matmul %3, %4, %cst_13 {dimension_numbers = #tpu.dot_dimension_numbers<[1], [0], [0], [1], [0, 0, 1, 1], [], []>} : vector<32x256xbf16>, vector<256x64xbf16>, vector<32x64xf32> -> vector<32x64xf32>
    %12 = vector.broadcast %5 : vector<1x64xf32> to vector<32x64xf32>
    %13 = arith.addf %11, %12 : vector<32x64xf32>
    %cst_14 = arith.constant 0.000000e+00 : f32
    %14 = vector.broadcast %cst_14 : f32 to vector<32x64xf32>
    %15 = arith.maximumf %13, %14 : vector<32x64xf32>
    %c0_i32 = arith.constant 0 : i32
    %16 = arith.cmpi sgt, %arg1, %c0_i32 : i32
    %17 = arith.extui %16 : i1 to i32
    %18 = arith.sitofp %17 : i32 to f32
    %c1_i32 = arith.constant 1 : i32
    %19 = arith.cmpi slt, %arg1, %c1_i32 : i32
    %20 = arith.extui %19 : i1 to i32
    %21 = arith.sitofp %20 : i32 to f32
    %22 = vector.extract_strided_slice %15 {offsets = [0, 0], sizes = [16, 64], strides = [1, 1]} : vector<32x64xf32> to vector<16x64xf32>
    %23 = vector.broadcast %18 : f32 to vector<16x64xf32>
    %24 = arith.mulf %22, %23 : vector<16x64xf32>
    %c0_15 = arith.constant 0 : index
    %c0_16 = arith.constant 0 : index
    %25 = vector.load %arg11[%c0_15, %c0_16] : memref<160x64xf32, #tpu.memory_space<vmem>>, vector<16x64xf32>
    tpu.vector_store %arg11[%c0_15, %c0_16], %24 {strides = array<i32>} : memref<160x64xf32, #tpu.memory_space<vmem>>, vector<16x64xf32>,
    %c16 = arith.constant 16 : index
    %c0_17 = arith.constant 0 : index
    %26 = vector.load %arg11[%c16, %c0_17] : memref<160x64xf32, #tpu.memory_space<vmem>>, vector<128x64xf32>
    tpu.vector_store %arg11[%c16, %c0_17], %10 {strides = array<i32>} : memref<160x64xf32, #tpu.memory_space<vmem>>, vector<128x64xf32>,
    %27 = vector.extract_strided_slice %15 {offsets = [16, 0], sizes = [16, 64], strides = [1, 1]} : vector<32x64xf32> to vector<16x64xf32>
    %28 = vector.broadcast %21 : f32 to vector<16x64xf32>
    %29 = arith.mulf %27, %28 : vector<16x64xf32>
    %c144 = arith.constant 144 : index
    %c0_18 = arith.constant 0 : index
    %30 = vector.load %arg11[%c144, %c0_18] : memref<160x64xf32, #tpu.memory_space<vmem>>, vector<16x64xf32>
    tpu.vector_store %arg11[%c144, %c0_18], %29 {strides = array<i32>} : memref<160x64xf32, #tpu.memory_space<vmem>>, vector<16x64xf32>,
    %c0_19 = arith.constant 0 : index
    %c0_20 = arith.constant 0 : index
    %31 = vector.load %arg11[%c0_19, %c0_20] : memref<160x64xf32, #tpu.memory_space<vmem>>, vector<160x64xf32>
    %32 = tpu.iota {dimensions = array<i32: 0>} : vector<160x1xi32>
    %c16_i32 = arith.constant 16 : i32
    %c0_i32_21 = arith.constant 0 : i32
    %33 = arith.cmpi eq, %c16_i32, %c0_i32_21 : i32
    %c1_i32_22 = arith.constant 1 : i32
    %34 = arith.select %33, %c1_i32_22, %c16_i32 : i32
    %35 = vector.broadcast %34 : i32 to vector<160x1xi32>
    %36 = arith.remsi %32, %35 : vector<160x1xi32>
    %c0_i32_23 = arith.constant 0 : i32
    %37 = vector.broadcast %c0_i32_23 : i32 to vector<160x1xi32>
    %38 = arith.cmpi ne, %36, %37 : vector<160x1xi32>
    %c0_i32_24 = arith.constant 0 : i32
    %39 = vector.broadcast %c0_i32_24 : i32 to vector<160x1xi32>
    %40 = arith.cmpi slt, %36, %39 : vector<160x1xi32>
    %c0_i32_25 = arith.constant 0 : i32
    %41 = arith.cmpi slt, %34, %c0_i32_25 : i32
    %42 = vector.broadcast %41 : i1 to vector<160x1xi1>
    %43 = vector.broadcast %42 : vector<160x1xi1> to vector<160x1xi1>
    %44 = arith.xori %40, %43 : vector<160x1xi1>
    %45 = arith.andi %44, %38 : vector<160x1xi1>
    %46 = vector.broadcast %34 : i32 to vector<160x1xi32>
    %47 = arith.addi %36, %46 : vector<160x1xi32>
    %48 = arith.select %45, %47, %36 : vector<160x1xi1>, vector<160x1xi32>
    %49 = arith.truncf %31 : vector<160x64xf32> to vector<160x64xbf16>
    %c1_i32_26 = arith.constant 1 : i32
    %50 = vector.broadcast %c1_i32_26 : i32 to vector<160x1xi32>
    %51 = arith.cmpi sge, %48, %50 : vector<160x1xi32>
    %c1_i32_27 = arith.constant 1 : i32
    %52 = tpu.dynamic_rotate %31 by %c1_i32_27 dim 0 : vector<160x64xf32>, i32 -> vector<160x64xf32>
    %53 = arith.truncf %52 : vector<160x64xf32> to vector<160x64xbf16>
    %cst_28 = arith.constant 0.000000e+00 : bf16
    %54 = vector.shape_cast %51 : vector<160x1xi1> to vector<160x1xi1>
    %55 = vector.broadcast %54 : vector<160x1xi1> to vector<160x64xi1>
    %56 = vector.broadcast %cst_28 : bf16 to vector<160x64xbf16>
    %57 = arith.select %55, %53, %56 : vector<160x64xi1>, vector<160x64xbf16>
    %c15_i32 = arith.constant 15 : i32
    %58 = vector.broadcast %c15_i32 : i32 to vector<160x1xi32>
    %59 = arith.cmpi slt, %48, %58 : vector<160x1xi32>
    %c159_i32 = arith.constant 159 : i32
    %60 = tpu.dynamic_rotate %31 by %c159_i32 dim 0 : vector<160x64xf32>, i32 -> vector<160x64xf32>
    %61 = arith.truncf %60 : vector<160x64xf32> to vector<160x64xbf16>
    %cst_29 = arith.constant 0.000000e+00 : bf16
    %62 = vector.shape_cast %59 : vector<160x1xi1> to vector<160x1xi1>
    %63 = vector.broadcast %62 : vector<160x1xi1> to vector<160x64xi1>
    %64 = vector.broadcast %cst_29 : bf16 to vector<160x64xbf16>
    %65 = arith.select %63, %61, %64 : vector<160x64xi1>, vector<160x64xbf16>
    %cst_30 = arith.constant 0.000000e+00 : f32
    %66 = vector.broadcast %cst_30 : f32 to vector<128x64xf32>
    %67 = vector.extract_strided_slice %57 {offsets = [0, 0], sizes = [128, 64], strides = [1, 1]} : vector<160x64xbf16> to vector<128x64xbf16>
    %c0_31 = arith.constant 0 : index
    %c0_32 = arith.constant 0 : index
    %c0_33 = arith.constant 0 : index
    %68 = vector.load %arg6[%c0_31, %c0_32, %c0_33] : memref<9x64x64xbf16, #tpu.memory_space<vmem>>, vector<1x64x64xbf16>
    %69 = vector.shape_cast %68 : vector<1x64x64xbf16> to vector<64x64xbf16>
    %cst_34 = arith.constant dense<0.000000e+00> : vector<128x64xf32>
    %70 = tpu.matmul %67, %69, %cst_34 {dimension_numbers = #tpu.dot_dimension_numbers<[1], [0], [0], [1], [0, 0, 1, 1], [], []>} : vector<128x64xbf16>, vector<64x64xbf16>, vector<128x64xf32> -> vector<128x64xf32>
    %71 = arith.addf %66, %70 : vector<128x64xf32>
    %72 = vector.extract_strided_slice %49 {offsets = [0, 0], sizes = [128, 64], strides = [1, 1]} : vector<160x64xbf16> to vector<128x64xbf16>
    %c1 = arith.constant 1 : index
    %c0_35 = arith.constant 0 : index
    %c0_36 = arith.constant 0 : index
    %73 = vector.load %arg6[%c1, %c0_35, %c0_36] : memref<9x64x64xbf16, #tpu.memory_space<vmem>>, vector<1x64x64xbf16>
    %74 = vector.shape_cast %73 : vector<1x64x64xbf16> to vector<64x64xbf16>
    %cst_37 = arith.constant dense<0.000000e+00> : vector<128x64xf32>
    %75 = tpu.matmul %72, %74, %cst_37 {dimension_numbers = #tpu.dot_dimension_numbers<[1], [0], [0], [1], [0, 0, 1, 1], [], []>} : vector<128x64xbf16>, vector<64x64xbf16>, vector<128x64xf32> -> vector<128x64xf32>
    %76 = arith.addf %71, %75 : vector<128x64xf32>
    %77 = vector.extract_strided_slice %65 {offsets = [0, 0], sizes = [128, 64], strides = [1, 1]} : vector<160x64xbf16> to vector<128x64xbf16>
    %c2 = arith.constant 2 : index
    %c0_38 = arith.constant 0 : index
    %c0_39 = arith.constant 0 : index
    %78 = vector.load %arg6[%c2, %c0_38, %c0_39] : memref<9x64x64xbf16, #tpu.memory_space<vmem>>, vector<1x64x64xbf16>
    %79 = vector.shape_cast %78 : vector<1x64x64xbf16> to vector<64x64xbf16>
    %cst_40 = arith.constant dense<0.000000e+00> : vector<128x64xf32>
    %80 = tpu.matmul %77, %79, %cst_40 {dimension_numbers = #tpu.dot_dimension_numbers<[1], [0], [0], [1], [0, 0, 1, 1], [], []>} : vector<128x64xbf16>, vector<64x64xbf16>, vector<128x64xf32> -> vector<128x64xf32>
    %81 = arith.addf %76, %80 : vector<128x64xf32>
    %82 = vector.extract_strided_slice %57 {offsets = [16, 0], sizes = [128, 64], strides = [1, 1]} : vector<160x64xbf16> to vector<128x64xbf16>
    %c3 = arith.constant 3 : index
    %c0_41 = arith.constant 0 : index
    %c0_42 = arith.constant 0 : index
    %83 = vector.load %arg6[%c3, %c0_41, %c0_42] : memref<9x64x64xbf16, #tpu.memory_space<vmem>>, vector<1x64x64xbf16>
    %84 = vector.shape_cast %83 : vector<1x64x64xbf16> to vector<64x64xbf16>
    %cst_43 = arith.constant dense<0.000000e+00> : vector<128x64xf32>
    %85 = tpu.matmul %82, %84, %cst_43 {dimension_numbers = #tpu.dot_dimension_numbers<[1], [0], [0], [1], [0, 0, 1, 1], [], []>} : vector<128x64xbf16>, vector<64x64xbf16>, vector<128x64xf32> -> vector<128x64xf32>
    %86 = arith.addf %81, %85 : vector<128x64xf32>
    %87 = vector.extract_strided_slice %49 {offsets = [16, 0], sizes = [128, 64], strides = [1, 1]} : vector<160x64xbf16> to vector<128x64xbf16>
    %c4 = arith.constant 4 : index
    %c0_44 = arith.constant 0 : index
    %c0_45 = arith.constant 0 : index
    %88 = vector.load %arg6[%c4, %c0_44, %c0_45] : memref<9x64x64xbf16, #tpu.memory_space<vmem>>, vector<1x64x64xbf16>
    %89 = vector.shape_cast %88 : vector<1x64x64xbf16> to vector<64x64xbf16>
    %cst_46 = arith.constant dense<0.000000e+00> : vector<128x64xf32>
    %90 = tpu.matmul %87, %89, %cst_46 {dimension_numbers = #tpu.dot_dimension_numbers<[1], [0], [0], [1], [0, 0, 1, 1], [], []>} : vector<128x64xbf16>, vector<64x64xbf16>, vector<128x64xf32> -> vector<128x64xf32>
    %91 = arith.addf %86, %90 : vector<128x64xf32>
    %92 = vector.extract_strided_slice %65 {offsets = [16, 0], sizes = [128, 64], strides = [1, 1]} : vector<160x64xbf16> to vector<128x64xbf16>
    %c5 = arith.constant 5 : index
    %c0_47 = arith.constant 0 : index
    %c0_48 = arith.constant 0 : index
    %93 = vector.load %arg6[%c5, %c0_47, %c0_48] : memref<9x64x64xbf16, #tpu.memory_space<vmem>>, vector<1x64x64xbf16>
    %94 = vector.shape_cast %93 : vector<1x64x64xbf16> to vector<64x64xbf16>
    %cst_49 = arith.constant dense<0.000000e+00> : vector<128x64xf32>
    %95 = tpu.matmul %92, %94, %cst_49 {dimension_numbers = #tpu.dot_dimension_numbers<[1], [0], [0], [1], [0, 0, 1, 1], [], []>} : vector<128x64xbf16>, vector<64x64xbf16>, vector<128x64xf32> -> vector<128x64xf32>
    %96 = arith.addf %91, %95 : vector<128x64xf32>
    %97 = vector.extract_strided_slice %57 {offsets = [32, 0], sizes = [128, 64], strides = [1, 1]} : vector<160x64xbf16> to vector<128x64xbf16>
    %c6 = arith.constant 6 : index
    %c0_50 = arith.constant 0 : index
    %c0_51 = arith.constant 0 : index
    %98 = vector.load %arg6[%c6, %c0_50, %c0_51] : memref<9x64x64xbf16, #tpu.memory_space<vmem>>, vector<1x64x64xbf16>
    %99 = vector.shape_cast %98 : vector<1x64x64xbf16> to vector<64x64xbf16>
    %cst_52 = arith.constant dense<0.000000e+00> : vector<128x64xf32>
    %100 = tpu.matmul %97, %99, %cst_52 {dimension_numbers = #tpu.dot_dimension_numbers<[1], [0], [0], [1], [0, 0, 1, 1], [], []>} : vector<128x64xbf16>, vector<64x64xbf16>, vector<128x64xf32> -> vector<128x64xf32>
    %101 = arith.addf %96, %100 : vector<128x64xf32>
    %102 = vector.extract_strided_slice %49 {offsets = [32, 0], sizes = [128, 64], strides = [1, 1]} : vector<160x64xbf16> to vector<128x64xbf16>
    %c7 = arith.constant 7 : index
    %c0_53 = arith.constant 0 : index
    %c0_54 = arith.constant 0 : index
    %103 = vector.load %arg6[%c7, %c0_53, %c0_54] : memref<9x64x64xbf16, #tpu.memory_space<vmem>>, vector<1x64x64xbf16>
    %104 = vector.shape_cast %103 : vector<1x64x64xbf16> to vector<64x64xbf16>
    %cst_55 = arith.constant dense<0.000000e+00> : vector<128x64xf32>
    %105 = tpu.matmul %102, %104, %cst_55 {dimension_numbers = #tpu.dot_dimension_numbers<[1], [0], [0], [1], [0, 0, 1, 1], [], []>} : vector<128x64xbf16>, vector<64x64xbf16>, vector<128x64xf32> -> vector<128x64xf32>
    %106 = arith.addf %101, %105 : vector<128x64xf32>
    %107 = vector.extract_strided_slice %65 {offsets = [32, 0], sizes = [128, 64], strides = [1, 1]} : vector<160x64xbf16> to vector<128x64xbf16>
    %c8 = arith.constant 8 : index
    %c0_56 = arith.constant 0 : index
    %c0_57 = arith.constant 0 : index
    %108 = vector.load %arg6[%c8, %c0_56, %c0_57] : memref<9x64x64xbf16, #tpu.memory_space<vmem>>, vector<1x64x64xbf16>
    %109 = vector.shape_cast %108 : vector<1x64x64xbf16> to vector<64x64xbf16>
    %cst_58 = arith.constant dense<0.000000e+00> : vector<128x64xf32>
    %110 = tpu.matmul %107, %109, %cst_58 {dimension_numbers = #tpu.dot_dimension_numbers<[1], [0], [0], [1], [0, 0, 1, 1], [], []>} : vector<128x64xbf16>, vector<64x64xbf16>, vector<128x64xf32> -> vector<128x64xf32>
    %111 = arith.addf %106, %110 : vector<128x64xf32>
    %c0_59 = arith.constant 0 : index
    %c0_60 = arith.constant 0 : index
    %112 = vector.load %arg7[%c0_59, %c0_60] : memref<1x64xf32, #tpu.memory_space<vmem>>, vector<1x64xf32>
    %113 = vector.broadcast %112 : vector<1x64xf32> to vector<128x64xf32>
    %114 = arith.addf %111, %113 : vector<128x64xf32>
    %cst_61 = arith.constant 0.000000e+00 : f32
    %115 = vector.broadcast %cst_61 : f32 to vector<128x64xf32>
    %116 = arith.maximumf %114, %115 : vector<128x64xf32>
    %117 = arith.truncf %116 : vector<128x64xf32> to vector<128x64xbf16>
    %c0_62 = arith.constant 0 : index
    %c0_63 = arith.constant 0 : index
    %118 = vector.load %arg8[%c0_62, %c0_63] : memref<64x256xbf16, #tpu.memory_space<vmem>>, vector<64x256xbf16>
    %cst_64 = arith.constant dense<0.000000e+00> : vector<128x256xf32>
    %119 = tpu.matmul %117, %118, %cst_64 {dimension_numbers = #tpu.dot_dimension_numbers<[1], [0], [0], [1], [0, 0, 1, 1], [], []>} : vector<128x64xbf16>, vector<64x256xbf16>, vector<128x256xf32> -> vector<128x256xf32>
    %c0_65 = arith.constant 0 : index
    %c0_66 = arith.constant 0 : index
    %120 = vector.load %arg9[%c0_65, %c0_66] : memref<1x256xf32, #tpu.memory_space<vmem>>, vector<1x256xf32>
    %121 = vector.broadcast %120 : vector<1x256xf32> to vector<128x256xf32>
    %122 = arith.addf %119, %121 : vector<128x256xf32>
    %123 = arith.extf %1 : vector<128x256xbf16> to vector<128x256xf32>
    %124 = arith.addf %122, %123 : vector<128x256xf32>
    %cst_67 = arith.constant 0.000000e+00 : f32
    %125 = vector.broadcast %cst_67 : f32 to vector<128x256xf32>
    %126 = arith.maximumf %124, %125 : vector<128x256xf32>
    %127 = arith.truncf %126 : vector<128x256xf32> to vector<128x256xbf16>
    %128 = vector.shape_cast %127 : vector<128x256xbf16> to vector<1x8x16x256xbf16>
    %c0_68 = arith.constant 0 : index
    %c0_69 = arith.constant 0 : index
    %c0_70 = arith.constant 0 : index
    %c0_71 = arith.constant 0 : index
    %129 = vector.load %arg10[%c0_68, %c0_69, %c0_70, %c0_71] : memref<1x8x16x256xbf16, #tpu.memory_space<vmem>>, vector<1x8x16x256xbf16>
    tpu.vector_store %arg10[%c0_68, %c0_69, %c0_70, %c0_71], %128 {strides = array<i32>} : memref<1x8x16x256xbf16, #tpu.memory_space<vmem>>, vector<1x8x16x256xbf16>,
    return
  }
  func.func @transform_0(%arg0: i32, %arg1: i32) -> (i32, i32, i32, i32) {
    %c0_i32 = arith.constant 0 : i32
    %c0_i32_0 = arith.constant 0 : i32
    %c0_i32_1 = arith.constant 0 : i32
    return %arg0, %arg1, %c0_i32, %c0_i32_0 : i32, i32, i32, i32
  }
  func.func @transform_1(%arg0: i32, %arg1: i32) -> (i32, i32, i32, i32, i32) {
    %c0_i32 = arith.constant 0 : i32
    %c0_i32_0 = arith.constant 0 : i32
    %c0_i32_1 = arith.constant 0 : i32
    %c0_i32_2 = arith.constant 0 : i32
    return %arg0, %arg1, %c0_i32, %c0_i32_0, %c0_i32_1 : i32, i32, i32, i32, i32
  }
  func.func @transform_2(%arg0: i32, %arg1: i32) -> (i32, i32) {
    %c0_i32 = arith.constant 0 : i32
    %c0_i32_0 = arith.constant 0 : i32
    %c0_i32_1 = arith.constant 0 : i32
    return %c0_i32, %c0_i32_0 : i32, i32
  }
  func.func @transform_3(%arg0: i32, %arg1: i32) -> (i32, i32) {
    %c0_i32 = arith.constant 0 : i32
    %c0_i32_0 = arith.constant 0 : i32
    %c0_i32_1 = arith.constant 0 : i32
    return %c0_i32, %c0_i32_0 : i32, i32
  }
  func.func @transform_4(%arg0: i32, %arg1: i32) -> (i32, i32, i32) {
    %c0_i32 = arith.constant 0 : i32
    %c0_i32_0 = arith.constant 0 : i32
    %c0_i32_1 = arith.constant 0 : i32
    %c0_i32_2 = arith.constant 0 : i32
    return %c0_i32, %c0_i32_0, %c0_i32_1 : i32, i32, i32
  }
  func.func @transform_5(%arg0: i32, %arg1: i32) -> (i32, i32) {
    %c0_i32 = arith.constant 0 : i32
    %c0_i32_0 = arith.constant 0 : i32
    %c0_i32_1 = arith.constant 0 : i32
    return %c0_i32, %c0_i32_0 : i32, i32
  }
  func.func @transform_6(%arg0: i32, %arg1: i32) -> (i32, i32) {
    %c0_i32 = arith.constant 0 : i32
    %c0_i32_0 = arith.constant 0 : i32
    %c0_i32_1 = arith.constant 0 : i32
    return %c0_i32, %c0_i32_0 : i32, i32
  }
  func.func @transform_7(%arg0: i32, %arg1: i32) -> (i32, i32) {
    %c0_i32 = arith.constant 0 : i32
    %c0_i32_0 = arith.constant 0 : i32
    %c0_i32_1 = arith.constant 0 : i32
    return %c0_i32, %c0_i32_0 : i32, i32
  }
  func.func @transform_8(%arg0: i32, %arg1: i32) -> (i32, i32, i32, i32) {
    %c0_i32 = arith.constant 0 : i32
    %c0_i32_0 = arith.constant 0 : i32
    %c0_i32_1 = arith.constant 0 : i32
    return %arg0, %arg1, %c0_i32, %c0_i32_0 : i32, i32, i32, i32
  }
}

</mosaic_0001>

<llo_original>
// kernel: tpu_custom_call.1
$region0: #{tpu_custom_call.1}
  #allocation0 [shape = 'u32[]', space=smem, size = 0x4, offset = 0x4, fixed_abs, tag = 'smem constant byte address 0x4 - core index']
  #allocation1 [shape = 'u32[144,128]{1,0:T(1,128)}', space=vmem, size = 0x12000, scoped, tag = 'internal scratch']
  #allocation2 [shape = 'f32[160,64]{1,0:T(8,128)}', space=vmem, size = 0x14000, scoped, tag = 'scratch operand']
  %s0 = inlined_call_operand.hbm [shape: bf16[2,16,16,256], index: 0, kind: input, shape index: {}]
  %s1 = inlined_call_operand.vmem [shape: bf16[2,2,2,16,256], index: 1, kind: input, shape index: {}]
  %s2 = inlined_call_operand.vmem [shape: bf16[256,64], index: 2, kind: input, shape index: {}]
  %s3 = inlined_call_operand.vmem [shape: f32[1,64], index: 3, kind: input, shape index: {}]
  %s4 = inlined_call_operand.hbm [shape: bf16[9,64,64], index: 4, kind: input, shape index: {}]
  %s5 = inlined_call_operand.vmem [shape: f32[1,64], index: 5, kind: input, shape index: {}]
  %s6 = inlined_call_operand.vmem [shape: bf16[64,256], index: 6, kind: input, shape index: {}]
  %s7 = inlined_call_operand.vmem [shape: f32[1,256], index: 7, kind: input, shape index: {}]
  %s8 = inlined_call_operand.hbm [shape: bf16[2,16,16,256], index: 8, kind: output, shape index: {}]
  %s9 = sld [smem:[#allocation0]]
  $region73: #{tpu_custom_call.1} parent=0
    _
  %s11 = ssub.s32 1, %s9
  %s12 = scalar_select 0, %s11, %s9
  $region1: #{tpu_custom_call.1} parent=0
    #allocation3 [shape = 'u8[131072]{0}', space=vmem, size = 0x20000, scoped, tag = 'input window, operand 0']
    #allocation4 [shape = 's32[2]{0}', space=sflag, size = 0x8, scoped, tag = 'scoped memory for tpu_custom_call.1']
    #allocation5 [shape = 's32[2]{0}', space=sflag, size = 0x8, scoped, tag = 'scoped memory for tpu_custom_call.1']
    #allocation6 [shape = 'u8[147456]{0}', space=vmem, size = 0x24000, scoped, tag = 'input window, operand 4, single buffered']
    #allocation7 [shape = 's32[1]{0}', space=sflag, size = 0x4, scoped, tag = 'scoped memory for tpu_custom_call.1']
    #allocation8 [shape = 'u8[131072]{0}', space=vmem, size = 0x20000, scoped, tag = 'output window, operand 0']
    %13 = vsyncpa [#allocation4], 0
    %s14 = scalar_lea.sflag [#allocation4], 1
    %15 = vsyncpa %s14, 0
    %16 = vsyncpa [#allocation7], 0
    %17 = vsyncpa [#allocation5], 0
    %s18 = scalar_lea.sflag [#allocation5], 1
    %19 = vsyncpa %s18, 0
    loop: start=0, step=1, limit=6
    $region2: #{tpu_custom_call.1} parent=1 // loop_pre_header
      _
    $region3: #{tpu_custom_call.1} parent=1 // loop_header
      %s21 = sphi 0, %s25
      %p22 = scmp.ge.s32.totalorder %s21, 6
      %s28 = sphi 0, %s40
      %s29 = sphi 0, %s36
      %s30 = sphi 0, %s28
      %s31 = sphi 0, %s29
      %s32 = sphi 0, %s30
      %s33 = sphi 0, %s31
      %s45 = sphi 0, %s47
      %s48 = sphi 0, %s45
      %s49 = sphi 0, %s48
      %s65 = sphi 0, %s49
      %s73 = sphi 0, %s75
      %s76 = sphi 0, %s73
      %s77 = sphi 0, %s76
      %s93 = sphi 0, %s77
      %s97 = sphi 0, %s97
      %s99 = sphi 0, %s97
      %s100 = sphi 0, %s99
      %s114 = sphi 0, %s100
      %s118 = sphi 0, %s118
      %s120 = sphi 0, %s118
      %s121 = sphi 0, %s120
      %s135 = sphi 0, %s121
      %s139 = sphi 0, %s139
      %s141 = sphi 0, %s139
      %s142 = sphi 0, %s141
      %s156 = sphi 0, %s142
      %s160 = sphi 0, %s160
      %s162 = sphi 0, %s160
      %s163 = sphi 0, %s162
      %s177 = sphi 0, %s163
      %s181 = sphi 0, %s181
      %s183 = sphi 0, %s181
      %s184 = sphi 0, %s183
      %s198 = sphi 0, %s184
      %s202 = sphi 0, %s202
      %s204 = sphi 0, %s202
      %s205 = sphi 0, %s204
      %s219 = sphi 0, %s205
      %s227 = sphi 0, %s229
      %s230 = sphi 0, %s227
      %s231 = sphi 0, %s230
      %s247 = sphi 0, %s231
    $region4: #{tpu_custom_call.1} parent=1 // loop_header_branch
      %24 = sbr.rel (%p22) target = $region8
    $region5: #{tpu_custom_call.1} parent=1 // loop_body
      %s26 = ssub.s32 %s21, 1
      %s27 = ssub.s32 %s21, 2
      %s34 = sadd.s32 1, %s29
      %p35 = scmp.ge.s32.totalorder %s34, 2
      %s36 = scalar_select %p35, 0, %s34
      %s37 = sadd.s32 1, %s28
      %s38 = scalar_select %p35, %s37, %s28
      %p39 = scmp.ge.s32.totalorder %s38, 2
      %s40 = scalar_select %p39, 0, %s38
      %s41 = ssub.s32 %s28, %s40
      %s42 = ssub.s32 %s29, %s36
      %s43 = sor.u32 %s41, %s42
      %p44 = scmp.eq.s32.totalorder %s43, 0
      %s46 = sadd.s32 %s45, 1
      %s47 = scalar_select %p44, %s45, %s46
      %p50 = pneg %p44
      %p51 = scmp.eq.s32.totalorder %s21, 3
      %p52 = por %p50, %p51
      %p53 = scmp.ne.s32.totalorder %s45, %s48
      %p54 = scmp.eq.s32.totalorder %s21, 0
      %p55 = por %p53, %p54
      %p56 = scmp.ne.s32.totalorder %s45, %s48
      %p57 = scmp.eq.s32.totalorder %s26, 3
      %p58 = por %p56, %p57
      %p59 = scmp.ne.s32.totalorder %s48, %s49
      %p60 = scmp.eq.s32.totalorder %s26, 0
      %p61 = por %p59, %p60
      %p62 = scmp.ne.s32.totalorder %s48, %s49
      %p63 = scmp.eq.s32.totalorder %s27, 3
      %p64 = por %p62, %p63
      %p66 = scmp.ne.s32.totalorder %s49, %s65
      %p67 = scmp.eq.s32.totalorder %s27, 0
      %p68 = por %p66, %p67
      %s69 = ssub.s32 %s28, %s40
      %s70 = ssub.s32 %s29, %s36
      %s71 = sor.u32 %s69, %s70
      %p72 = scmp.eq.s32.totalorder %s71, 0
      %s74 = sadd.s32 %s73, 1
      %s75 = scalar_select %p72, %s73, %s74
      %p78 = pneg %p72
      %p79 = scmp.eq.s32.totalorder %s21, 3
      %p80 = por %p78, %p79
      %p81 = scmp.ne.s32.totalorder %s73, %s76
      %p82 = scmp.eq.s32.totalorder %s21, 0
      %p83 = por %p81, %p82
      %p84 = scmp.ne.s32.totalorder %s73, %s76
      %p85 = scmp.eq.s32.totalorder %s26, 3
      %p86 = por %p84, %p85
      %p87 = scmp.ne.s32.totalorder %s76, %s77
      %p88 = scmp.eq.s32.totalorder %s26, 0
      %p89 = por %p87, %p88
      %p90 = scmp.ne.s32.totalorder %s76, %s77
      %p91 = scmp.eq.s32.totalorder %s27, 3
      %p92 = por %p90, %p91
      %p94 = scmp.ne.s32.totalorder %s77, %s93
      %p95 = scmp.eq.s32.totalorder %s27, 0
      %p96 = por %p94, %p95
      %s98 = sadd.s32 %s97, 1
      %p101 = scmp.eq.s32.totalorder %s21, 3
      %p102 = scmp.ne.s32.totalorder %s97, %s99
      %p103 = scmp.eq.s32.totalorder %s21, 0
      %p104 = por %p102, %p103
      %p105 = scmp.ne.s32.totalorder %s97, %s99
      %p106 = scmp.eq.s32.totalorder %s26, 3
      %p107 = por %p105, %p106
      %p108 = scmp.ne.s32.totalorder %s99, %s100
      %p109 = scmp.eq.s32.totalorder %s26, 0
      %p110 = por %p108, %p109
      %p111 = scmp.ne.s32.totalorder %s99, %s100
      %p112 = scmp.eq.s32.totalorder %s27, 3
      %p113 = por %p111, %p112
      %p115 = scmp.ne.s32.totalorder %s100, %s114
      %p116 = scmp.eq.s32.totalorder %s27, 0
      %p117 = por %p115, %p116
      %s119 = sadd.s32 %s118, 1
      %p122 = scmp.eq.s32.totalorder %s21, 3
      %p123 = scmp.ne.s32.totalorder %s118, %s120
      %p124 = scmp.eq.s32.totalorder %s21, 0
      %p125 = por %p123, %p124
      %p126 = scmp.ne.s32.totalorder %s118, %s120
      %p127 = scmp.eq.s32.totalorder %s26, 3
      %p128 = por %p126, %p127
      %p129 = scmp.ne.s32.totalorder %s120, %s121
      %p130 = scmp.eq.s32.totalorder %s26, 0
      %p131 = por %p129, %p130
      %p132 = scmp.ne.s32.totalorder %s120, %s121
      %p133 = scmp.eq.s32.totalorder %s27, 3
      %p134 = por %p132, %p133
      %p136 = scmp.ne.s32.totalorder %s121, %s135
      %p137 = scmp.eq.s32.totalorder %s27, 0
      %p138 = por %p136, %p137
      %s140 = sadd.s32 %s139, 1
      %p143 = scmp.eq.s32.totalorder %s21, 3
      %p144 = scmp.ne.s32.totalorder %s139, %s141
      %p145 = scmp.eq.s32.totalorder %s21, 0
      %p146 = por %p144, %p145
      %p147 = scmp.ne.s32.totalorder %s139, %s141
      %p148 = scmp.eq.s32.totalorder %s26, 3
      %p149 = por %p147, %p148
      %p150 = scmp.ne.s32.totalorder %s141, %s142
      %p151 = scmp.eq.s32.totalorder %s26, 0
      %p152 = por %p150, %p151
      %p153 = scmp.ne.s32.totalorder %s141, %s142
      %p154 = scmp.eq.s32.totalorder %s27, 3
      %p155 = por %p153, %p154
      %p157 = scmp.ne.s32.totalorder %s142, %s156
      %p158 = scmp.eq.s32.totalorder %s27, 0
      %p159 = por %p157, %p158
      %s161 = sadd.s32 %s160, 1
      %p164 = scmp.eq.s32.totalorder %s21, 3
      %p165 = scmp.ne.s32.totalorder %s160, %s162
      %p166 = scmp.eq.s32.totalorder %s21, 0
      %p167 = por %p165, %p166
      %p168 = scmp.ne.s32.totalorder %s160, %s162
      %p169 = scmp.eq.s32.totalorder %s26, 3
      %p170 = por %p168, %p169
      %p171 = scmp.ne.s32.totalorder %s162, %s163
      %p172 = scmp.eq.s32.totalorder %s26, 0
      %p173 = por %p171, %p172
      %p174 = scmp.ne.s32.totalorder %s162, %s163
      %p175 = scmp.eq.s32.totalorder %s27, 3
      %p176 = por %p174, %p175
      %p178 = scmp.ne.s32.totalorder %s163, %s177
      %p179 = scmp.eq.s32.totalorder %s27, 0
      %p180 = por %p178, %p179
      %s182 = sadd.s32 %s181, 1
      %p185 = scmp.eq.s32.totalorder %s21, 3
      %p186 = scmp.ne.s32.totalorder %s181, %s183
      %p187 = scmp.eq.s32.totalorder %s21, 0
      %p188 = por %p186, %p187
      %p189 = scmp.ne.s32.totalorder %s181, %s183
      %p190 = scmp.eq.s32.totalorder %s26, 3
      %p191 = por %p189, %p190
      %p192 = scmp.ne.s32.totalorder %s183, %s184
      %p193 = scmp.eq.s32.totalorder %s26, 0
      %p194 = por %p192, %p193
      %p195 = scmp.ne.s32.totalorder %s183, %s184
      %p196 = scmp.eq.s32.totalorder %s27, 3
      %p197 = por %p195, %p196
      %p199 = scmp.ne.s32.totalorder %s184, %s198
      %p200 = scmp.eq.s32.totalorder %s27, 0
      %p201 = por %p199, %p200
      %s203 = sadd.s32 %s202, 1
      %p206 = scmp.eq.s32.totalorder %s21, 3
      %p207 = scmp.ne.s32.totalorder %s202, %s204
      %p208 = scmp.eq.s32.totalorder %s21, 0
      %p209 = por %p207, %p208
      %p210 = scmp.ne.s32.totalorder %s202, %s204
      %p211 = scmp.eq.s32.totalorder %s26, 3
      %p212 = por %p210, %p211
      %p213 = scmp.ne.s32.totalorder %s204, %s205
      %p214 = scmp.eq.s32.totalorder %s26, 0
      %p215 = por %p213, %p214
      %p216 = scmp.ne.s32.totalorder %s204, %s205
      %p217 = scmp.eq.s32.totalorder %s27, 3
      %p218 = por %p216, %p217
      %p220 = scmp.ne.s32.totalorder %s205, %s219
      %p221 = scmp.eq.s32.totalorder %s27, 0
      %p222 = por %p220, %p221
      %s223 = ssub.s32 %s28, %s40
      %s224 = ssub.s32 %s29, %s36
      %s225 = sor.u32 %s223, %s224
      %p226 = scmp.eq.s32.totalorder %s225, 0
      %s228 = sadd.s32 %s227, 1
      %s229 = scalar_select %p226, %s227, %s228
      %p232 = pneg %p226
      %p233 = scmp.eq.s32.totalorder %s21, 3
      %p234 = por %p232, %p233
      %p235 = scmp.ne.s32.totalorder %s227, %s230
      %p236 = scmp.eq.s32.totalorder %s21, 0
      %p237 = por %p235, %p236
      %p238 = scmp.ne.s32.totalorder %s227, %s230
      %p239 = scmp.eq.s32.totalorder %s26, 3
      %p240 = por %p238, %p239
      %p241 = scmp.ne.s32.totalorder %s230, %s231
      %p242 = scmp.eq.s32.totalorder %s26, 0
      %p243 = por %p241, %p242
      %p244 = scmp.ne.s32.totalorder %s230, %s231
      %p245 = scmp.eq.s32.totalorder %s27, 3
      %p246 = por %p244, %p245
      %p248 = scmp.ne.s32.totalorder %s231, %s247
      %p249 = scmp.eq.s32.totalorder %s27, 0
      %p250 = por %p248, %p249
      %p251 = scmp.le.s32.totalorder 1, %s21
      %p252 = scmp.lt.s32.totalorder %s21, 5
      %p253 = pnand %p251, %p252
      %p254 = pneg %p253
      // Predicated region
      $region9: #{tpu_custom_call.1} parent=5 // pred_check
        _
      $region10: #{tpu_custom_call.1} parent=5 // pred_check_branch
        %256 = sbr.rel (%p253) target = $region12
      $region11: #{tpu_custom_call.1} parent=5 // pred_region
        %s257 = ssub.s32 %s21, 1
        // Predicated region
        $region13: #{tpu_custom_call.1} parent=11 // pred_check
          %p258 = pneg %p110
        $region14: #{tpu_custom_call.1} parent=11 // pred_check_branch
          %260 = sbr.rel (%p258) target = $region16
        $region15: #{tpu_custom_call.1} parent=11 // pred_region
          _
        $region16: #{tpu_custom_call.1} parent=11 // pred_fallthru
          _
        // Predicated region
        $region17: #{tpu_custom_call.1} parent=11 // pred_check
          %p261 = pneg %p131
        $region18: #{tpu_custom_call.1} parent=11 // pred_check_branch
          %263 = sbr.rel (%p261) target = $region20
        $region19: #{tpu_custom_call.1} parent=11 // pred_region
          _
        $region20: #{tpu_custom_call.1} parent=11 // pred_fallthru
          _
        // Predicated region
        $region21: #{tpu_custom_call.1} parent=11 // pred_check
          %p264 = pneg %p152
        $region22: #{tpu_custom_call.1} parent=11 // pred_check_branch
          %266 = sbr.rel (%p264) target = $region24
        $region23: #{tpu_custom_call.1} parent=11 // pred_region
          %s268 = ssub.s32 4608, 4608
          %269 = vsyncadd [#allocation7], %s268
          %s270 = sshll.u32 [#allocation6], 4
          %s271 = int_to_ptr.vmem [resolvable:$true] %s270
          %276 = dma.hbm_to_vmem [thread:$0]  %s4, 4608, %s271, [#allocation7], 64, 64, 4
        $region24: #{tpu_custom_call.1} parent=11 // pred_fallthru
          _
        // Predicated region
        $region25: #{tpu_custom_call.1} parent=11 // pred_check
          %p277 = pneg %p173
        $region26: #{tpu_custom_call.1} parent=11 // pred_check_branch
          %279 = sbr.rel (%p277) target = $region28
        $region27: #{tpu_custom_call.1} parent=11 // pred_region
          _
        $region28: #{tpu_custom_call.1} parent=11 // pred_fallthru
          _
        // Predicated region
        $region29: #{tpu_custom_call.1} parent=11 // pred_check
          %p280 = pneg %p194
        $region30: #{tpu_custom_call.1} parent=11 // pred_check_branch
          %282 = sbr.rel (%p280) target = $region32
        $region31: #{tpu_custom_call.1} parent=11 // pred_region
          _
        $region32: #{tpu_custom_call.1} parent=11 // pred_fallthru
          _
        // Predicated region
        $region33: #{tpu_custom_call.1} parent=11 // pred_check
          %p283 = pneg %p215
        $region34: #{tpu_custom_call.1} parent=11 // pred_check_branch
          %285 = sbr.rel (%p283) target = $region36
        $region35: #{tpu_custom_call.1} parent=11 // pred_region
          _
        $region36: #{tpu_custom_call.1} parent=11 // pred_fallthru
          _
      $region12: #{tpu_custom_call.1} parent=5 // pred_fallthru
        _
      %p286 = scmp.lt.s32.totalorder %s21, 4
      // Predicated region
      $region37: #{tpu_custom_call.1} parent=5 // pred_check
        %p287 = pneg %p286
      $region38: #{tpu_custom_call.1} parent=5 // pred_check_branch
        %289 = sbr.rel (%p287) target = $region40
      $region39: #{tpu_custom_call.1} parent=5 // pred_region
        // Predicated region
        $region41: #{tpu_custom_call.1} parent=39 // pred_check
          %p290 = pneg %p55
        $region42: #{tpu_custom_call.1} parent=39 // pred_check_branch
          %292 = sbr.rel (%p290) target = $region44
        $region43: #{tpu_custom_call.1} parent=39 // pred_region
          %s293 = sand.u32 %s45, 1
          %s294 = scalar_lea.sflag [#allocation4], %s293
          %s295 = sand.u32 %s45, 1
          %s296 = smul.addr %s295, 128
          %s297 = scalar_lea.vmem [#allocation3], %s296
          %s298 = smul.u32 8, %s29
          %s300 = ssub.s32 2048, 2048
          %301 = vsyncadd %s294, %s300
          %s302 = smul.addr %s298, 4
          %s303 = smul.addr %s28, 64
          %s304 = sadd.s32 %s302, %s303
          %s305 = smul.addr %s304, 64
          %s306 = scalar_lea.hbm %s0, %s305
          %s307 = sshll.u32 %s297, 4
          %s308 = int_to_ptr.vmem [resolvable:$true] %s307
          %313 = dma.hbm_to_vmem [thread:$0]  %s306, 2048, %s308, %s294, 128, 128, 8
        $region44: #{tpu_custom_call.1} parent=39 // pred_fallthru
          _
        // Predicated region
        $region45: #{tpu_custom_call.1} parent=39 // pred_check
          %p314 = pneg %p83
        $region46: #{tpu_custom_call.1} parent=39 // pred_check_branch
          %316 = sbr.rel (%p314) target = $region48
        $region47: #{tpu_custom_call.1} parent=39 // pred_region
          %p317 = scmp.lt.s32.totalorder %s28, 1
          %s318 = scalar_select %p317, %s28, 1
          %p319 = scmp.lt.s32.totalorder %s29, 1
          %s320 = scalar_select %p319, %s29, 1
          %s321 = smul.addr %s320, 8
          %s322 = smul.addr %s318, 16
          %s323 = sadd.s32 %s321, %s322
          %s324 = smul.addr %s323, 4
          %s325 = scalar_lea.vmem %s1, %s324
        $region48: #{tpu_custom_call.1} parent=39 // pred_fallthru
          _
      $region40: #{tpu_custom_call.1} parent=5 // pred_fallthru
        _
      %p326 = scmp.le.s32.totalorder 1, %s21
      %p327 = scmp.lt.s32.totalorder %s21, 5
      %p328 = pnand %p326, %p327
      %p329 = pneg %p328
      // Predicated region
      $region49: #{tpu_custom_call.1} parent=5 // pred_check
        _
      $region50: #{tpu_custom_call.1} parent=5 // pred_check_branch
        %331 = sbr.rel (%p328) target = $region52
      $region51: #{tpu_custom_call.1} parent=5 // pred_region
        %s332 = ssub.s32 %s21, 1
        %s333 = sand.u32 %s48, 1
        %s334 = scalar_lea.sflag [#allocation4], %s333
        %s335 = sand.u32 %s48, 1
        %s336 = smul.addr %s335, 128
        %s337 = scalar_lea.vmem [#allocation3], %s336
        // Predicated region
        $region53: #{tpu_custom_call.1} parent=51 // pred_check
          %p338 = pneg %p61
        $region54: #{tpu_custom_call.1} parent=51 // pred_check_branch
          %340 = sbr.rel (%p338) target = $region56
        $region55: #{tpu_custom_call.1} parent=51 // pred_region
          %341 = dma.done %s334, 2048
        $region56: #{tpu_custom_call.1} parent=51 // pred_fallthru
          _
        // Predicated region
        $region57: #{tpu_custom_call.1} parent=51 // pred_check
          %p342 = pneg %p152
        $region58: #{tpu_custom_call.1} parent=51 // pred_check_branch
          %344 = sbr.rel (%p342) target = $region60
        $region59: #{tpu_custom_call.1} parent=51 // pred_region
          %345 = dma.done [#allocation7], 4608
        $region60: #{tpu_custom_call.1} parent=51 // pred_fallthru
          _
        %s346 = sand.u32 %s48, 1
        %s347 = scalar_lea.sflag [#allocation4], %s346
        %s348 = sand.u32 %s48, 1
        %s349 = smul.addr %s348, 128
        %s350 = scalar_lea.vmem [#allocation3], %s349
        %p351 = pneg %p61
        %p352 = pneg %p58
        %p353 = scmp.lt.s32.totalorder %s30, 1
        %s354 = scalar_select %p353, %s30, 1
        %p355 = scmp.lt.s32.totalorder %s31, 1
        %s356 = scalar_select %p355, %s31, 1
        %s357 = smul.addr %s356, 8
        %s358 = smul.addr %s354, 16
        %s359 = sadd.s32 %s357, %s358
        %s360 = smul.addr %s359, 4
        %s361 = scalar_lea.vmem %s1, %s360
        %p362 = pneg %p89
        %p363 = pneg %p86
        %p364 = pneg %p110
        %p365 = pneg %p107
        %p366 = pneg %p131
        %p367 = pneg %p128
        %p368 = pneg %p152
        %p369 = pneg %p149
        %p370 = pneg %p173
        %p371 = pneg %p170
        %p372 = pneg %p194
        %p373 = pneg %p191
        %p374 = pneg %p215
        %p375 = pneg %p212
        %p376 = pneg %p243
        %p377 = pneg %p240
        %s378 = sand.u32 %s230, 1
        %s379 = scalar_lea.sflag [#allocation5], %s378
        %s380 = sand.u32 %s230, 1
        %s381 = smul.addr %s380, 128
        %s382 = scalar_lea.vmem [#allocation8], %s381
        %s383 = smul.u32 8, %s31
        %p384 = scmp.lt.s32.totalorder %s30, 1
        %s385 = scalar_select %p384, %s30, 1
        %p386 = scmp.lt.s32.totalorder %s31, 1
        %s387 = scalar_select %p386, %s31, 1
        %s388 = smul.addr %s387, 8
        %s389 = smul.addr %s385, 16
        %s390 = sadd.s32 %s388, %s389
        %s391 = smul.addr %s390, 4
        %s392 = scalar_lea.vmem %s1, %s391
        %s393 = smul.u32 8, %s31
        %v397 = vld [vmem:[%s337] sm:$0xff]
        %v398 = vld [vmem:[%s337 + $0x8] sm:$0xff]
        %v399 = vld [vmem:[%s337 + $0x10] sm:$0xff]
        %v400 = vld [vmem:[%s337 + $0x18] sm:$0xff]
        %v401 = vld [vmem:[%s337 + $0x20] sm:$0xff]
        %v402 = vld [vmem:[%s337 + $0x28] sm:$0xff]
        %v403 = vld [vmem:[%s337 + $0x30] sm:$0xff]
        %v404 = vld [vmem:[%s337 + $0x38] sm:$0xff]
        %v405 = vld [vmem:[%s337 + $0x40] sm:$0xff]
        %v406 = vld [vmem:[%s337 + $0x48] sm:$0xff]
        %v407 = vld [vmem:[%s337 + $0x50] sm:$0xff]
        %v408 = vld [vmem:[%s337 + $0x58] sm:$0xff]
        %v409 = vld [vmem:[%s337 + $0x60] sm:$0xff]
        %v410 = vld [vmem:[%s337 + $0x68] sm:$0xff]
        %v411 = vld [vmem:[%s337 + $0x70] sm:$0xff]
        %v412 = vld [vmem:[%s337 + $0x78] sm:$0xff]
        %v413 = vld [vmem:[%s392] sm:$0xff]
        %v414 = vld [vmem:[%s392 + $0x8] sm:$0xff]
        %v415 = vld [vmem:[%s392 + $0x10] sm:$0xff]
        %v416 = vld [vmem:[%s392 + $0x18] sm:$0xff]
        %v417 = vld [vmem:[%s2] sm:$0xf]
        %v418 = vld [vmem:[%s2 + $0x4] sm:$0xf]
        %v419 = vld [vmem:[%s2 + $0x8] sm:$0xf]
        %v420 = vld [vmem:[%s2 + $0xc] sm:$0xf]
        %v421 = vld [vmem:[%s2 + $0x10] sm:$0xf]
        %v422 = vld [vmem:[%s2 + $0x14] sm:$0xf]
        %v423 = vld [vmem:[%s2 + $0x18] sm:$0xf]
        %v424 = vld [vmem:[%s2 + $0x1c] sm:$0xf]
        %v425 = vld [vmem:[%s2 + $0x20] sm:$0xf]
        %v426 = vld [vmem:[%s2 + $0x24] sm:$0xf]
        %v427 = vld [vmem:[%s2 + $0x28] sm:$0xf]
        %v428 = vld [vmem:[%s2 + $0x2c] sm:$0xf]
        %v429 = vld [vmem:[%s2 + $0x30] sm:$0xf]
        %v430 = vld [vmem:[%s2 + $0x34] sm:$0xf]
        %v431 = vld [vmem:[%s2 + $0x38] sm:$0xf]
        %v432 = vld [vmem:[%s2 + $0x3c] sm:$0xf]
        %v433 = vld [vmem:[%s2 + $0x40] sm:$0xf]
        %v434 = vld [vmem:[%s2 + $0x44] sm:$0xf]
        %v435 = vld [vmem:[%s2 + $0x48] sm:$0xf]
        %v436 = vld [vmem:[%s2 + $0x4c] sm:$0xf]
        %v437 = vld [vmem:[%s2 + $0x50] sm:$0xf]
        %v438 = vld [vmem:[%s2 + $0x54] sm:$0xf]
        %v439 = vld [vmem:[%s2 + $0x58] sm:$0xf]
        %v440 = vld [vmem:[%s2 + $0x5c] sm:$0xf]
        %v441 = vld [vmem:[%s2 + $0x60] sm:$0xf]
        %v442 = vld [vmem:[%s2 + $0x64] sm:$0xf]
        %v443 = vld [vmem:[%s2 + $0x68] sm:$0xf]
        %v444 = vld [vmem:[%s2 + $0x6c] sm:$0xf]
        %v445 = vld [vmem:[%s2 + $0x70] sm:$0xf]
        %v446 = vld [vmem:[%s2 + $0x74] sm:$0xf]
        %v447 = vld [vmem:[%s2 + $0x78] sm:$0xf]
        %v448 = vld [vmem:[%s2 + $0x7c] sm:$0xf]
        %v449 = vld [vmem:[%s3] sm:$0x1]
        %v451 = vlaneseq
        %v452 = vshrl.u32 %v451, 7
        %v453 = vsub.s32 0, %v452
        %v454 = vrot.slane %v449, %v453
        %v472 = vunpack.c.l.b16 %v397
        %v473 = vunpack.c.h.b16 %v397
        %v474 = vunpack.c.l.b16 %v398
        %v475 = vunpack.c.h.b16 %v398
        %v476 = vunpack.c.l.b16 %v399
        %v477 = vunpack.c.h.b16 %v399
        %v478 = vunpack.c.l.b16 %v400
        %v479 = vunpack.c.h.b16 %v400
        %v480 = vunpack.c.l.b16 %v401
        %v481 = vunpack.c.h.b16 %v401
        %v482 = vunpack.c.l.b16 %v402
        %v483 = vunpack.c.h.b16 %v402
        %v484 = vunpack.c.l.b16 %v403
        %v485 = vunpack.c.h.b16 %v403
        %v486 = vunpack.c.l.b16 %v404
        %v487 = vunpack.c.h.b16 %v404
        %v488 = vunpack.c.l.b16 %v405
        %v489 = vunpack.c.h.b16 %v405
        %v490 = vunpack.c.l.b16 %v406
        %v491 = vunpack.c.h.b16 %v406
        %v492 = vunpack.c.l.b16 %v407
        %v493 = vunpack.c.h.b16 %v407
        %v494 = vunpack.c.l.b16 %v408
        %v495 = vunpack.c.h.b16 %v408
        %v496 = vunpack.c.l.b16 %v409
        %v497 = vunpack.c.h.b16 %v409
        %v498 = vunpack.c.l.b16 %v410
        %v499 = vunpack.c.h.b16 %v410
        %v500 = vunpack.c.l.b16 %v411
        %v501 = vunpack.c.h.b16 %v411
        %v502 = vunpack.c.l.b16 %v412
        %v503 = vunpack.c.h.b16 %v412
        %v504 = vpack.c.b16 %v474, %v472
        %v505 = vpack.c.b16 %v475, %v473
        %v506 = vpack.c.b16 %v478, %v476
        %v507 = vpack.c.b16 %v479, %v477
        %v508 = vpack.c.b16 %v482, %v480
        %v509 = vpack.c.b16 %v483, %v481
        %v510 = vpack.c.b16 %v486, %v484
        %v511 = vpack.c.b16 %v487, %v485
        %v512 = vpack.c.b16 %v490, %v488
        %v513 = vpack.c.b16 %v491, %v489
        %v514 = vpack.c.b16 %v494, %v492
        %v515 = vpack.c.b16 %v495, %v493
        %v516 = vpack.c.b16 %v498, %v496
        %v517 = vpack.c.b16 %v499, %v497
        %v518 = vpack.c.b16 %v502, %v500
        %v519 = vpack.c.b16 %v503, %v501
        %v568 = vunpack.c.l.b16 %v417
        %v569 = vunpack.c.l.b16 %v418
        %v570 = vunpack.c.l.b16 %v419
        %v571 = vunpack.c.l.b16 %v420
        %v572 = vunpack.c.l.b16 %v421
        %v573 = vunpack.c.l.b16 %v422
        %v574 = vunpack.c.l.b16 %v423
        %v575 = vunpack.c.l.b16 %v424
        %v576 = vunpack.c.l.b16 %v425
        %v577 = vunpack.c.l.b16 %v426
        %v578 = vunpack.c.l.b16 %v427
        %v579 = vunpack.c.l.b16 %v428
        %v580 = vunpack.c.l.b16 %v429
        %v581 = vunpack.c.l.b16 %v430
        %v582 = vunpack.c.l.b16 %v431
        %v583 = vunpack.c.l.b16 %v432
        %v584 = vunpack.c.l.b16 %v433
        %v585 = vunpack.c.l.b16 %v434
        %v586 = vunpack.c.l.b16 %v435
        %v587 = vunpack.c.l.b16 %v436
        %v588 = vunpack.c.l.b16 %v437
        %v589 = vunpack.c.l.b16 %v438
        %v590 = vunpack.c.l.b16 %v439
        %v591 = vunpack.c.l.b16 %v440
        %v592 = vunpack.c.l.b16 %v441
        %v593 = vunpack.c.l.b16 %v442
        %v594 = vunpack.c.l.b16 %v443
        %v595 = vunpack.c.l.b16 %v444
        %v596 = vunpack.c.l.b16 %v445
        %v597 = vunpack.c.l.b16 %v446
        %v598 = vunpack.c.l.b16 %v447
        %v599 = vunpack.c.l.b16 %v448
        %v600 = vpack.c.b16 %v569, %v568
        %v601 = vpack.c.b16 %v571, %v570
        %v602 = vpack.c.b16 %v573, %v572
        %v603 = vpack.c.b16 %v575, %v574
        %v604 = vpack.c.b16 %v577, %v576
        %v605 = vpack.c.b16 %v579, %v578
        %v606 = vpack.c.b16 %v581, %v580
        %v607 = vpack.c.b16 %v583, %v582
        %v608 = vpack.c.b16 %v585, %v584
        %v609 = vpack.c.b16 %v587, %v586
        %v610 = vpack.c.b16 %v589, %v588
        %v611 = vpack.c.b16 %v591, %v590
        %v612 = vpack.c.b16 %v593, %v592
        %v613 = vpack.c.b16 %v595, %v594
        %v614 = vpack.c.b16 %v597, %v596
        %v615 = vpack.c.b16 %v599, %v598
        %632 = vmatprep.subr.bf16.mxu0 0
        %633 = vmatpush1.bf16.msra.mxu0 %v607
        %634 = vmatprep.subr.bf16.mxu0 0
        %635 = vmatpush1.bf16.msra.mxu0 %v606
        %636 = vmatprep.subr.bf16.mxu0 0
        %637 = vmatpush1.bf16.msra.mxu0 %v605
        %638 = vmatprep.subr.bf16.mxu0 0
        %639 = vmatpush1.bf16.msra.mxu0 %v604
        %640 = vmatprep.subr.bf16.mxu0 0
        %641 = vmatpush1.bf16.msra.mxu0 %v603
        %642 = vmatprep.subr.bf16.mxu0 0
        %643 = vmatpush1.bf16.msra.mxu0 %v602
        %644 = vmatprep.subr.bf16.mxu0 0
        %645 = vmatpush1.bf16.msra.mxu0 %v601
        %646 = vmatprep.subr.bf16.mxu0 0
        %647 = vmatpush1.bf16.msra.mxu0 %v600
        %648 = vmatprep.subr.bf16.mxu0 0
        %649 = vmatpush2.bf16.msra.mxu0 %v615
        %650 = vmatprep.subr.bf16.mxu0 0
        %651 = vmatpush2.bf16.msra.mxu0 %v614
        %652 = vmatprep.subr.bf16.mxu0 0
        %653 = vmatpush2.bf16.msra.mxu0 %v613
        %654 = vmatprep.subr.bf16.mxu0 0
        %655 = vmatpush2.bf16.msra.mxu0 %v612
        %656 = vmatprep.subr.bf16.mxu0 0
        %657 = vmatpush2.bf16.msra.mxu0 %v611
        %658 = vmatprep.subr.bf16.mxu0 0
        %659 = vmatpush2.bf16.msra.mxu0 %v610
        %660 = vmatprep.subr.bf16.mxu0 0
        %661 = vmatpush2.bf16.msra.mxu0 %v609
        %662 = vmatprep.subr.bf16.mxu0 0
        %663 = vmatpush2.bf16.msra.mxu0 %v608
        %664 = vmatprep.mubr.bf16.mxu0 %v505
        %665 = vmatmul.mubr.bf16.gmra.mxu0 %v504
        %v666 = vpop.f32.mrf.mxu0
        %v667 = vadd.f32 %v454, %v666
        %v668 = vpop.f32.mrf.mxu0
        %v669 = vpop.f32.mrf.mxu0
        %v670 = vadd.f32 %v454, %v669
        %v671 = vpop.f32.mrf.mxu0
        %672 = vmatprep.mubr.bf16.mxu0 %v507
        %673 = vmatmul.mubr.bf16.gmra.mxu0 %v506
        %v674 = vpop.f32.mrf.mxu0
        %v675 = vadd.f32 %v454, %v674
        %v676 = vpop.f32.mrf.mxu0
        %v677 = vpop.f32.mrf.mxu0
        %v678 = vadd.f32 %v454, %v677
        %v679 = vpop.f32.mrf.mxu0
        %680 = vmatprep.mubr.bf16.mxu0 %v509
        %681 = vmatmul.mubr.bf16.gmra.mxu0 %v508
        %v682 = vpop.f32.mrf.mxu0
        %v683 = vadd.f32 %v454, %v682
        %v684 = vpop.f32.mrf.mxu0
        %v685 = vpop.f32.mrf.mxu0
        %v686 = vadd.f32 %v454, %v685
        %v687 = vpop.f32.mrf.mxu0
        %688 = vmatprep.mubr.bf16.mxu0 %v511
        %689 = vmatmul.mubr.bf16.gmra.mxu0 %v510
        %v690 = vpop.f32.mrf.mxu0
        %v691 = vadd.f32 %v454, %v690
        %v692 = vpop.f32.mrf.mxu0
        %v693 = vpop.f32.mrf.mxu0
        %v694 = vadd.f32 %v454, %v693
        %v695 = vpop.f32.mrf.mxu0
        %696 = vmatprep.mubr.bf16.mxu0 %v513
        %697 = vmatmul.mubr.bf16.gmra.mxu0 %v512
        %v698 = vpop.f32.mrf.mxu0
        %v699 = vadd.f32 %v454, %v698
        %v700 = vpop.f32.mrf.mxu0
        %v701 = vpop.f32.mrf.mxu0
        %v702 = vadd.f32 %v454, %v701
        %v703 = vpop.f32.mrf.mxu0
        %704 = vmatprep.mubr.bf16.mxu0 %v515
        %705 = vmatmul.mubr.bf16.gmra.mxu0 %v514
        %v706 = vpop.f32.mrf.mxu0
        %v707 = vadd.f32 %v454, %v706
        %v708 = vpop.f32.mrf.mxu0
        %v709 = vpop.f32.mrf.mxu0
        %v710 = vadd.f32 %v454, %v709
        %v711 = vpop.f32.mrf.mxu0
        %712 = vmatprep.mubr.bf16.mxu0 %v517
        %713 = vmatmul.mubr.bf16.gmra.mxu0 %v516
        %v714 = vpop.f32.mrf.mxu0
        %v715 = vadd.f32 %v454, %v714
        %v716 = vpop.f32.mrf.mxu0
        %v717 = vpop.f32.mrf.mxu0
        %v718 = vadd.f32 %v454, %v717
        %v719 = vpop.f32.mrf.mxu0
        %720 = vmatprep.mubr.bf16.mxu0 %v519
        %721 = vmatmul.mubr.bf16.gmra.mxu0 %v518
        %v722 = vpop.f32.mrf.mxu0
        %v723 = vadd.f32 %v454, %v722
        %v724 = vpop.f32.mrf.mxu0
        %v725 = vpop.f32.mrf.mxu0
        %v726 = vadd.f32 %v454, %v725
        %v727 = vpop.f32.mrf.mxu0
        %728 = vdwg.mxu0
        %v729 = vmax.f32 %v667, 0.0
        %v730 = vmax.f32 %v670, 0.0
        %v731 = vmax.f32 %v675, 0.0
        %v732 = vmax.f32 %v678, 0.0
        %v733 = vmax.f32 %v683, 0.0
        %v734 = vmax.f32 %v686, 0.0
        %v735 = vmax.f32 %v691, 0.0
        %v736 = vmax.f32 %v694, 0.0
        %v737 = vmax.f32 %v699, 0.0
        %v738 = vmax.f32 %v702, 0.0
        %v739 = vmax.f32 %v707, 0.0
        %v740 = vmax.f32 %v710, 0.0
        %v741 = vmax.f32 %v715, 0.0
        %v742 = vmax.f32 %v718, 0.0
        %v743 = vmax.f32 %v723, 0.0
        %v744 = vmax.f32 %v726, 0.0
        %v749 = vunpack.c.l.b16 %v413
        %v750 = vunpack.c.h.b16 %v413
        %v751 = vunpack.c.l.b16 %v414
        %v752 = vunpack.c.h.b16 %v414
        %v753 = vunpack.c.l.b16 %v415
        %v754 = vunpack.c.h.b16 %v415
        %v755 = vunpack.c.l.b16 %v416
        %v756 = vunpack.c.h.b16 %v416
        %v757 = vpack.c.b16 %v751, %v749
        %v758 = vpack.c.b16 %v752, %v750
        %v759 = vpack.c.b16 %v755, %v753
        %v760 = vpack.c.b16 %v756, %v754
        %765 = vmatprep.subr.bf16.mxu0 0
        %766 = vmatpush1.bf16.msra.mxu0 %v607
        %767 = vmatprep.subr.bf16.mxu0 0
        %768 = vmatpush1.bf16.msra.mxu0 %v606
        %769 = vmatprep.subr.bf16.mxu0 0
        %770 = vmatpush1.bf16.msra.mxu0 %v605
        %771 = vmatprep.subr.bf16.mxu0 0
        %772 = vmatpush1.bf16.msra.mxu0 %v604
        %773 = vmatprep.subr.bf16.mxu0 0
        %774 = vmatpush1.bf16.msra.mxu0 %v603
        %775 = vmatprep.subr.bf16.mxu0 0
        %776 = vmatpush1.bf16.msra.mxu0 %v602
        %777 = vmatprep.subr.bf16.mxu0 0
        %778 = vmatpush1.bf16.msra.mxu0 %v601
        %779 = vmatprep.subr.bf16.mxu0 0
        %780 = vmatpush1.bf16.msra.mxu0 %v600
        %781 = vmatprep.subr.bf16.mxu0 0
        %782 = vmatpush2.bf16.msra.mxu0 %v615
        %783 = vmatprep.subr.bf16.mxu0 0
        %784 = vmatpush2.bf16.msra.mxu0 %v614
        %785 = vmatprep.subr.bf16.mxu0 0
        %786 = vmatpush2.bf16.msra.mxu0 %v613
        %787 = vmatprep.subr.bf16.mxu0 0
        %788 = vmatpush2.bf16.msra.mxu0 %v612
        %789 = vmatprep.subr.bf16.mxu0 0
        %790 = vmatpush2.bf16.msra.mxu0 %v611
        %791 = vmatprep.subr.bf16.mxu0 0
        %792 = vmatpush2.bf16.msra.mxu0 %v610
        %793 = vmatprep.subr.bf16.mxu0 0
        %794 = vmatpush2.bf16.msra.mxu0 %v609
        %795 = vmatprep.subr.bf16.mxu0 0
        %796 = vmatpush2.bf16.msra.mxu0 %v608
        %797 = vmatprep.mubr.bf16.mxu0 %v758
        %798 = vmatmul.mubr.bf16.gmra.mxu0 %v757
        %v799 = vpop.f32.mrf.mxu0
        %v800 = vadd.f32 %v454, %v799
        %v801 = vpop.f32.mrf.mxu0
        %v802 = vpop.f32.mrf.mxu0
        %v803 = vadd.f32 %v454, %v802
        %v804 = vpop.f32.mrf.mxu0
        %805 = vmatprep.mubr.bf16.mxu0 %v760
        %806 = vmatmul.mubr.bf16.gmra.mxu0 %v759
        %v807 = vpop.f32.mrf.mxu0
        %v808 = vadd.f32 %v454, %v807
        %v809 = vpop.f32.mrf.mxu0
        %v810 = vpop.f32.mrf.mxu0
        %v811 = vadd.f32 %v454, %v810
        %v812 = vpop.f32.mrf.mxu0
        %813 = vdwg.mxu0
        %v814 = vmax.f32 %v800, 0.0
        %v815 = vmax.f32 %v803, 0.0
        %v816 = vmax.f32 %v808, 0.0
        %v817 = vmax.f32 %v811, 0.0
        %p818 = scmp.gt.s32.totalorder %s31, 0
        %s819 = scalar_select %p818, 1, 0
        %s820 = scvt.s32.f32 %s819
        %p821 = scmp.lt.s32.totalorder %s31, 1
        %s822 = scalar_select %p821, 1, 0
        %s823 = scvt.s32.f32 %s822
        %v824 = vstv %s820
        %v825 = vmul.f32 %v814, %v824
        %v826 = vmul.f32 %v815, %v824
        %vm827 = vcmask 523264
        %828 = vst.msk [vmem:[#allocation2] sm:$0xff] %vm827, %v825
        %829 = vst.msk [vmem:[#allocation2 + $0x8] sm:$0xff] %vm827, %v826
        %830 = vst.msk [vmem:[#allocation2 + $0x10] sm:$0xff] %vm827, %v729
        %831 = vst.msk [vmem:[#allocation2 + $0x18] sm:$0xff] %vm827, %v730
        %832 = vst.msk [vmem:[#allocation2 + $0x20] sm:$0xff] %vm827, %v731
        %833 = vst.msk [vmem:[#allocation2 + $0x28] sm:$0xff] %vm827, %v732
        %834 = vst.msk [vmem:[#allocation2 + $0x30] sm:$0xff] %vm827, %v733
        %835 = vst.msk [vmem:[#allocation2 + $0x38] sm:$0xff] %vm827, %v734
        %836 = vst.msk [vmem:[#allocation2 + $0x40] sm:$0xff] %vm827, %v735
        %837 = vst.msk [vmem:[#allocation2 + $0x48] sm:$0xff] %vm827, %v736
        %838 = vst.msk [vmem:[#allocation2 + $0x50] sm:$0xff] %vm827, %v737
        %839 = vst.msk [vmem:[#allocation2 + $0x58] sm:$0xff] %vm827, %v738
        %840 = vst.msk [vmem:[#allocation2 + $0x60] sm:$0xff] %vm827, %v739
        %841 = vst.msk [vmem:[#allocation2 + $0x68] sm:$0xff] %vm827, %v740
        %842 = vst.msk [vmem:[#allocation2 + $0x70] sm:$0xff] %vm827, %v741
        %843 = vst.msk [vmem:[#allocation2 + $0x78] sm:$0xff] %vm827, %v742
        %844 = vst.msk [vmem:[#allocation2 + $0x80] sm:$0xff] %vm827, %v743
        %845 = vst.msk [vmem:[#allocation2 + $0x88] sm:$0xff] %vm827, %v744
        %v846 = vstv %s823
        %v847 = vmul.f32 %v816, %v846
        %v848 = vmul.f32 %v817, %v846
        %849 = vst.msk [vmem:[#allocation2 + $0x90] sm:$0xff] %vm827, %v847
        %850 = vst.msk [vmem:[#allocation2 + $0x98] sm:$0xff] %vm827, %v848
        %v851 = vld [vmem:[#allocation2] sm:$0xff]
        %v852 = vld [vmem:[#allocation2 + $0x8] sm:$0xff]
        %v853 = vld [vmem:[#allocation2 + $0x10] sm:$0xff]
        %v854 = vld [vmem:[#allocation2 + $0x18] sm:$0xff]
        %v855 = vld [vmem:[#allocation2 + $0x20] sm:$0xff]
        %v856 = vld [vmem:[#allocation2 + $0x28] sm:$0xff]
        %v857 = vld [vmem:[#allocation2 + $0x30] sm:$0xff]
        %v858 = vld [vmem:[#allocation2 + $0x38] sm:$0xff]
        %v859 = vld [vmem:[#allocation2 + $0x40] sm:$0xff]
        %v860 = vld [vmem:[#allocation2 + $0x48] sm:$0xff]
        %v861 = vld [vmem:[#allocation2 + $0x50] sm:$0xff]
        %v862 = vld [vmem:[#allocation2 + $0x58] sm:$0xff]
        %v863 = vld [vmem:[#allocation2 + $0x60] sm:$0xff]
        %v864 = vld [vmem:[#allocation2 + $0x68] sm:$0xff]
        %v865 = vld [vmem:[#allocation2 + $0x70] sm:$0xff]
        %v866 = vld [vmem:[#allocation2 + $0x78] sm:$0xff]
        %v867 = vld [vmem:[#allocation2 + $0x80] sm:$0xff]
        %v868 = vld [vmem:[#allocation2 + $0x88] sm:$0xff]
        %v869 = vld [vmem:[#allocation2 + $0x90] sm:$0xff]
        %v870 = vld [vmem:[#allocation2 + $0x98] sm:$0xff]
        %v871 = vlaneseq
        %v872 = vshrl.u32 %v871, 7
        %v873 = vadd.s32 %v872, 8
        %v874 = vadd.s32 %v872, 16
        %v875 = vadd.s32 %v872, 24
        %v876 = vadd.s32 %v872, 32
        %v877 = vadd.s32 %v872, 40
        %v878 = vadd.s32 %v872, 48
        %v879 = vadd.s32 %v872, 56
        %v880 = vadd.s32 %v872, 64
        %v881 = vadd.s32 %v872, 72
        %v882 = vadd.s32 %v872, 80
        %v883 = vadd.s32 %v872, 88
        %v884 = vadd.s32 %v872, 96
        %v885 = vadd.s32 %v872, 104
        %v886 = vadd.s32 %v872, 112
        %v887 = vadd.s32 %v872, 120
        %v888 = vadd.s32 %v872, 128
        %v889 = vadd.s32 %v872, 136
        %v890 = vadd.s32 %v872, 144
        %v891 = vadd.s32 %v872, 152
        %vm892 = vcmp.lt.s32.totalorder %v872, 0
        %v893 = vsub.s32 0, %v872
        %v894 = vsel %vm892, %v893, %v872
        %v895 = vshrl.u32 %v894, 4
        %v896 = vand.u32 %v894, 15
        %v897 = vsub.s32 0, %v896
        %v898 = vsel %vm892, %v897, %v896
        %vm899 = vcmp.lt.s32.totalorder %v873, 0
        %v900 = vsub.s32 0, %v873
        %v901 = vsel %vm899, %v900, %v873
        %v902 = vshrl.u32 %v901, 4
        %v903 = vand.u32 %v901, 15
        %v904 = vsub.s32 0, %v903
        %v905 = vsel %vm899, %v904, %v903
        %vm906 = vcmp.lt.s32.totalorder %v874, 0
        %v907 = vsub.s32 0, %v874
        %v908 = vsel %vm906, %v907, %v874
        %v909 = vshrl.u32 %v908, 4
        %v910 = vand.u32 %v908, 15
        %v911 = vsub.s32 0, %v910
        %v912 = vsel %vm906, %v911, %v910
        %vm913 = vcmp.lt.s32.totalorder %v875, 0
        %v914 = vsub.s32 0, %v875
        %v915 = vsel %vm913, %v914, %v875
        %v916 = vshrl.u32 %v915, 4
        %v917 = vand.u32 %v915, 15
        %v918 = vsub.s32 0, %v917
        %v919 = vsel %vm913, %v918, %v917
        %vm920 = vcmp.lt.s32.totalorder %v876, 0
        %v921 = vsub.s32 0, %v876
        %v922 = vsel %vm920, %v921, %v876
        %v923 = vshrl.u32 %v922, 4
        %v924 = vand.u32 %v922, 15
        %v925 = vsub.s32 0, %v924
        %v926 = vsel %vm920, %v925, %v924
        %vm927 = vcmp.lt.s32.totalorder %v877, 0
        %v928 = vsub.s32 0, %v877
        %v929 = vsel %vm927, %v928, %v877
        %v930 = vshrl.u32 %v929, 4
        %v931 = vand.u32 %v929, 15
        %v932 = vsub.s32 0, %v931
        %v933 = vsel %vm927, %v932, %v931
        %vm934 = vcmp.lt.s32.totalorder %v878, 0
        %v935 = vsub.s32 0, %v878
        %v936 = vsel %vm934, %v935, %v878
        %v937 = vshrl.u32 %v936, 4
        %v938 = vand.u32 %v936, 15
        %v939 = vsub.s32 0, %v938
        %v940 = vsel %vm934, %v939, %v938
        %vm941 = vcmp.lt.s32.totalorder %v879, 0
        %v942 = vsub.s32 0, %v879
        %v943 = vsel %vm941, %v942, %v879
        %v944 = vshrl.u32 %v943, 4
        %v945 = vand.u32 %v943, 15
        %v946 = vsub.s32 0, %v945
        %v947 = vsel %vm941, %v946, %v945
        %vm948 = vcmp.lt.s32.totalorder %v880, 0
        %v949 = vsub.s32 0, %v880
        %v950 = vsel %vm948, %v949, %v880
        %v951 = vshrl.u32 %v950, 4
        %v952 = vand.u32 %v950, 15
        %v953 = vsub.s32 0, %v952
        %v954 = vsel %vm948, %v953, %v952
        %vm955 = vcmp.lt.s32.totalorder %v881, 0
        %v956 = vsub.s32 0, %v881
        %v957 = vsel %vm955, %v956, %v881
        %v958 = vshrl.u32 %v957, 4
        %v959 = vand.u32 %v957, 15
        %v960 = vsub.s32 0, %v959
        %v961 = vsel %vm955, %v960, %v959
        %vm962 = vcmp.lt.s32.totalorder %v882, 0
        %v963 = vsub.s32 0, %v882
        %v964 = vsel %vm962, %v963, %v882
        %v965 = vshrl.u32 %v964, 4
        %v966 = vand.u32 %v964, 15
        %v967 = vsub.s32 0, %v966
        %v968 = vsel %vm962, %v967, %v966
        %vm969 = vcmp.lt.s32.totalorder %v883, 0
        %v970 = vsub.s32 0, %v883
        %v971 = vsel %vm969, %v970, %v883
        %v972 = vshrl.u32 %v971, 4
        %v973 = vand.u32 %v971, 15
        %v974 = vsub.s32 0, %v973
        %v975 = vsel %vm969, %v974, %v973
        %vm976 = vcmp.lt.s32.totalorder %v884, 0
        %v977 = vsub.s32 0, %v884
        %v978 = vsel %vm976, %v977, %v884
        %v979 = vshrl.u32 %v978, 4
        %v980 = vand.u32 %v978, 15
        %v981 = vsub.s32 0, %v980
        %v982 = vsel %vm976, %v981, %v980
        %vm983 = vcmp.lt.s32.totalorder %v885, 0
        %v984 = vsub.s32 0, %v885
        %v985 = vsel %vm983, %v984, %v885
        %v986 = vshrl.u32 %v985, 4
        %v987 = vand.u32 %v985, 15
        %v988 = vsub.s32 0, %v987
        %v989 = vsel %vm983, %v988, %v987
        %vm990 = vcmp.lt.s32.totalorder %v886, 0
        %v991 = vsub.s32 0, %v886
        %v992 = vsel %vm990, %v991, %v886
        %v993 = vshrl.u32 %v992, 4
        %v994 = vand.u32 %v992, 15
        %v995 = vsub.s32 0, %v994
        %v996 = vsel %vm990, %v995, %v994
        %vm997 = vcmp.lt.s32.totalorder %v887, 0
        %v998 = vsub.s32 0, %v887
        %v999 = vsel %vm997, %v998, %v887
        %v1000 = vshrl.u32 %v999, 4
        %v1001 = vand.u32 %v999, 15
        %v1002 = vsub.s32 0, %v1001
        %v1003 = vsel %vm997, %v1002, %v1001
        %vm1004 = vcmp.lt.s32.totalorder %v888, 0
        %v1005 = vsub.s32 0, %v888
        %v1006 = vsel %vm1004, %v1005, %v888
        %v1007 = vshrl.u32 %v1006, 4
        %v1008 = vand.u32 %v1006, 15
        %v1009 = vsub.s32 0, %v1008
        %v1010 = vsel %vm1004, %v1009, %v1008
        %vm1011 = vcmp.lt.s32.totalorder %v889, 0
        %v1012 = vsub.s32 0, %v889
        %v1013 = vsel %vm1011, %v1012, %v889
        %v1014 = vshrl.u32 %v1013, 4
        %v1015 = vand.u32 %v1013, 15
        %v1016 = vsub.s32 0, %v1015
        %v1017 = vsel %vm1011, %v1016, %v1015
        %vm1018 = vcmp.lt.s32.totalorder %v890, 0
        %v1019 = vsub.s32 0, %v890
        %v1020 = vsel %vm1018, %v1019, %v890
        %v1021 = vshrl.u32 %v1020, 4
        %v1022 = vand.u32 %v1020, 15
        %v1023 = vsub.s32 0, %v1022
        %v1024 = vsel %vm1018, %v1023, %v1022
        %vm1025 = vcmp.lt.s32.totalorder %v891, 0
        %v1026 = vsub.s32 0, %v891
        %v1027 = vsel %vm1025, %v1026, %v891
        %v1028 = vshrl.u32 %v1027, 4
        %v1029 = vand.u32 %v1027, 15
        %v1030 = vsub.s32 0, %v1029
        %v1031 = vsel %vm1025, %v1030, %v1029
        %vm1032 = vcmp.ne.s32.totalorder %v898, 0
        %vm1033 = vcmp.ne.s32.totalorder %v905, 0
        %vm1034 = vcmp.ne.s32.totalorder %v912, 0
        %vm1035 = vcmp.ne.s32.totalorder %v919, 0
        %vm1036 = vcmp.ne.s32.totalorder %v926, 0
        %vm1037 = vcmp.ne.s32.totalorder %v933, 0
        %vm1038 = vcmp.ne.s32.totalorder %v940, 0
        %vm1039 = vcmp.ne.s32.totalorder %v947, 0
        %vm1040 = vcmp.ne.s32.totalorder %v954, 0
        %vm1041 = vcmp.ne.s32.totalorder %v961, 0
        %vm1042 = vcmp.ne.s32.totalorder %v968, 0
        %vm1043 = vcmp.ne.s32.totalorder %v975, 0
        %vm1044 = vcmp.ne.s32.totalorder %v982, 0
        %vm1045 = vcmp.ne.s32.totalorder %v989, 0
        %vm1046 = vcmp.ne.s32.totalorder %v996, 0
        %vm1047 = vcmp.ne.s32.totalorder %v1003, 0
        %vm1048 = vcmp.ne.s32.totalorder %v1010, 0
        %vm1049 = vcmp.ne.s32.totalorder %v1017, 0
        %vm1050 = vcmp.ne.s32.totalorder %v1024, 0
        %vm1051 = vcmp.ne.s32.totalorder %v1031, 0
        %vm1052 = vcmp.lt.s32.totalorder %v898, 0
        %vm1053 = vcmp.lt.s32.totalorder %v905, 0
        %vm1054 = vcmp.lt.s32.totalorder %v912, 0
        %vm1055 = vcmp.lt.s32.totalorder %v919, 0
        %vm1056 = vcmp.lt.s32.totalorder %v926, 0
        %vm1057 = vcmp.lt.s32.totalorder %v933, 0
        %vm1058 = vcmp.lt.s32.totalorder %v940, 0
        %vm1059 = vcmp.lt.s32.totalorder %v947, 0
        %vm1060 = vcmp.lt.s32.totalorder %v954, 0
        %vm1061 = vcmp.lt.s32.totalorder %v961, 0
        %vm1062 = vcmp.lt.s32.totalorder %v968, 0
        %vm1063 = vcmp.lt.s32.totalorder %v975, 0
        %vm1064 = vcmp.lt.s32.totalorder %v982, 0
        %vm1065 = vcmp.lt.s32.totalorder %v989, 0
        %vm1066 = vcmp.lt.s32.totalorder %v996, 0
        %vm1067 = vcmp.lt.s32.totalorder %v1003, 0
        %vm1068 = vcmp.lt.s32.totalorder %v1010, 0
        %vm1069 = vcmp.lt.s32.totalorder %v1017, 0
        %vm1070 = vcmp.lt.s32.totalorder %v1024, 0
        %vm1071 = vcmp.lt.s32.totalorder %v1031, 0
        %vm1072 = vmand %vm1052, %vm1032
        %vm1073 = vmand %vm1053, %vm1033
        %vm1074 = vmand %vm1054, %vm1034
        %vm1075 = vmand %vm1055, %vm1035
        %vm1076 = vmand %vm1056, %vm1036
        %vm1077 = vmand %vm1057, %vm1037
        %vm1078 = vmand %vm1058, %vm1038
        %vm1079 = vmand %vm1059, %vm1039
        %vm1080 = vmand %vm1060, %vm1040
        %vm1081 = vmand %vm1061, %vm1041
        %vm1082 = vmand %vm1062, %vm1042
        %vm1083 = vmand %vm1063, %vm1043
        %vm1084 = vmand %vm1064, %vm1044
        %vm1085 = vmand %vm1065, %vm1045
        %vm1086 = vmand %vm1066, %vm1046
        %vm1087 = vmand %vm1067, %vm1047
        %vm1088 = vmand %vm1068, %vm1048
        %vm1089 = vmand %vm1069, %vm1049
        %vm1090 = vmand %vm1070, %vm1050
        %vm1091 = vmand %vm1071, %vm1051
        %v1092 = vadd.s32 %v898, 16
        %v1093 = vadd.s32 %v905, 16
        %v1094 = vadd.s32 %v912, 16
        %v1095 = vadd.s32 %v919, 16
        %v1096 = vadd.s32 %v926, 16
        %v1097 = vadd.s32 %v933, 16
        %v1098 = vadd.s32 %v940, 16
        %v1099 = vadd.s32 %v947, 16
        %v1100 = vadd.s32 %v954, 16
        %v1101 = vadd.s32 %v961, 16
        %v1102 = vadd.s32 %v968, 16
        %v1103 = vadd.s32 %v975, 16
        %v1104 = vadd.s32 %v982, 16
        %v1105 = vadd.s32 %v989, 16
        %v1106 = vadd.s32 %v996, 16
        %v1107 = vadd.s32 %v1003, 16
        %v1108 = vadd.s32 %v1010, 16
        %v1109 = vadd.s32 %v1017, 16
        %v1110 = vadd.s32 %v1024, 16
        %v1111 = vadd.s32 %v1031, 16
        %v1112 = vsel %vm1072, %v1092, %v898
        %v1113 = vsel %vm1073, %v1093, %v905
        %v1114 = vsel %vm1074, %v1094, %v912
        %v1115 = vsel %vm1075, %v1095, %v919
        %v1116 = vsel %vm1076, %v1096, %v926
        %v1117 = vsel %vm1077, %v1097, %v933
        %v1118 = vsel %vm1078, %v1098, %v940
        %v1119 = vsel %vm1079, %v1099, %v947
        %v1120 = vsel %vm1080, %v1100, %v954
        %v1121 = vsel %vm1081, %v1101, %v961
        %v1122 = vsel %vm1082, %v1102, %v968
        %v1123 = vsel %vm1083, %v1103, %v975
        %v1124 = vsel %vm1084, %v1104, %v982
        %v1125 = vsel %vm1085, %v1105, %v989
        %v1126 = vsel %vm1086, %v1106, %v996
        %v1127 = vsel %vm1087, %v1107, %v1003
        %v1128 = vsel %vm1088, %v1108, %v1010
        %v1129 = vsel %vm1089, %v1109, %v1017
        %v1130 = vsel %vm1090, %v1110, %v1024
        %v1131 = vsel %vm1091, %v1111, %v1031
        %v1132 = vpack.c.bf16 %v852, %v851
        %v1133 = vpack.c.bf16 %v854, %v853
        %v1134 = vpack.c.bf16 %v856, %v855
        %v1135 = vpack.c.bf16 %v858, %v857
        %v1136 = vpack.c.bf16 %v860, %v859
        %v1137 = vpack.c.bf16 %v862, %v861
        %v1138 = vpack.c.bf16 %v864, %v863
        %v1139 = vpack.c.bf16 %v866, %v865
        %v1140 = vpack.c.bf16 %v868, %v867
        %v1141 = vpack.c.bf16 %v870, %v869
        %vm1142 = vcmp.ge.s32.totalorder %v1112, 1
        %vm1143 = vcmp.ge.s32.totalorder %v1113, 1
        %vm1144 = vcmp.ge.s32.totalorder %v1114, 1
        %vm1145 = vcmp.ge.s32.totalorder %v1115, 1
        %vm1146 = vcmp.ge.s32.totalorder %v1116, 1
        %vm1147 = vcmp.ge.s32.totalorder %v1117, 1
        %vm1148 = vcmp.ge.s32.totalorder %v1118, 1
        %vm1149 = vcmp.ge.s32.totalorder %v1119, 1
        %vm1150 = vcmp.ge.s32.totalorder %v1120, 1
        %vm1151 = vcmp.ge.s32.totalorder %v1121, 1
        %vm1152 = vcmp.ge.s32.totalorder %v1122, 1
        %vm1153 = vcmp.ge.s32.totalorder %v1123, 1
        %vm1154 = vcmp.ge.s32.totalorder %v1124, 1
        %vm1155 = vcmp.ge.s32.totalorder %v1125, 1
        %vm1156 = vcmp.ge.s32.totalorder %v1126, 1
        %vm1157 = vcmp.ge.s32.totalorder %v1127, 1
        %vm1158 = vcmp.ge.s32.totalorder %v1128, 1
        %vm1159 = vcmp.ge.s32.totalorder %v1129, 1
        %vm1160 = vcmp.ge.s32.totalorder %v1130, 1
        %vm1161 = vcmp.ge.s32.totalorder %v1131, 1
        %v1162 = vrot.slane %v851, 7
        %v1163 = vrot.slane %v852, 7
        %v1164 = vrot.slane %v853, 7
        %v1165 = vrot.slane %v854, 7
        %v1166 = vrot.slane %v855, 7
        %v1167 = vrot.slane %v856, 7
        %v1168 = vrot.slane %v857, 7
        %v1169 = vrot.slane %v858, 7
        %v1170 = vrot.slane %v859, 7
        %v1171 = vrot.slane %v860, 7
        %v1172 = vrot.slane %v861, 7
        %v1173 = vrot.slane %v862, 7
        %v1174 = vrot.slane %v863, 7
        %v1175 = vrot.slane %v864, 7
        %v1176 = vrot.slane %v865, 7
        %v1177 = vrot.slane %v866, 7
        %v1178 = vrot.slane %v867, 7
        %v1179 = vrot.slane %v868, 7
        %v1180 = vrot.slane %v869, 7
        %v1181 = vrot.slane %v870, 7
        %vm1182 = vcmp.lt.s32.totalorder %v872, 1
        %v1183 = vsel %vm1182, %v1180, %v1181
        %v1184 = vsel %vm1182, %v1179, %v1180
        %v1185 = vsel %vm1182, %v1178, %v1179
        %v1186 = vsel %vm1182, %v1177, %v1178
        %v1187 = vsel %vm1182, %v1176, %v1177
        %v1188 = vsel %vm1182, %v1175, %v1176
        %v1189 = vsel %vm1182, %v1174, %v1175
        %v1190 = vsel %vm1182, %v1173, %v1174
        %v1191 = vsel %vm1182, %v1172, %v1173
        %v1192 = vsel %vm1182, %v1171, %v1172
        %v1193 = vsel %vm1182, %v1170, %v1171
        %v1194 = vsel %vm1182, %v1169, %v1170
        %v1195 = vsel %vm1182, %v1168, %v1169
        %v1196 = vsel %vm1182, %v1167, %v1168
        %v1197 = vsel %vm1182, %v1166, %v1167
        %v1198 = vsel %vm1182, %v1165, %v1166
        %v1199 = vsel %vm1182, %v1164, %v1165
        %v1200 = vsel %vm1182, %v1163, %v1164
        %v1201 = vsel %vm1182, %v1162, %v1163
        %v1202 = vsel %vm1182, %v1181, %v1162
        %v1203 = vpack.c.bf16 %v1201, %v1202
        %v1204 = vpack.c.bf16 %v1199, %v1200
        %v1205 = vpack.c.bf16 %v1197, %v1198
        %v1206 = vpack.c.bf16 %v1195, %v1196
        %v1207 = vpack.c.bf16 %v1193, %v1194
        %v1208 = vpack.c.bf16 %v1191, %v1192
        %v1209 = vpack.c.bf16 %v1189, %v1190
        %v1210 = vpack.c.bf16 %v1187, %v1188
        %v1211 = vpack.c.bf16 %v1185, %v1186
        %v1212 = vpack.c.bf16 %v1183, %v1184
        %v1213 = vsel %vm1142, 1, 0
        %v1214 = vsel %vm1143, 1, 0
        %v1215 = vsel %vm1144, 1, 0
        %v1216 = vsel %vm1145, 1, 0
        %v1217 = vsel %vm1146, 1, 0
        %v1218 = vsel %vm1147, 1, 0
        %v1219 = vsel %vm1148, 1, 0
        %v1220 = vsel %vm1149, 1, 0
        %v1221 = vsel %vm1150, 1, 0
        %v1222 = vsel %vm1151, 1, 0
        %v1223 = vsel %vm1152, 1, 0
        %v1224 = vsel %vm1153, 1, 0
        %v1225 = vsel %vm1154, 1, 0
        %v1226 = vsel %vm1155, 1, 0
        %v1227 = vsel %vm1156, 1, 0
        %v1228 = vsel %vm1157, 1, 0
        %v1229 = vsel %vm1158, 1, 0
        %v1230 = vsel %vm1159, 1, 0
        %v1231 = vsel %vm1160, 1, 0
        %v1232 = vsel %vm1161, 1, 0
        %vm1233 = vcmp.eq.s32.totalorder %v1213, 1
        %vm1234 = vcmp.eq.s32.totalorder %v1214, 1
        %vm1235 = vcmp.eq.s32.totalorder %v1215, 1
        %vm1236 = vcmp.eq.s32.totalorder %v1216, 1
        %vm1237 = vcmp.eq.s32.totalorder %v1217, 1
        %vm1238 = vcmp.eq.s32.totalorder %v1218, 1
        %vm1239 = vcmp.eq.s32.totalorder %v1219, 1
        %vm1240 = vcmp.eq.s32.totalorder %v1220, 1
        %vm1241 = vcmp.eq.s32.totalorder %v1221, 1
        %vm1242 = vcmp.eq.s32.totalorder %v1222, 1
        %vm1243 = vcmp.eq.s32.totalorder %v1223, 1
        %vm1244 = vcmp.eq.s32.totalorder %v1224, 1
        %vm1245 = vcmp.eq.s32.totalorder %v1225, 1
        %vm1246 = vcmp.eq.s32.totalorder %v1226, 1
        %vm1247 = vcmp.eq.s32.totalorder %v1227, 1
        %vm1248 = vcmp.eq.s32.totalorder %v1228, 1
        %vm1249 = vcmp.eq.s32.totalorder %v1229, 1
        %vm1250 = vcmp.eq.s32.totalorder %v1230, 1
        %vm1251 = vcmp.eq.s32.totalorder %v1231, 1
        %vm1252 = vcmp.eq.s32.totalorder %v1232, 1
        %vm1253 = vmpackc.low %vm1233, %vm1233
        %vm1254 = vmpackc.low %vm1234, %vm1234
        %vm1255 = vmpackc.low %vm1235, %vm1235
        %vm1256 = vmpackc.low %vm1236, %vm1236
        %vm1257 = vmpackc.low %vm1237, %vm1237
        %vm1258 = vmpackc.low %vm1238, %vm1238
        %vm1259 = vmpackc.low %vm1239, %vm1239
        %vm1260 = vmpackc.low %vm1240, %vm1240
        %vm1261 = vmpackc.low %vm1241, %vm1241
        %vm1262 = vmpackc.low %vm1242, %vm1242
        %vm1263 = vmpackc.low %vm1243, %vm1243
        %vm1264 = vmpackc.low %vm1244, %vm1244
        %vm1265 = vmpackc.low %vm1245, %vm1245
        %vm1266 = vmpackc.low %vm1246, %vm1246
        %vm1267 = vmpackc.low %vm1247, %vm1247
        %vm1268 = vmpackc.low %vm1248, %vm1248
        %vm1269 = vmpackc.low %vm1249, %vm1249
        %vm1270 = vmpackc.low %vm1250, %vm1250
        %vm1271 = vmpackc.low %vm1251, %vm1251
        %vm1272 = vmpackc.low %vm1252, %vm1252
        %v1273 = vsel %vm1253, 65537, 0
        %v1274 = vsel %vm1254, 65537, 0
        %v1275 = vsel %vm1255, 65537, 0
        %v1276 = vsel %vm1256, 65537, 0
        %v1277 = vsel %vm1257, 65537, 0
        %v1278 = vsel %vm1258, 65537, 0
        %v1279 = vsel %vm1259, 65537, 0
        %v1280 = vsel %vm1260, 65537, 0
        %v1281 = vsel %vm1261, 65537, 0
        %v1282 = vsel %vm1262, 65537, 0
        %v1283 = vsel %vm1263, 65537, 0
        %v1284 = vsel %vm1264, 65537, 0
        %v1285 = vsel %vm1265, 65537, 0
        %v1286 = vsel %vm1266, 65537, 0
        %v1287 = vsel %vm1267, 65537, 0
        %v1288 = vsel %vm1268, 65537, 0
        %v1289 = vsel %vm1269, 65537, 0
        %v1290 = vsel %vm1270, 65537, 0
        %v1291 = vsel %vm1271, 65537, 0
        %v1292 = vsel %vm1272, 65537, 0
        %v1293 = vunpack.c.l.b16 %v1273
        %v1294 = vunpack.c.l.b16 %v1274
        %v1295 = vunpack.c.l.b16 %v1275
        %v1296 = vunpack.c.l.b16 %v1276
        %v1297 = vunpack.c.l.b16 %v1277
        %v1298 = vunpack.c.l.b16 %v1278
        %v1299 = vunpack.c.l.b16 %v1279
        %v1300 = vunpack.c.l.b16 %v1280
        %v1301 = vunpack.c.l.b16 %v1281
        %v1302 = vunpack.c.l.b16 %v1282
        %v1303 = vunpack.c.l.b16 %v1283
        %v1304 = vunpack.c.l.b16 %v1284
        %v1305 = vunpack.c.l.b16 %v1285
        %v1306 = vunpack.c.l.b16 %v1286
        %v1307 = vunpack.c.l.b16 %v1287
        %v1308 = vunpack.c.l.b16 %v1288
        %v1309 = vunpack.c.l.b16 %v1289
        %v1310 = vunpack.c.l.b16 %v1290
        %v1311 = vunpack.c.l.b16 %v1291
        %v1312 = vunpack.c.l.b16 %v1292
        %v1313 = vpack.c.b16 %v1294, %v1293
        %v1314 = vpack.c.b16 %v1296, %v1295
        %v1315 = vpack.c.b16 %v1298, %v1297
        %v1316 = vpack.c.b16 %v1300, %v1299
        %v1317 = vpack.c.b16 %v1302, %v1301
        %v1318 = vpack.c.b16 %v1304, %v1303
        %v1319 = vpack.c.b16 %v1306, %v1305
        %v1320 = vpack.c.b16 %v1308, %v1307
        %v1321 = vpack.c.b16 %v1310, %v1309
        %v1322 = vpack.c.b16 %v1312, %v1311
        %vm1323 = vcmp.ne.s16.totalorder %v1313, 0
        %vm1324 = vcmp.ne.s16.totalorder %v1314, 0
        %vm1325 = vcmp.ne.s16.totalorder %v1315, 0
        %vm1326 = vcmp.ne.s16.totalorder %v1316, 0
        %vm1327 = vcmp.ne.s16.totalorder %v1317, 0
        %vm1328 = vcmp.ne.s16.totalorder %v1318, 0
        %vm1329 = vcmp.ne.s16.totalorder %v1319, 0
        %vm1330 = vcmp.ne.s16.totalorder %v1320, 0
        %vm1331 = vcmp.ne.s16.totalorder %v1321, 0
        %vm1332 = vcmp.ne.s16.totalorder %v1322, 0
        %v1333 = vsel %vm1323, %v1203, 0
        %v1334 = vsel %vm1324, %v1204, 0
        %v1335 = vsel %vm1325, %v1205, 0
        %v1336 = vsel %vm1326, %v1206, 0
        %v1337 = vsel %vm1327, %v1207, 0
        %v1338 = vsel %vm1328, %v1208, 0
        %v1339 = vsel %vm1329, %v1209, 0
        %v1340 = vsel %vm1330, %v1210, 0
        %v1341 = vsel %vm1331, %v1211, 0
        %v1342 = vsel %vm1332, %v1212, 0
        %vm1343 = vcmp.lt.s32.totalorder %v1112, 15
        %vm1344 = vcmp.lt.s32.totalorder %v1113, 15
        %vm1345 = vcmp.lt.s32.totalorder %v1114, 15
        %vm1346 = vcmp.lt.s32.totalorder %v1115, 15
        %vm1347 = vcmp.lt.s32.totalorder %v1116, 15
        %vm1348 = vcmp.lt.s32.totalorder %v1117, 15
        %vm1349 = vcmp.lt.s32.totalorder %v1118, 15
        %vm1350 = vcmp.lt.s32.totalorder %v1119, 15
        %vm1351 = vcmp.lt.s32.totalorder %v1120, 15
        %vm1352 = vcmp.lt.s32.totalorder %v1121, 15
        %vm1353 = vcmp.lt.s32.totalorder %v1122, 15
        %vm1354 = vcmp.lt.s32.totalorder %v1123, 15
        %vm1355 = vcmp.lt.s32.totalorder %v1124, 15
        %vm1356 = vcmp.lt.s32.totalorder %v1125, 15
        %vm1357 = vcmp.lt.s32.totalorder %v1126, 15
        %vm1358 = vcmp.lt.s32.totalorder %v1127, 15
        %vm1359 = vcmp.lt.s32.totalorder %v1128, 15
        %vm1360 = vcmp.lt.s32.totalorder %v1129, 15
        %vm1361 = vcmp.lt.s32.totalorder %v1130, 15
        %vm1362 = vcmp.lt.s32.totalorder %v1131, 15
        %v1363 = vrot.slane %v851, 1
        %v1364 = vrot.slane %v852, 1
        %v1365 = vrot.slane %v853, 1
        %v1366 = vrot.slane %v854, 1
        %v1367 = vrot.slane %v855, 1
        %v1368 = vrot.slane %v856, 1
        %v1369 = vrot.slane %v857, 1
        %v1370 = vrot.slane %v858, 1
        %v1371 = vrot.slane %v859, 1
        %v1372 = vrot.slane %v860, 1
        %v1373 = vrot.slane %v861, 1
        %v1374 = vrot.slane %v862, 1
        %v1375 = vrot.slane %v863, 1
        %v1376 = vrot.slane %v864, 1
        %v1377 = vrot.slane %v865, 1
        %v1378 = vrot.slane %v866, 1
        %v1379 = vrot.slane %v867, 1
        %v1380 = vrot.slane %v868, 1
        %v1381 = vrot.slane %v869, 1
        %v1382 = vrot.slane %v870, 1
        %vm1383 = vcmp.lt.s32.totalorder %v872, 7
        %v1384 = vsel %vm1383, %v1381, %v1382
        %v1385 = vsel %vm1383, %v1380, %v1381
        %v1386 = vsel %vm1383, %v1379, %v1380
        %v1387 = vsel %vm1383, %v1378, %v1379
        %v1388 = vsel %vm1383, %v1377, %v1378
        %v1389 = vsel %vm1383, %v1376, %v1377
        %v1390 = vsel %vm1383, %v1375, %v1376
        %v1391 = vsel %vm1383, %v1374, %v1375
        %v1392 = vsel %vm1383, %v1373, %v1374
        %v1393 = vsel %vm1383, %v1372, %v1373
        %v1394 = vsel %vm1383, %v1371, %v1372
        %v1395 = vsel %vm1383, %v1370, %v1371
        %v1396 = vsel %vm1383, %v1369, %v1370
        %v1397 = vsel %vm1383, %v1368, %v1369
        %v1398 = vsel %vm1383, %v1367, %v1368
        %v1399 = vsel %vm1383, %v1366, %v1367
        %v1400 = vsel %vm1383, %v1365, %v1366
        %v1401 = vsel %vm1383, %v1364, %v1365
        %v1402 = vsel %vm1383, %v1363, %v1364
        %v1403 = vsel %vm1383, %v1382, %v1363
        %v1404 = vpack.c.bf16 %v1401, %v1402
        %v1405 = vpack.c.bf16 %v1399, %v1400
        %v1406 = vpack.c.bf16 %v1397, %v1398
        %v1407 = vpack.c.bf16 %v1395, %v1396
        %v1408 = vpack.c.bf16 %v1393, %v1394
        %v1409 = vpack.c.bf16 %v1391, %v1392
        %v1410 = vpack.c.bf16 %v1389, %v1390
        %v1411 = vpack.c.bf16 %v1387, %v1388
        %v1412 = vpack.c.bf16 %v1385, %v1386
        %v1413 = vpack.c.bf16 %v1403, %v1384
        %v1414 = vsel %vm1343, 1, 0
        %v1415 = vsel %vm1344, 1, 0
        %v1416 = vsel %vm1345, 1, 0
        %v1417 = vsel %vm1346, 1, 0
        %v1418 = vsel %vm1347, 1, 0
        %v1419 = vsel %vm1348, 1, 0
        %v1420 = vsel %vm1349, 1, 0
        %v1421 = vsel %vm1350, 1, 0
        %v1422 = vsel %vm1351, 1, 0
        %v1423 = vsel %vm1352, 1, 0
        %v1424 = vsel %vm1353, 1, 0
        %v1425 = vsel %vm1354, 1, 0
        %v1426 = vsel %vm1355, 1, 0
        %v1427 = vsel %vm1356, 1, 0
        %v1428 = vsel %vm1357, 1, 0
        %v1429 = vsel %vm1358, 1, 0
        %v1430 = vsel %vm1359, 1, 0
        %v1431 = vsel %vm1360, 1, 0
        %v1432 = vsel %vm1361, 1, 0
        %v1433 = vsel %vm1362, 1, 0
        %vm1434 = vcmp.eq.s32.totalorder %v1414, 1
        %vm1435 = vcmp.eq.s32.totalorder %v1415, 1
        %vm1436 = vcmp.eq.s32.totalorder %v1416, 1
        %vm1437 = vcmp.eq.s32.totalorder %v1417, 1
        %vm1438 = vcmp.eq.s32.totalorder %v1418, 1
        %vm1439 = vcmp.eq.s32.totalorder %v1419, 1
        %vm1440 = vcmp.eq.s32.totalorder %v1420, 1
        %vm1441 = vcmp.eq.s32.totalorder %v1421, 1
        %vm1442 = vcmp.eq.s32.totalorder %v1422, 1
        %vm1443 = vcmp.eq.s32.totalorder %v1423, 1
        %vm1444 = vcmp.eq.s32.totalorder %v1424, 1
        %vm1445 = vcmp.eq.s32.totalorder %v1425, 1
        %vm1446 = vcmp.eq.s32.totalorder %v1426, 1
        %vm1447 = vcmp.eq.s32.totalorder %v1427, 1
        %vm1448 = vcmp.eq.s32.totalorder %v1428, 1
        %vm1449 = vcmp.eq.s32.totalorder %v1429, 1
        %vm1450 = vcmp.eq.s32.totalorder %v1430, 1
        %vm1451 = vcmp.eq.s32.totalorder %v1431, 1
        %vm1452 = vcmp.eq.s32.totalorder %v1432, 1
        %vm1453 = vcmp.eq.s32.totalorder %v1433, 1
        %vm1454 = vmpackc.low %vm1434, %vm1434
        %vm1455 = vmpackc.low %vm1435, %vm1435
        %vm1456 = vmpackc.low %vm1436, %vm1436
        %vm1457 = vmpackc.low %vm1437, %vm1437
        %vm1458 = vmpackc.low %vm1438, %vm1438
        %vm1459 = vmpackc.low %vm1439, %vm1439
        %vm1460 = vmpackc.low %vm1440, %vm1440
        %vm1461 = vmpackc.low %vm1441, %vm1441
        %vm1462 = vmpackc.low %vm1442, %vm1442
        %vm1463 = vmpackc.low %vm1443, %vm1443
        %vm1464 = vmpackc.low %vm1444, %vm1444
        %vm1465 = vmpackc.low %vm1445, %vm1445
        %vm1466 = vmpackc.low %vm1446, %vm1446
        %vm1467 = vmpackc.low %vm1447, %vm1447
        %vm1468 = vmpackc.low %vm1448, %vm1448
        %vm1469 = vmpackc.low %vm1449, %vm1449
        %vm1470 = vmpackc.low %vm1450, %vm1450
        %vm1471 = vmpackc.low %vm1451, %vm1451
        %vm1472 = vmpackc.low %vm1452, %vm1452
        %vm1473 = vmpackc.low %vm1453, %vm1453
        %v1474 = vsel %vm1454, 65537, 0
        %v1475 = vsel %vm1455, 65537, 0
        %v1476 = vsel %vm1456, 65537, 0
        %v1477 = vsel %vm1457, 65537, 0
        %v1478 = vsel %vm1458, 65537, 0
        %v1479 = vsel %vm1459, 65537, 0
        %v1480 = vsel %vm1460, 65537, 0
        %v1481 = vsel %vm1461, 65537, 0
        %v1482 = vsel %vm1462, 65537, 0
        %v1483 = vsel %vm1463, 65537, 0
        %v1484 = vsel %vm1464, 65537, 0
        %v1485 = vsel %vm1465, 65537, 0
        %v1486 = vsel %vm1466, 65537, 0
        %v1487 = vsel %vm1467, 65537, 0
        %v1488 = vsel %vm1468, 65537, 0
        %v1489 = vsel %vm1469, 65537, 0
        %v1490 = vsel %vm1470, 65537, 0
        %v1491 = vsel %vm1471, 65537, 0
        %v1492 = vsel %vm1472, 65537, 0
        %v1493 = vsel %vm1473, 65537, 0
        %v1494 = vunpack.c.l.b16 %v1474
        %v1495 = vunpack.c.l.b16 %v1475
        %v1496 = vunpack.c.l.b16 %v1476
        %v1497 = vunpack.c.l.b16 %v1477
        %v1498 = vunpack.c.l.b16 %v1478
        %v1499 = vunpack.c.l.b16 %v1479
        %v1500 = vunpack.c.l.b16 %v1480
        %v1501 = vunpack.c.l.b16 %v1481
        %v1502 = vunpack.c.l.b16 %v1482
        %v1503 = vunpack.c.l.b16 %v1483
        %v1504 = vunpack.c.l.b16 %v1484
        %v1505 = vunpack.c.l.b16 %v1485
        %v1506 = vunpack.c.l.b16 %v1486
        %v1507 = vunpack.c.l.b16 %v1487
        %v1508 = vunpack.c.l.b16 %v1488
        %v1509 = vunpack.c.l.b16 %v1489
        %v1510 = vunpack.c.l.b16 %v1490
        %v1511 = vunpack.c.l.b16 %v1491
        %v1512 = vunpack.c.l.b16 %v1492
        %v1513 = vunpack.c.l.b16 %v1493
        %v1514 = vpack.c.b16 %v1495, %v1494
        %v1515 = vpack.c.b16 %v1497, %v1496
        %v1516 = vpack.c.b16 %v1499, %v1498
        %v1517 = vpack.c.b16 %v1501, %v1500
        %v1518 = vpack.c.b16 %v1503, %v1502
        %v1519 = vpack.c.b16 %v1505, %v1504
        %v1520 = vpack.c.b16 %v1507, %v1506
        %v1521 = vpack.c.b16 %v1509, %v1508
        %v1522 = vpack.c.b16 %v1511, %v1510
        %v1523 = vpack.c.b16 %v1513, %v1512
        %vm1524 = vcmp.ne.s16.totalorder %v1514, 0
        %vm1525 = vcmp.ne.s16.totalorder %v1515, 0
        %vm1526 = vcmp.ne.s16.totalorder %v1516, 0
        %vm1527 = vcmp.ne.s16.totalorder %v1517, 0
        %vm1528 = vcmp.ne.s16.totalorder %v1518, 0
        %vm1529 = vcmp.ne.s16.totalorder %v1519, 0
        %vm1530 = vcmp.ne.s16.totalorder %v1520, 0
        %vm1531 = vcmp.ne.s16.totalorder %v1521, 0
        %vm1532 = vcmp.ne.s16.totalorder %v1522, 0
        %vm1533 = vcmp.ne.s16.totalorder %v1523, 0
        %v1534 = vsel %vm1524, %v1404, 0
        %v1535 = vsel %vm1525, %v1405, 0
        %v1536 = vsel %vm1526, %v1406, 0
        %v1537 = vsel %vm1527, %v1407, 0
        %v1538 = vsel %vm1528, %v1408, 0
        %v1539 = vsel %vm1529, %v1409, 0
        %v1540 = vsel %vm1530, %v1410, 0
        %v1541 = vsel %vm1531, %v1411, 0
        %v1542 = vsel %vm1532, %v1412, 0
        %v1543 = vsel %vm1533, %v1413, 0
        %v1544 = vld [vmem:[#allocation6] sm:$0xf]
        %v1545 = vld [vmem:[#allocation6 + $0x4] sm:$0xf]
        %v1546 = vld [vmem:[#allocation6 + $0x8] sm:$0xf]
        %v1547 = vld [vmem:[#allocation6 + $0xc] sm:$0xf]
        %v1548 = vld [vmem:[#allocation6 + $0x10] sm:$0xf]
        %v1549 = vld [vmem:[#allocation6 + $0x14] sm:$0xf]
        %v1550 = vld [vmem:[#allocation6 + $0x18] sm:$0xf]
        %v1551 = vld [vmem:[#allocation6 + $0x1c] sm:$0xf]
        %s1552 = scalar_lea.vmem [#allocation6], 32
        %v1553 = vld [vmem:[%s1552] sm:$0xf]
        %v1554 = vld [vmem:[%s1552 + $0x4] sm:$0xf]
        %v1555 = vld [vmem:[%s1552 + $0x8] sm:$0xf]
        %v1556 = vld [vmem:[%s1552 + $0xc] sm:$0xf]
        %v1557 = vld [vmem:[%s1552 + $0x10] sm:$0xf]
        %v1558 = vld [vmem:[%s1552 + $0x14] sm:$0xf]
        %v1559 = vld [vmem:[%s1552 + $0x18] sm:$0xf]
        %v1560 = vld [vmem:[%s1552 + $0x1c] sm:$0xf]
        %v1569 = vunpack.c.l.b16 %v1553
        %v1570 = vunpack.c.l.b16 %v1554
        %v1571 = vunpack.c.l.b16 %v1555
        %v1572 = vunpack.c.l.b16 %v1556
        %v1573 = vunpack.c.l.b16 %v1557
        %v1574 = vunpack.c.l.b16 %v1558
        %v1575 = vunpack.c.l.b16 %v1559
        %v1576 = vunpack.c.l.b16 %v1560
        %v1577 = vpack.c.b16 %v1570, %v1569
        %v1578 = vpack.c.b16 %v1572, %v1571
        %v1579 = vpack.c.b16 %v1574, %v1573
        %v1580 = vpack.c.b16 %v1576, %v1575
        %v1586 = vsel %vm827, %v1132, 0
        %v1589 = vsel %vm827, %v1133, 0
        %v1592 = vsel %vm827, %v1134, 0
        %v1595 = vsel %vm827, %v1135, 0
        %v1598 = vsel %vm827, %v1136, 0
        %v1601 = vsel %vm827, %v1137, 0
        %v1604 = vsel %vm827, %v1138, 0
        %v1607 = vsel %vm827, %v1139, 0
        %1609 = vmatprep.subr.bf16.mxu0 0
        %1610 = vmatpush1.bf16.msra.mxu0 0
        %1611 = vmatprep.subr.bf16.mxu0 0
        %1612 = vmatpush1.bf16.msra.mxu0 0
        %1613 = vmatprep.subr.bf16.mxu0 0
        %1614 = vmatpush1.bf16.msra.mxu0 0
        %1615 = vmatprep.subr.bf16.mxu0 0
        %1616 = vmatpush1.bf16.msra.mxu0 0
        %1617 = vmatprep.subr.bf16.mxu0 0
        %1618 = vmatpush1.bf16.msra.mxu0 %v1580
        %1619 = vmatprep.subr.bf16.mxu0 0
        %1620 = vmatpush1.bf16.msra.mxu0 %v1579
        %1621 = vmatprep.subr.bf16.mxu0 0
        %1622 = vmatpush1.bf16.msra.mxu0 %v1578
        %1623 = vmatprep.subr.bf16.mxu0 0
        %1624 = vmatpush1.bf16.msra.mxu0 %v1577
        %1625 = vmatprep.subr.bf16.mxu0 0
        %1626 = vmatpush2.bf16.msra.mxu0 0
        %1627 = vmatprep.subr.bf16.mxu0 0
        %1628 = vmatpush2.bf16.msra.mxu0 0
        %1629 = vmatprep.subr.bf16.mxu0 0
        %1630 = vmatpush2.bf16.msra.mxu0 0
        %1631 = vmatprep.subr.bf16.mxu0 0
        %1632 = vmatpush2.bf16.msra.mxu0 0
        %1633 = vmatprep.subr.bf16.mxu0 0
        %1634 = vmatpush2.bf16.msra.mxu0 0
        %1635 = vmatprep.subr.bf16.mxu0 0
        %1636 = vmatpush2.bf16.msra.mxu0 0
        %1637 = vmatprep.subr.bf16.mxu0 0
        %1638 = vmatpush2.bf16.msra.mxu0 0
        %1639 = vmatprep.subr.bf16.mxu0 0
        %1640 = vmatpush2.bf16.msra.mxu0 0
        %1641 = vmatprep.mubr.bf16.mxu0 0
        %1642 = vmatmul.mubr.bf16.gmra.mxu0 %v1586
        %v1643 = vpop.f32.mrf.mxu0
        %v1644 = vadd.f32 0.0, %v1643
        %v1645 = vpop.f32.mrf.mxu0
        %v1646 = vpop.f32.mrf.mxu0
        %v1647 = vadd.f32 0.0, %v1646
        %v1648 = vpop.f32.mrf.mxu0
        %1649 = vmatprep.mubr.bf16.mxu0 0
        %1650 = vmatmul.mubr.bf16.gmra.mxu0 %v1589
        %v1651 = vpop.f32.mrf.mxu0
        %v1652 = vadd.f32 0.0, %v1651
        %v1653 = vpop.f32.mrf.mxu0
        %v1654 = vpop.f32.mrf.mxu0
        %v1655 = vadd.f32 0.0, %v1654
        %v1656 = vpop.f32.mrf.mxu0
        %1657 = vmatprep.mubr.bf16.mxu0 0
        %1658 = vmatmul.mubr.bf16.gmra.mxu0 %v1592
        %v1659 = vpop.f32.mrf.mxu0
        %v1660 = vadd.f32 0.0, %v1659
        %v1661 = vpop.f32.mrf.mxu0
        %v1662 = vpop.f32.mrf.mxu0
        %v1663 = vadd.f32 0.0, %v1662
        %v1664 = vpop.f32.mrf.mxu0
        %1665 = vmatprep.mubr.bf16.mxu0 0
        %1666 = vmatmul.mubr.bf16.gmra.mxu0 %v1595
        %v1667 = vpop.f32.mrf.mxu0
        %v1668 = vadd.f32 0.0, %v1667
        %v1669 = vpop.f32.mrf.mxu0
        %v1670 = vpop.f32.mrf.mxu0
        %v1671 = vadd.f32 0.0, %v1670
        %v1672 = vpop.f32.mrf.mxu0
        %1673 = vmatprep.mubr.bf16.mxu0 0
        %1674 = vmatmul.mubr.bf16.gmra.mxu0 %v1598
        %v1675 = vpop.f32.mrf.mxu0
        %v1676 = vadd.f32 0.0, %v1675
        %v1677 = vpop.f32.mrf.mxu0
        %v1678 = vpop.f32.mrf.mxu0
        %v1679 = vadd.f32 0.0, %v1678
        %v1680 = vpop.f32.mrf.mxu0
        %1681 = vmatprep.mubr.bf16.mxu0 0
        %1682 = vmatmul.mubr.bf16.gmra.mxu0 %v1601
        %v1683 = vpop.f32.mrf.mxu0
        %v1684 = vadd.f32 0.0, %v1683
        %v1685 = vpop.f32.mrf.mxu0
        %v1686 = vpop.f32.mrf.mxu0
        %v1687 = vadd.f32 0.0, %v1686
        %v1688 = vpop.f32.mrf.mxu0
        %1689 = vmatprep.mubr.bf16.mxu0 0
        %1690 = vmatmul.mubr.bf16.gmra.mxu0 %v1604
        %v1691 = vpop.f32.mrf.mxu0
        %v1692 = vadd.f32 0.0, %v1691
        %v1693 = vpop.f32.mrf.mxu0
        %v1694 = vpop.f32.mrf.mxu0
        %v1695 = vadd.f32 0.0, %v1694
        %v1696 = vpop.f32.mrf.mxu0
        %1697 = vmatprep.mubr.bf16.mxu0 0
        %1698 = vmatmul.mubr.bf16.gmra.mxu0 %v1607
        %v1699 = vpop.f32.mrf.mxu0
        %v1700 = vadd.f32 0.0, %v1699
        %v1701 = vpop.f32.mrf.mxu0
        %v1702 = vpop.f32.mrf.mxu0
        %v1703 = vadd.f32 0.0, %v1702
        %v1704 = vpop.f32.mrf.mxu0
        %1705 = vdwg.mxu0
        %v1714 = vunpack.c.l.b16 %v1544
        %v1715 = vunpack.c.l.b16 %v1545
        %v1716 = vunpack.c.l.b16 %v1546
        %v1717 = vunpack.c.l.b16 %v1547
        %v1718 = vunpack.c.l.b16 %v1548
        %v1719 = vunpack.c.l.b16 %v1549
        %v1720 = vunpack.c.l.b16 %v1550
        %v1721 = vunpack.c.l.b16 %v1551
        %v1722 = vpack.c.b16 %v1715, %v1714
        %v1723 = vpack.c.b16 %v1717, %v1716
        %v1724 = vpack.c.b16 %v1719, %v1718
        %v1725 = vpack.c.b16 %v1721, %v1720
        %v1731 = vsel %vm827, %v1333, 0
        %v1734 = vsel %vm827, %v1334, 0
        %v1737 = vsel %vm827, %v1335, 0
        %v1740 = vsel %vm827, %v1336, 0
        %v1743 = vsel %vm827, %v1337, 0
        %v1746 = vsel %vm827, %v1338, 0
        %v1749 = vsel %vm827, %v1339, 0
        %v1752 = vsel %vm827, %v1340, 0
        %1754 = vmatprep.subr.bf16.mxu0 0
        %1755 = vmatpush1.bf16.msra.mxu0 0
        %1756 = vmatprep.subr.bf16.mxu0 0
        %1757 = vmatpush1.bf16.msra.mxu0 0
        %1758 = vmatprep.subr.bf16.mxu0 0
        %1759 = vmatpush1.bf16.msra.mxu0 0
        %1760 = vmatprep.subr.bf16.mxu0 0
        %1761 = vmatpush1.bf16.msra.mxu0 0
        %1762 = vmatprep.subr.bf16.mxu0 0
        %1763 = vmatpush1.bf16.msra.mxu0 %v1725
        %1764 = vmatprep.subr.bf16.mxu0 0
        %1765 = vmatpush1.bf16.msra.mxu0 %v1724
        %1766 = vmatprep.subr.bf16.mxu0 0
        %1767 = vmatpush1.bf16.msra.mxu0 %v1723
        %1768 = vmatprep.subr.bf16.mxu0 0
        %1769 = vmatpush1.bf16.msra.mxu0 %v1722
        %1770 = vmatprep.subr.bf16.mxu0 0
        %1771 = vmatpush2.bf16.msra.mxu0 0
        %1772 = vmatprep.subr.bf16.mxu0 0
        %1773 = vmatpush2.bf16.msra.mxu0 0
        %1774 = vmatprep.subr.bf16.mxu0 0
        %1775 = vmatpush2.bf16.msra.mxu0 0
        %1776 = vmatprep.subr.bf16.mxu0 0
        %1777 = vmatpush2.bf16.msra.mxu0 0
        %1778 = vmatprep.subr.bf16.mxu0 0
        %1779 = vmatpush2.bf16.msra.mxu0 0
        %1780 = vmatprep.subr.bf16.mxu0 0
        %1781 = vmatpush2.bf16.msra.mxu0 0
        %1782 = vmatprep.subr.bf16.mxu0 0
        %1783 = vmatpush2.bf16.msra.mxu0 0
        %1784 = vmatprep.subr.bf16.mxu0 0
        %1785 = vmatpush2.bf16.msra.mxu0 0
        %1786 = vmatprep.mubr.bf16.mxu0 0
        %1787 = vmatmul.mubr.bf16.gmra.mxu0 %v1731
        %v1788 = vpop.f32.mrf.mxu0
        %v1789 = vadd.f32 %v1644, %v1788
        %v1790 = vpop.f32.mrf.mxu0
        %v1791 = vpop.f32.mrf.mxu0
        %v1792 = vadd.f32 %v1647, %v1791
        %v1793 = vpop.f32.mrf.mxu0
        %1794 = vmatprep.mubr.bf16.mxu0 0
        %1795 = vmatmul.mubr.bf16.gmra.mxu0 %v1734
        %v1796 = vpop.f32.mrf.mxu0
        %v1797 = vadd.f32 %v1652, %v1796
        %v1798 = vpop.f32.mrf.mxu0
        %v1799 = vpop.f32.mrf.mxu0
        %v1800 = vadd.f32 %v1655, %v1799
        %v1801 = vpop.f32.mrf.mxu0
        %1802 = vmatprep.mubr.bf16.mxu0 0
        %1803 = vmatmul.mubr.bf16.gmra.mxu0 %v1737
        %v1804 = vpop.f32.mrf.mxu0
        %v1805 = vadd.f32 %v1660, %v1804
        %v1806 = vpop.f32.mrf.mxu0
        %v1807 = vpop.f32.mrf.mxu0
        %v1808 = vadd.f32 %v1663, %v1807
        %v1809 = vpop.f32.mrf.mxu0
        %1810 = vmatprep.mubr.bf16.mxu0 0
        %1811 = vmatmul.mubr.bf16.gmra.mxu0 %v1740
        %v1812 = vpop.f32.mrf.mxu0
        %v1813 = vadd.f32 %v1668, %v1812
        %v1814 = vpop.f32.mrf.mxu0
        %v1815 = vpop.f32.mrf.mxu0
        %v1816 = vadd.f32 %v1671, %v1815
        %v1817 = vpop.f32.mrf.mxu0
        %1818 = vmatprep.mubr.bf16.mxu0 0
        %1819 = vmatmul.mubr.bf16.gmra.mxu0 %v1743
        %v1820 = vpop.f32.mrf.mxu0
        %v1821 = vadd.f32 %v1676, %v1820
        %v1822 = vpop.f32.mrf.mxu0
        %v1823 = vpop.f32.mrf.mxu0
        %v1824 = vadd.f32 %v1679, %v1823
        %v1825 = vpop.f32.mrf.mxu0
        %1826 = vmatprep.mubr.bf16.mxu0 0
        %1827 = vmatmul.mubr.bf16.gmra.mxu0 %v1746
        %v1828 = vpop.f32.mrf.mxu0
        %v1829 = vadd.f32 %v1684, %v1828
        %v1830 = vpop.f32.mrf.mxu0
        %v1831 = vpop.f32.mrf.mxu0
        %v1832 = vadd.f32 %v1687, %v1831
        %v1833 = vpop.f32.mrf.mxu0
        %1834 = vmatprep.mubr.bf16.mxu0 0
        %1835 = vmatmul.mubr.bf16.gmra.mxu0 %v1749
        %v1836 = vpop.f32.mrf.mxu0
        %v1837 = vadd.f32 %v1692, %v1836
        %v1838 = vpop.f32.mrf.mxu0
        %v1839 = vpop.f32.mrf.mxu0
        %v1840 = vadd.f32 %v1695, %v1839
        %v1841 = vpop.f32.mrf.mxu0
        %1842 = vmatprep.mubr.bf16.mxu0 0
        %1843 = vmatmul.mubr.bf16.gmra.mxu0 %v1752
        %v1844 = vpop.f32.mrf.mxu0
        %v1845 = vadd.f32 %v1700, %v1844
        %v1846 = vpop.f32.mrf.mxu0
        %v1847 = vpop.f32.mrf.mxu0
        %v1848 = vadd.f32 %v1703, %v1847
        %v1849 = vpop.f32.mrf.mxu0
        %1850 = vdwg.mxu0
        %s1851 = scalar_lea.vmem [#allocation6], 64
        %v1852 = vld [vmem:[%s1851] sm:$0xf]
        %v1853 = vld [vmem:[%s1851 + $0x4] sm:$0xf]
        %v1854 = vld [vmem:[%s1851 + $0x8] sm:$0xf]
        %v1855 = vld [vmem:[%s1851 + $0xc] sm:$0xf]
        %v1856 = vld [vmem:[%s1851 + $0x10] sm:$0xf]
        %v1857 = vld [vmem:[%s1851 + $0x14] sm:$0xf]
        %v1858 = vld [vmem:[%s1851 + $0x18] sm:$0xf]
        %v1859 = vld [vmem:[%s1851 + $0x1c] sm:$0xf]
        %v1868 = vunpack.c.l.b16 %v1852
        %v1869 = vunpack.c.l.b16 %v1853
        %v1870 = vunpack.c.l.b16 %v1854
        %v1871 = vunpack.c.l.b16 %v1855
        %v1872 = vunpack.c.l.b16 %v1856
        %v1873 = vunpack.c.l.b16 %v1857
        %v1874 = vunpack.c.l.b16 %v1858
        %v1875 = vunpack.c.l.b16 %v1859
        %v1876 = vpack.c.b16 %v1869, %v1868
        %v1877 = vpack.c.b16 %v1871, %v1870
        %v1878 = vpack.c.b16 %v1873, %v1872
        %v1879 = vpack.c.b16 %v1875, %v1874
        %v1885 = vsel %vm827, %v1534, 0
        %v1888 = vsel %vm827, %v1535, 0
        %v1891 = vsel %vm827, %v1536, 0
        %v1894 = vsel %vm827, %v1537, 0
        %v1897 = vsel %vm827, %v1538, 0
        %v1900 = vsel %vm827, %v1539, 0
        %v1903 = vsel %vm827, %v1540, 0
        %v1906 = vsel %vm827, %v1541, 0
        %1908 = vmatprep.subr.bf16.mxu0 0
        %1909 = vmatpush1.bf16.msra.mxu0 0
        %1910 = vmatprep.subr.bf16.mxu0 0
        %1911 = vmatpush1.bf16.msra.mxu0 0
        %1912 = vmatprep.subr.bf16.mxu0 0
        %1913 = vmatpush1.bf16.msra.mxu0 0
        %1914 = vmatprep.subr.bf16.mxu0 0
        %1915 = vmatpush1.bf16.msra.mxu0 0
        %1916 = vmatprep.subr.bf16.mxu0 0
        %1917 = vmatpush1.bf16.msra.mxu0 %v1879
        %1918 = vmatprep.subr.bf16.mxu0 0
        %1919 = vmatpush1.bf16.msra.mxu0 %v1878
        %1920 = vmatprep.subr.bf16.mxu0 0
        %1921 = vmatpush1.bf16.msra.mxu0 %v1877
        %1922 = vmatprep.subr.bf16.mxu0 0
        %1923 = vmatpush1.bf16.msra.mxu0 %v1876
        %1924 = vmatprep.subr.bf16.mxu0 0
        %1925 = vmatpush2.bf16.msra.mxu0 0
        %1926 = vmatprep.subr.bf16.mxu0 0
        %1927 = vmatpush2.bf16.msra.mxu0 0
        %1928 = vmatprep.subr.bf16.mxu0 0
        %1929 = vmatpush2.bf16.msra.mxu0 0
        %1930 = vmatprep.subr.bf16.mxu0 0
        %1931 = vmatpush2.bf16.msra.mxu0 0
        %1932 = vmatprep.subr.bf16.mxu0 0
        %1933 = vmatpush2.bf16.msra.mxu0 0
        %1934 = vmatprep.subr.bf16.mxu0 0
        %1935 = vmatpush2.bf16.msra.mxu0 0
        %1936 = vmatprep.subr.bf16.mxu0 0
        %1937 = vmatpush2.bf16.msra.mxu0 0
        %1938 = vmatprep.subr.bf16.mxu0 0
        %1939 = vmatpush2.bf16.msra.mxu0 0
        %1940 = vmatprep.mubr.bf16.mxu0 0
        %1941 = vmatmul.mubr.bf16.gmra.mxu0 %v1885
        %v1942 = vpop.f32.mrf.mxu0
        %v1943 = vadd.f32 0.0, %v1942
        %v1944 = vpop.f32.mrf.mxu0
        %v1945 = vpop.f32.mrf.mxu0
        %v1946 = vadd.f32 0.0, %v1945
        %v1947 = vpop.f32.mrf.mxu0
        %1948 = vmatprep.mubr.bf16.mxu0 0
        %1949 = vmatmul.mubr.bf16.gmra.mxu0 %v1888
        %v1950 = vpop.f32.mrf.mxu0
        %v1951 = vadd.f32 0.0, %v1950
        %v1952 = vpop.f32.mrf.mxu0
        %v1953 = vpop.f32.mrf.mxu0
        %v1954 = vadd.f32 0.0, %v1953
        %v1955 = vpop.f32.mrf.mxu0
        %1956 = vmatprep.mubr.bf16.mxu0 0
        %1957 = vmatmul.mubr.bf16.gmra.mxu0 %v1891
        %v1958 = vpop.f32.mrf.mxu0
        %v1959 = vadd.f32 0.0, %v1958
        %v1960 = vpop.f32.mrf.mxu0
        %v1961 = vpop.f32.mrf.mxu0
        %v1962 = vadd.f32 0.0, %v1961
        %v1963 = vpop.f32.mrf.mxu0
        %1964 = vmatprep.mubr.bf16.mxu0 0
        %1965 = vmatmul.mubr.bf16.gmra.mxu0 %v1894
        %v1966 = vpop.f32.mrf.mxu0
        %v1967 = vadd.f32 0.0, %v1966
        %v1968 = vpop.f32.mrf.mxu0
        %v1969 = vpop.f32.mrf.mxu0
        %v1970 = vadd.f32 0.0, %v1969
        %v1971 = vpop.f32.mrf.mxu0
        %1972 = vmatprep.mubr.bf16.mxu0 0
        %1973 = vmatmul.mubr.bf16.gmra.mxu0 %v1897
        %v1974 = vpop.f32.mrf.mxu0
        %v1975 = vadd.f32 0.0, %v1974
        %v1976 = vpop.f32.mrf.mxu0
        %v1977 = vpop.f32.mrf.mxu0
        %v1978 = vadd.f32 0.0, %v1977
        %v1979 = vpop.f32.mrf.mxu0
        %1980 = vmatprep.mubr.bf16.mxu0 0
        %1981 = vmatmul.mubr.bf16.gmra.mxu0 %v1900
        %v1982 = vpop.f32.mrf.mxu0
        %v1983 = vadd.f32 0.0, %v1982
        %v1984 = vpop.f32.mrf.mxu0
        %v1985 = vpop.f32.mrf.mxu0
        %v1986 = vadd.f32 0.0, %v1985
        %v1987 = vpop.f32.mrf.mxu0
        %1988 = vmatprep.mubr.bf16.mxu0 0
        %1989 = vmatmul.mubr.bf16.gmra.mxu0 %v1903
        %v1990 = vpop.f32.mrf.mxu0
        %v1991 = vadd.f32 0.0, %v1990
        %v1992 = vpop.f32.mrf.mxu0
        %v1993 = vpop.f32.mrf.mxu0
        %v1994 = vadd.f32 0.0, %v1993
        %v1995 = vpop.f32.mrf.mxu0
        %1996 = vmatprep.mubr.bf16.mxu0 0
        %1997 = vmatmul.mubr.bf16.gmra.mxu0 %v1906
        %v1998 = vpop.f32.mrf.mxu0
        %v1999 = vadd.f32 0.0, %v1998
        %v2000 = vpop.f32.mrf.mxu0
        %v2001 = vpop.f32.mrf.mxu0
        %v2002 = vadd.f32 0.0, %v2001
        %v2003 = vpop.f32.mrf.mxu0
        %2004 = vdwg.mxu0
        %v2005 = vadd.f32 %v1789, %v1943
        %v2006 = vadd.f32 %v1792, %v1946
        %v2007 = vadd.f32 %v1797, %v1951
        %v2008 = vadd.f32 %v1800, %v1954
        %v2009 = vadd.f32 %v1805, %v1959
        %v2010 = vadd.f32 %v1808, %v1962
        %v2011 = vadd.f32 %v1813, %v1967
        %v2012 = vadd.f32 %v1816, %v1970
        %v2013 = vadd.f32 %v1821, %v1975
        %v2014 = vadd.f32 %v1824, %v1978
        %v2015 = vadd.f32 %v1829, %v1983
        %v2016 = vadd.f32 %v1832, %v1986
        %v2017 = vadd.f32 %v1837, %v1991
        %v2018 = vadd.f32 %v1840, %v1994
        %v2019 = vadd.f32 %v1845, %v1999
        %v2020 = vadd.f32 %v1848, %v2002
        %s2021 = scalar_lea.vmem [#allocation6], 96
        %v2022 = vld [vmem:[%s2021] sm:$0xf]
        %v2023 = vld [vmem:[%s2021 + $0x4] sm:$0xf]
        %v2024 = vld [vmem:[%s2021 + $0x8] sm:$0xf]
        %v2025 = vld [vmem:[%s2021 + $0xc] sm:$0xf]
        %v2026 = vld [vmem:[%s2021 + $0x10] sm:$0xf]
        %v2027 = vld [vmem:[%s2021 + $0x14] sm:$0xf]
        %v2028 = vld [vmem:[%s2021 + $0x18] sm:$0xf]
        %v2029 = vld [vmem:[%s2021 + $0x1c] sm:$0xf]
        %v2038 = vunpack.c.l.b16 %v2022
        %v2039 = vunpack.c.l.b16 %v2023
        %v2040 = vunpack.c.l.b16 %v2024
        %v2041 = vunpack.c.l.b16 %v2025
        %v2042 = vunpack.c.l.b16 %v2026
        %v2043 = vunpack.c.l.b16 %v2027
        %v2044 = vunpack.c.l.b16 %v2028
        %v2045 = vunpack.c.l.b16 %v2029
        %v2046 = vpack.c.b16 %v2039, %v2038
        %v2047 = vpack.c.b16 %v2041, %v2040
        %v2048 = vpack.c.b16 %v2043, %v2042
        %v2049 = vpack.c.b16 %v2045, %v2044
        %v2055 = vsel %vm827, %v1341, 0
        %2057 = vmatprep.subr.bf16.mxu0 0
        %2058 = vmatpush1.bf16.msra.mxu0 0
        %2059 = vmatprep.subr.bf16.mxu0 0
        %2060 = vmatpush1.bf16.msra.mxu0 0
        %2061 = vmatprep.subr.bf16.mxu0 0
        %2062 = vmatpush1.bf16.msra.mxu0 0
        %2063 = vmatprep.subr.bf16.mxu0 0
        %2064 = vmatpush1.bf16.msra.mxu0 0
        %2065 = vmatprep.subr.bf16.mxu0 0
        %2066 = vmatpush1.bf16.msra.mxu0 %v2049
        %2067 = vmatprep.subr.bf16.mxu0 0
        %2068 = vmatpush1.bf16.msra.mxu0 %v2048
        %2069 = vmatprep.subr.bf16.mxu0 0
        %2070 = vmatpush1.bf16.msra.mxu0 %v2047
        %2071 = vmatprep.subr.bf16.mxu0 0
        %2072 = vmatpush1.bf16.msra.mxu0 %v2046
        %2073 = vmatprep.subr.bf16.mxu0 0
        %2074 = vmatpush2.bf16.msra.mxu0 0
        %2075 = vmatprep.subr.bf16.mxu0 0
        %2076 = vmatpush2.bf16.msra.mxu0 0
        %2077 = vmatprep.subr.bf16.mxu0 0
        %2078 = vmatpush2.bf16.msra.mxu0 0
        %2079 = vmatprep.subr.bf16.mxu0 0
        %2080 = vmatpush2.bf16.msra.mxu0 0
        %2081 = vmatprep.subr.bf16.mxu0 0
        %2082 = vmatpush2.bf16.msra.mxu0 0
        %2083 = vmatprep.subr.bf16.mxu0 0
        %2084 = vmatpush2.bf16.msra.mxu0 0
        %2085 = vmatprep.subr.bf16.mxu0 0
        %2086 = vmatpush2.bf16.msra.mxu0 0
        %2087 = vmatprep.subr.bf16.mxu0 0
        %2088 = vmatpush2.bf16.msra.mxu0 0
        %2089 = vmatprep.mubr.bf16.mxu0 0
        %2090 = vmatmul.mubr.bf16.gmra.mxu0 %v1734
        %v2091 = vpop.f32.mrf.mxu0
        %v2092 = vadd.f32 0.0, %v2091
        %v2093 = vpop.f32.mrf.mxu0
        %v2094 = vpop.f32.mrf.mxu0
        %v2095 = vadd.f32 0.0, %v2094
        %v2096 = vpop.f32.mrf.mxu0
        %2097 = vmatprep.mubr.bf16.mxu0 0
        %2098 = vmatmul.mubr.bf16.gmra.mxu0 %v1737
        %v2099 = vpop.f32.mrf.mxu0
        %v2100 = vadd.f32 0.0, %v2099
        %v2101 = vpop.f32.mrf.mxu0
        %v2102 = vpop.f32.mrf.mxu0
        %v2103 = vadd.f32 0.0, %v2102
        %v2104 = vpop.f32.mrf.mxu0
        %2105 = vmatprep.mubr.bf16.mxu0 0
        %2106 = vmatmul.mubr.bf16.gmra.mxu0 %v1740
        %v2107 = vpop.f32.mrf.mxu0
        %v2108 = vadd.f32 0.0, %v2107
        %v2109 = vpop.f32.mrf.mxu0
        %v2110 = vpop.f32.mrf.mxu0
        %v2111 = vadd.f32 0.0, %v2110
        %v2112 = vpop.f32.mrf.mxu0
        %2113 = vmatprep.mubr.bf16.mxu0 0
        %2114 = vmatmul.mubr.bf16.gmra.mxu0 %v1743
        %v2115 = vpop.f32.mrf.mxu0
        %v2116 = vadd.f32 0.0, %v2115
        %v2117 = vpop.f32.mrf.mxu0
        %v2118 = vpop.f32.mrf.mxu0
        %v2119 = vadd.f32 0.0, %v2118
        %v2120 = vpop.f32.mrf.mxu0
        %2121 = vmatprep.mubr.bf16.mxu0 0
        %2122 = vmatmul.mubr.bf16.gmra.mxu0 %v1746
        %v2123 = vpop.f32.mrf.mxu0
        %v2124 = vadd.f32 0.0, %v2123
        %v2125 = vpop.f32.mrf.mxu0
        %v2126 = vpop.f32.mrf.mxu0
        %v2127 = vadd.f32 0.0, %v2126
        %v2128 = vpop.f32.mrf.mxu0
        %2129 = vmatprep.mubr.bf16.mxu0 0
        %2130 = vmatmul.mubr.bf16.gmra.mxu0 %v1749
        %v2131 = vpop.f32.mrf.mxu0
        %v2132 = vadd.f32 0.0, %v2131
        %v2133 = vpop.f32.mrf.mxu0
        %v2134 = vpop.f32.mrf.mxu0
        %v2135 = vadd.f32 0.0, %v2134
        %v2136 = vpop.f32.mrf.mxu0
        %2137 = vmatprep.mubr.bf16.mxu0 0
        %2138 = vmatmul.mubr.bf16.gmra.mxu0 %v1752
        %v2139 = vpop.f32.mrf.mxu0
        %v2140 = vadd.f32 0.0, %v2139
        %v2141 = vpop.f32.mrf.mxu0
        %v2142 = vpop.f32.mrf.mxu0
        %v2143 = vadd.f32 0.0, %v2142
        %v2144 = vpop.f32.mrf.mxu0
        %2145 = vmatprep.mubr.bf16.mxu0 0
        %2146 = vmatmul.mubr.bf16.gmra.mxu0 %v2055
        %v2147 = vpop.f32.mrf.mxu0
        %v2148 = vadd.f32 0.0, %v2147
        %v2149 = vpop.f32.mrf.mxu0
        %v2150 = vpop.f32.mrf.mxu0
        %v2151 = vadd.f32 0.0, %v2150
        %v2152 = vpop.f32.mrf.mxu0
        %2153 = vdwg.mxu0
        %v2154 = vadd.f32 %v2005, %v2092
        %v2155 = vadd.f32 %v2006, %v2095
        %v2156 = vadd.f32 %v2007, %v2100
        %v2157 = vadd.f32 %v2008, %v2103
        %v2158 = vadd.f32 %v2009, %v2108
        %v2159 = vadd.f32 %v2010, %v2111
        %v2160 = vadd.f32 %v2011, %v2116
        %v2161 = vadd.f32 %v2012, %v2119
        %v2162 = vadd.f32 %v2013, %v2124
        %v2163 = vadd.f32 %v2014, %v2127
        %v2164 = vadd.f32 %v2015, %v2132
        %v2165 = vadd.f32 %v2016, %v2135
        %v2166 = vadd.f32 %v2017, %v2140
        %v2167 = vadd.f32 %v2018, %v2143
        %v2168 = vadd.f32 %v2019, %v2148
        %v2169 = vadd.f32 %v2020, %v2151
        %s2170 = scalar_lea.vmem [#allocation6], 128
        %v2171 = vld [vmem:[%s2170] sm:$0xf]
        %v2172 = vld [vmem:[%s2170 + $0x4] sm:$0xf]
        %v2173 = vld [vmem:[%s2170 + $0x8] sm:$0xf]
        %v2174 = vld [vmem:[%s2170 + $0xc] sm:$0xf]
        %v2175 = vld [vmem:[%s2170 + $0x10] sm:$0xf]
        %v2176 = vld [vmem:[%s2170 + $0x14] sm:$0xf]
        %v2177 = vld [vmem:[%s2170 + $0x18] sm:$0xf]
        %v2178 = vld [vmem:[%s2170 + $0x1c] sm:$0xf]
        %v2187 = vunpack.c.l.b16 %v2171
        %v2188 = vunpack.c.l.b16 %v2172
        %v2189 = vunpack.c.l.b16 %v2173
        %v2190 = vunpack.c.l.b16 %v2174
        %v2191 = vunpack.c.l.b16 %v2175
        %v2192 = vunpack.c.l.b16 %v2176
        %v2193 = vunpack.c.l.b16 %v2177
        %v2194 = vunpack.c.l.b16 %v2178
        %v2195 = vpack.c.b16 %v2188, %v2187
        %v2196 = vpack.c.b16 %v2190, %v2189
        %v2197 = vpack.c.b16 %v2192, %v2191
        %v2198 = vpack.c.b16 %v2194, %v2193
        %v2204 = vsel %vm827, %v1140, 0
        %2206 = vmatprep.subr.bf16.mxu0 0
        %2207 = vmatpush1.bf16.msra.mxu0 0
        %2208 = vmatprep.subr.bf16.mxu0 0
        %2209 = vmatpush1.bf16.msra.mxu0 0
        %2210 = vmatprep.subr.bf16.mxu0 0
        %2211 = vmatpush1.bf16.msra.mxu0 0
        %2212 = vmatprep.subr.bf16.mxu0 0
        %2213 = vmatpush1.bf16.msra.mxu0 0
        %2214 = vmatprep.subr.bf16.mxu0 0
        %2215 = vmatpush1.bf16.msra.mxu0 %v2198
        %2216 = vmatprep.subr.bf16.mxu0 0
        %2217 = vmatpush1.bf16.msra.mxu0 %v2197
        %2218 = vmatprep.subr.bf16.mxu0 0
        %2219 = vmatpush1.bf16.msra.mxu0 %v2196
        %2220 = vmatprep.subr.bf16.mxu0 0
        %2221 = vmatpush1.bf16.msra.mxu0 %v2195
        %2222 = vmatprep.subr.bf16.mxu0 0
        %2223 = vmatpush2.bf16.msra.mxu0 0
        %2224 = vmatprep.subr.bf16.mxu0 0
        %2225 = vmatpush2.bf16.msra.mxu0 0
        %2226 = vmatprep.subr.bf16.mxu0 0
        %2227 = vmatpush2.bf16.msra.mxu0 0
        %2228 = vmatprep.subr.bf16.mxu0 0
        %2229 = vmatpush2.bf16.msra.mxu0 0
        %2230 = vmatprep.subr.bf16.mxu0 0
        %2231 = vmatpush2.bf16.msra.mxu0 0
        %2232 = vmatprep.subr.bf16.mxu0 0
        %2233 = vmatpush2.bf16.msra.mxu0 0
        %2234 = vmatprep.subr.bf16.mxu0 0
        %2235 = vmatpush2.bf16.msra.mxu0 0
        %2236 = vmatprep.subr.bf16.mxu0 0
        %2237 = vmatpush2.bf16.msra.mxu0 0
        %2238 = vmatprep.mubr.bf16.mxu0 0
        %2239 = vmatmul.mubr.bf16.gmra.mxu0 %v1589
        %v2240 = vpop.f32.mrf.mxu0
        %v2241 = vadd.f32 0.0, %v2240
        %v2242 = vpop.f32.mrf.mxu0
        %v2243 = vpop.f32.mrf.mxu0
        %v2244 = vadd.f32 0.0, %v2243
        %v2245 = vpop.f32.mrf.mxu0
        %2246 = vmatprep.mubr.bf16.mxu0 0
        %2247 = vmatmul.mubr.bf16.gmra.mxu0 %v1592
        %v2248 = vpop.f32.mrf.mxu0
        %v2249 = vadd.f32 0.0, %v2248
        %v2250 = vpop.f32.mrf.mxu0
        %v2251 = vpop.f32.mrf.mxu0
        %v2252 = vadd.f32 0.0, %v2251
        %v2253 = vpop.f32.mrf.mxu0
        %2254 = vmatprep.mubr.bf16.mxu0 0
        %2255 = vmatmul.mubr.bf16.gmra.mxu0 %v1595
        %v2256 = vpop.f32.mrf.mxu0
        %v2257 = vadd.f32 0.0, %v2256
        %v2258 = vpop.f32.mrf.mxu0
        %v2259 = vpop.f32.mrf.mxu0
        %v2260 = vadd.f32 0.0, %v2259
        %v2261 = vpop.f32.mrf.mxu0
        %2262 = vmatprep.mubr.bf16.mxu0 0
        %2263 = vmatmul.mubr.bf16.gmra.mxu0 %v1598
        %v2264 = vpop.f32.mrf.mxu0
        %v2265 = vadd.f32 0.0, %v2264
        %v2266 = vpop.f32.mrf.mxu0
        %v2267 = vpop.f32.mrf.mxu0
        %v2268 = vadd.f32 0.0, %v2267
        %v2269 = vpop.f32.mrf.mxu0
        %2270 = vmatprep.mubr.bf16.mxu0 0
        %2271 = vmatmul.mubr.bf16.gmra.mxu0 %v1601
        %v2272 = vpop.f32.mrf.mxu0
        %v2273 = vadd.f32 0.0, %v2272
        %v2274 = vpop.f32.mrf.mxu0
        %v2275 = vpop.f32.mrf.mxu0
        %v2276 = vadd.f32 0.0, %v2275
        %v2277 = vpop.f32.mrf.mxu0
        %2278 = vmatprep.mubr.bf16.mxu0 0
        %2279 = vmatmul.mubr.bf16.gmra.mxu0 %v1604
        %v2280 = vpop.f32.mrf.mxu0
        %v2281 = vadd.f32 0.0, %v2280
        %v2282 = vpop.f32.mrf.mxu0
        %v2283 = vpop.f32.mrf.mxu0
        %v2284 = vadd.f32 0.0, %v2283
        %v2285 = vpop.f32.mrf.mxu0
        %2286 = vmatprep.mubr.bf16.mxu0 0
        %2287 = vmatmul.mubr.bf16.gmra.mxu0 %v1607
        %v2288 = vpop.f32.mrf.mxu0
        %v2289 = vadd.f32 0.0, %v2288
        %v2290 = vpop.f32.mrf.mxu0
        %v2291 = vpop.f32.mrf.mxu0
        %v2292 = vadd.f32 0.0, %v2291
        %v2293 = vpop.f32.mrf.mxu0
        %2294 = vmatprep.mubr.bf16.mxu0 0
        %2295 = vmatmul.mubr.bf16.gmra.mxu0 %v2204
        %v2296 = vpop.f32.mrf.mxu0
        %v2297 = vadd.f32 0.0, %v2296
        %v2298 = vpop.f32.mrf.mxu0
        %v2299 = vpop.f32.mrf.mxu0
        %v2300 = vadd.f32 0.0, %v2299
        %v2301 = vpop.f32.mrf.mxu0
        %2302 = vdwg.mxu0
        %v2303 = vadd.f32 %v2154, %v2241
        %v2304 = vadd.f32 %v2155, %v2244
        %v2305 = vadd.f32 %v2156, %v2249
        %v2306 = vadd.f32 %v2157, %v2252
        %v2307 = vadd.f32 %v2158, %v2257
        %v2308 = vadd.f32 %v2159, %v2260
        %v2309 = vadd.f32 %v2160, %v2265
        %v2310 = vadd.f32 %v2161, %v2268
        %v2311 = vadd.f32 %v2162, %v2273
        %v2312 = vadd.f32 %v2163, %v2276
        %v2313 = vadd.f32 %v2164, %v2281
        %v2314 = vadd.f32 %v2165, %v2284
        %v2315 = vadd.f32 %v2166, %v2289
        %v2316 = vadd.f32 %v2167, %v2292
        %v2317 = vadd.f32 %v2168, %v2297
        %v2318 = vadd.f32 %v2169, %v2300
        %s2319 = scalar_lea.vmem [#allocation6], 160
        %v2320 = vld [vmem:[%s2319] sm:$0xf]
        %v2321 = vld [vmem:[%s2319 + $0x4] sm:$0xf]
        %v2322 = vld [vmem:[%s2319 + $0x8] sm:$0xf]
        %v2323 = vld [vmem:[%s2319 + $0xc] sm:$0xf]
        %v2324 = vld [vmem:[%s2319 + $0x10] sm:$0xf]
        %v2325 = vld [vmem:[%s2319 + $0x14] sm:$0xf]
        %v2326 = vld [vmem:[%s2319 + $0x18] sm:$0xf]
        %v2327 = vld [vmem:[%s2319 + $0x1c] sm:$0xf]
        %v2336 = vunpack.c.l.b16 %v2320
        %v2337 = vunpack.c.l.b16 %v2321
        %v2338 = vunpack.c.l.b16 %v2322
        %v2339 = vunpack.c.l.b16 %v2323
        %v2340 = vunpack.c.l.b16 %v2324
        %v2341 = vunpack.c.l.b16 %v2325
        %v2342 = vunpack.c.l.b16 %v2326
        %v2343 = vunpack.c.l.b16 %v2327
        %v2344 = vpack.c.b16 %v2337, %v2336
        %v2345 = vpack.c.b16 %v2339, %v2338
        %v2346 = vpack.c.b16 %v2341, %v2340
        %v2347 = vpack.c.b16 %v2343, %v2342
        %v2353 = vsel %vm827, %v1542, 0
        %2355 = vmatprep.subr.bf16.mxu0 0
        %2356 = vmatpush1.bf16.msra.mxu0 0
        %2357 = vmatprep.subr.bf16.mxu0 0
        %2358 = vmatpush1.bf16.msra.mxu0 0
        %2359 = vmatprep.subr.bf16.mxu0 0
        %2360 = vmatpush1.bf16.msra.mxu0 0
        %2361 = vmatprep.subr.bf16.mxu0 0
        %2362 = vmatpush1.bf16.msra.mxu0 0
        %2363 = vmatprep.subr.bf16.mxu0 0
        %2364 = vmatpush1.bf16.msra.mxu0 %v2347
        %2365 = vmatprep.subr.bf16.mxu0 0
        %2366 = vmatpush1.bf16.msra.mxu0 %v2346
        %2367 = vmatprep.subr.bf16.mxu0 0
        %2368 = vmatpush1.bf16.msra.mxu0 %v2345
        %2369 = vmatprep.subr.bf16.mxu0 0
        %2370 = vmatpush1.bf16.msra.mxu0 %v2344
        %2371 = vmatprep.subr.bf16.mxu0 0
        %2372 = vmatpush2.bf16.msra.mxu0 0
        %2373 = vmatprep.subr.bf16.mxu0 0
        %2374 = vmatpush2.bf16.msra.mxu0 0
        %2375 = vmatprep.subr.bf16.mxu0 0
        %2376 = vmatpush2.bf16.msra.mxu0 0
        %2377 = vmatprep.subr.bf16.mxu0 0
        %2378 = vmatpush2.bf16.msra.mxu0 0
        %2379 = vmatprep.subr.bf16.mxu0 0
        %2380 = vmatpush2.bf16.msra.mxu0 0
        %2381 = vmatprep.subr.bf16.mxu0 0
        %2382 = vmatpush2.bf16.msra.mxu0 0
        %2383 = vmatprep.subr.bf16.mxu0 0
        %2384 = vmatpush2.bf16.msra.mxu0 0
        %2385 = vmatprep.subr.bf16.mxu0 0
        %2386 = vmatpush2.bf16.msra.mxu0 0
        %2387 = vmatprep.mubr.bf16.mxu0 0
        %2388 = vmatmul.mubr.bf16.gmra.mxu0 %v1888
        %v2389 = vpop.f32.mrf.mxu0
        %v2390 = vadd.f32 0.0, %v2389
        %v2391 = vpop.f32.mrf.mxu0
        %v2392 = vpop.f32.mrf.mxu0
        %v2393 = vadd.f32 0.0, %v2392
        %v2394 = vpop.f32.mrf.mxu0
        %2395 = vmatprep.mubr.bf16.mxu0 0
        %2396 = vmatmul.mubr.bf16.gmra.mxu0 %v1891
        %v2397 = vpop.f32.mrf.mxu0
        %v2398 = vadd.f32 0.0, %v2397
        %v2399 = vpop.f32.mrf.mxu0
        %v2400 = vpop.f32.mrf.mxu0
        %v2401 = vadd.f32 0.0, %v2400
        %v2402 = vpop.f32.mrf.mxu0
        %2403 = vmatprep.mubr.bf16.mxu0 0
        %2404 = vmatmul.mubr.bf16.gmra.mxu0 %v1894
        %v2405 = vpop.f32.mrf.mxu0
        %v2406 = vadd.f32 0.0, %v2405
        %v2407 = vpop.f32.mrf.mxu0
        %v2408 = vpop.f32.mrf.mxu0
        %v2409 = vadd.f32 0.0, %v2408
        %v2410 = vpop.f32.mrf.mxu0
        %2411 = vmatprep.mubr.bf16.mxu0 0
        %2412 = vmatmul.mubr.bf16.gmra.mxu0 %v1897
        %v2413 = vpop.f32.mrf.mxu0
        %v2414 = vadd.f32 0.0, %v2413
        %v2415 = vpop.f32.mrf.mxu0
        %v2416 = vpop.f32.mrf.mxu0
        %v2417 = vadd.f32 0.0, %v2416
        %v2418 = vpop.f32.mrf.mxu0
        %2419 = vmatprep.mubr.bf16.mxu0 0
        %2420 = vmatmul.mubr.bf16.gmra.mxu0 %v1900
        %v2421 = vpop.f32.mrf.mxu0
        %v2422 = vadd.f32 0.0, %v2421
        %v2423 = vpop.f32.mrf.mxu0
        %v2424 = vpop.f32.mrf.mxu0
        %v2425 = vadd.f32 0.0, %v2424
        %v2426 = vpop.f32.mrf.mxu0
        %2427 = vmatprep.mubr.bf16.mxu0 0
        %2428 = vmatmul.mubr.bf16.gmra.mxu0 %v1903
        %v2429 = vpop.f32.mrf.mxu0
        %v2430 = vadd.f32 0.0, %v2429
        %v2431 = vpop.f32.mrf.mxu0
        %v2432 = vpop.f32.mrf.mxu0
        %v2433 = vadd.f32 0.0, %v2432
        %v2434 = vpop.f32.mrf.mxu0
        %2435 = vmatprep.mubr.bf16.mxu0 0
        %2436 = vmatmul.mubr.bf16.gmra.mxu0 %v1906
        %v2437 = vpop.f32.mrf.mxu0
        %v2438 = vadd.f32 0.0, %v2437
        %v2439 = vpop.f32.mrf.mxu0
        %v2440 = vpop.f32.mrf.mxu0
        %v2441 = vadd.f32 0.0, %v2440
        %v2442 = vpop.f32.mrf.mxu0
        %2443 = vmatprep.mubr.bf16.mxu0 0
        %2444 = vmatmul.mubr.bf16.gmra.mxu0 %v2353
        %v2445 = vpop.f32.mrf.mxu0
        %v2446 = vadd.f32 0.0, %v2445
        %v2447 = vpop.f32.mrf.mxu0
        %v2448 = vpop.f32.mrf.mxu0
        %v2449 = vadd.f32 0.0, %v2448
        %v2450 = vpop.f32.mrf.mxu0
        %2451 = vdwg.mxu0
        %v2452 = vadd.f32 %v2303, %v2390
        %v2453 = vadd.f32 %v2304, %v2393
        %v2454 = vadd.f32 %v2305, %v2398
        %v2455 = vadd.f32 %v2306, %v2401
        %v2456 = vadd.f32 %v2307, %v2406
        %v2457 = vadd.f32 %v2308, %v2409
        %v2458 = vadd.f32 %v2309, %v2414
        %v2459 = vadd.f32 %v2310, %v2417
        %v2460 = vadd.f32 %v2311, %v2422
        %v2461 = vadd.f32 %v2312, %v2425
        %v2462 = vadd.f32 %v2313, %v2430
        %v2463 = vadd.f32 %v2314, %v2433
        %v2464 = vadd.f32 %v2315, %v2438
        %v2465 = vadd.f32 %v2316, %v2441
        %v2466 = vadd.f32 %v2317, %v2446
        %v2467 = vadd.f32 %v2318, %v2449
        %s2468 = scalar_lea.vmem [#allocation6], 192
        %v2469 = vld [vmem:[%s2468] sm:$0xf]
        %v2470 = vld [vmem:[%s2468 + $0x4] sm:$0xf]
        %v2471 = vld [vmem:[%s2468 + $0x8] sm:$0xf]
        %v2472 = vld [vmem:[%s2468 + $0xc] sm:$0xf]
        %v2473 = vld [vmem:[%s2468 + $0x10] sm:$0xf]
        %v2474 = vld [vmem:[%s2468 + $0x14] sm:$0xf]
        %v2475 = vld [vmem:[%s2468 + $0x18] sm:$0xf]
        %v2476 = vld [vmem:[%s2468 + $0x1c] sm:$0xf]
        %v2485 = vunpack.c.l.b16 %v2469
        %v2486 = vunpack.c.l.b16 %v2470
        %v2487 = vunpack.c.l.b16 %v2471
        %v2488 = vunpack.c.l.b16 %v2472
        %v2489 = vunpack.c.l.b16 %v2473
        %v2490 = vunpack.c.l.b16 %v2474
        %v2491 = vunpack.c.l.b16 %v2475
        %v2492 = vunpack.c.l.b16 %v2476
        %v2493 = vpack.c.b16 %v2486, %v2485
        %v2494 = vpack.c.b16 %v2488, %v2487
        %v2495 = vpack.c.b16 %v2490, %v2489
        %v2496 = vpack.c.b16 %v2492, %v2491
        %v2502 = vsel %vm827, %v1342, 0
        %2504 = vmatprep.subr.bf16.mxu0 0
        %2505 = vmatpush1.bf16.msra.mxu0 0
        %2506 = vmatprep.subr.bf16.mxu0 0
        %2507 = vmatpush1.bf16.msra.mxu0 0
        %2508 = vmatprep.subr.bf16.mxu0 0
        %2509 = vmatpush1.bf16.msra.mxu0 0
        %2510 = vmatprep.subr.bf16.mxu0 0
        %2511 = vmatpush1.bf16.msra.mxu0 0
        %2512 = vmatprep.subr.bf16.mxu0 0
        %2513 = vmatpush1.bf16.msra.mxu0 %v2496
        %2514 = vmatprep.subr.bf16.mxu0 0
        %2515 = vmatpush1.bf16.msra.mxu0 %v2495
        %2516 = vmatprep.subr.bf16.mxu0 0
        %2517 = vmatpush1.bf16.msra.mxu0 %v2494
        %2518 = vmatprep.subr.bf16.mxu0 0
        %2519 = vmatpush1.bf16.msra.mxu0 %v2493
        %2520 = vmatprep.subr.bf16.mxu0 0
        %2521 = vmatpush2.bf16.msra.mxu0 0
        %2522 = vmatprep.subr.bf16.mxu0 0
        %2523 = vmatpush2.bf16.msra.mxu0 0
        %2524 = vmatprep.subr.bf16.mxu0 0
        %2525 = vmatpush2.bf16.msra.mxu0 0
        %2526 = vmatprep.subr.bf16.mxu0 0
        %2527 = vmatpush2.bf16.msra.mxu0 0
        %2528 = vmatprep.subr.bf16.mxu0 0
        %2529 = vmatpush2.bf16.msra.mxu0 0
        %2530 = vmatprep.subr.bf16.mxu0 0
        %2531 = vmatpush2.bf16.msra.mxu0 0
        %2532 = vmatprep.subr.bf16.mxu0 0
        %2533 = vmatpush2.bf16.msra.mxu0 0
        %2534 = vmatprep.subr.bf16.mxu0 0
        %2535 = vmatpush2.bf16.msra.mxu0 0
        %2536 = vmatprep.mubr.bf16.mxu0 0
        %2537 = vmatmul.mubr.bf16.gmra.mxu0 %v1737
        %v2538 = vpop.f32.mrf.mxu0
        %v2539 = vadd.f32 0.0, %v2538
        %v2540 = vpop.f32.mrf.mxu0
        %v2541 = vpop.f32.mrf.mxu0
        %v2542 = vadd.f32 0.0, %v2541
        %v2543 = vpop.f32.mrf.mxu0
        %2544 = vmatprep.mubr.bf16.mxu0 0
        %2545 = vmatmul.mubr.bf16.gmra.mxu0 %v1740
        %v2546 = vpop.f32.mrf.mxu0
        %v2547 = vadd.f32 0.0, %v2546
        %v2548 = vpop.f32.mrf.mxu0
        %v2549 = vpop.f32.mrf.mxu0
        %v2550 = vadd.f32 0.0, %v2549
        %v2551 = vpop.f32.mrf.mxu0
        %2552 = vmatprep.mubr.bf16.mxu0 0
        %2553 = vmatmul.mubr.bf16.gmra.mxu0 %v1743
        %v2554 = vpop.f32.mrf.mxu0
        %v2555 = vadd.f32 0.0, %v2554
        %v2556 = vpop.f32.mrf.mxu0
        %v2557 = vpop.f32.mrf.mxu0
        %v2558 = vadd.f32 0.0, %v2557
        %v2559 = vpop.f32.mrf.mxu0
        %2560 = vmatprep.mubr.bf16.mxu0 0
        %2561 = vmatmul.mubr.bf16.gmra.mxu0 %v1746
        %v2562 = vpop.f32.mrf.mxu0
        %v2563 = vadd.f32 0.0, %v2562
        %v2564 = vpop.f32.mrf.mxu0
        %v2565 = vpop.f32.mrf.mxu0
        %v2566 = vadd.f32 0.0, %v2565
        %v2567 = vpop.f32.mrf.mxu0
        %2568 = vmatprep.mubr.bf16.mxu0 0
        %2569 = vmatmul.mubr.bf16.gmra.mxu0 %v1749
        %v2570 = vpop.f32.mrf.mxu0
        %v2571 = vadd.f32 0.0, %v2570
        %v2572 = vpop.f32.mrf.mxu0
        %v2573 = vpop.f32.mrf.mxu0
        %v2574 = vadd.f32 0.0, %v2573
        %v2575 = vpop.f32.mrf.mxu0
        %2576 = vmatprep.mubr.bf16.mxu0 0
        %2577 = vmatmul.mubr.bf16.gmra.mxu0 %v1752
        %v2578 = vpop.f32.mrf.mxu0
        %v2579 = vadd.f32 0.0, %v2578
        %v2580 = vpop.f32.mrf.mxu0
        %v2581 = vpop.f32.mrf.mxu0
        %v2582 = vadd.f32 0.0, %v2581
        %v2583 = vpop.f32.mrf.mxu0
        %2584 = vmatprep.mubr.bf16.mxu0 0
        %2585 = vmatmul.mubr.bf16.gmra.mxu0 %v2055
        %v2586 = vpop.f32.mrf.mxu0
        %v2587 = vadd.f32 0.0, %v2586
        %v2588 = vpop.f32.mrf.mxu0
        %v2589 = vpop.f32.mrf.mxu0
        %v2590 = vadd.f32 0.0, %v2589
        %v2591 = vpop.f32.mrf.mxu0
        %2592 = vmatprep.mubr.bf16.mxu0 0
        %2593 = vmatmul.mubr.bf16.gmra.mxu0 %v2502
        %v2594 = vpop.f32.mrf.mxu0
        %v2595 = vadd.f32 0.0, %v2594
        %v2596 = vpop.f32.mrf.mxu0
        %v2597 = vpop.f32.mrf.mxu0
        %v2598 = vadd.f32 0.0, %v2597
        %v2599 = vpop.f32.mrf.mxu0
        %2600 = vdwg.mxu0
        %v2601 = vadd.f32 %v2452, %v2539
        %v2602 = vadd.f32 %v2453, %v2542
        %v2603 = vadd.f32 %v2454, %v2547
        %v2604 = vadd.f32 %v2455, %v2550
        %v2605 = vadd.f32 %v2456, %v2555
        %v2606 = vadd.f32 %v2457, %v2558
        %v2607 = vadd.f32 %v2458, %v2563
        %v2608 = vadd.f32 %v2459, %v2566
        %v2609 = vadd.f32 %v2460, %v2571
        %v2610 = vadd.f32 %v2461, %v2574
        %v2611 = vadd.f32 %v2462, %v2579
        %v2612 = vadd.f32 %v2463, %v2582
        %v2613 = vadd.f32 %v2464, %v2587
        %v2614 = vadd.f32 %v2465, %v2590
        %v2615 = vadd.f32 %v2466, %v2595
        %v2616 = vadd.f32 %v2467, %v2598
        %s2617 = scalar_lea.vmem [#allocation6], 224
        %v2618 = vld [vmem:[%s2617] sm:$0xf]
        %v2619 = vld [vmem:[%s2617 + $0x4] sm:$0xf]
        %v2620 = vld [vmem:[%s2617 + $0x8] sm:$0xf]
        %v2621 = vld [vmem:[%s2617 + $0xc] sm:$0xf]
        %v2622 = vld [vmem:[%s2617 + $0x10] sm:$0xf]
        %v2623 = vld [vmem:[%s2617 + $0x14] sm:$0xf]
        %v2624 = vld [vmem:[%s2617 + $0x18] sm:$0xf]
        %v2625 = vld [vmem:[%s2617 + $0x1c] sm:$0xf]
        %v2634 = vunpack.c.l.b16 %v2618
        %v2635 = vunpack.c.l.b16 %v2619
        %v2636 = vunpack.c.l.b16 %v2620
        %v2637 = vunpack.c.l.b16 %v2621
        %v2638 = vunpack.c.l.b16 %v2622
        %v2639 = vunpack.c.l.b16 %v2623
        %v2640 = vunpack.c.l.b16 %v2624
        %v2641 = vunpack.c.l.b16 %v2625
        %v2642 = vpack.c.b16 %v2635, %v2634
        %v2643 = vpack.c.b16 %v2637, %v2636
        %v2644 = vpack.c.b16 %v2639, %v2638
        %v2645 = vpack.c.b16 %v2641, %v2640
        %v2651 = vsel %vm827, %v1141, 0
        %2653 = vmatprep.subr.bf16.mxu0 0
        %2654 = vmatpush1.bf16.msra.mxu0 0
        %2655 = vmatprep.subr.bf16.mxu0 0
        %2656 = vmatpush1.bf16.msra.mxu0 0
        %2657 = vmatprep.subr.bf16.mxu0 0
        %2658 = vmatpush1.bf16.msra.mxu0 0
        %2659 = vmatprep.subr.bf16.mxu0 0
        %2660 = vmatpush1.bf16.msra.mxu0 0
        %2661 = vmatprep.subr.bf16.mxu0 0
        %2662 = vmatpush1.bf16.msra.mxu0 %v2645
        %2663 = vmatprep.subr.bf16.mxu0 0
        %2664 = vmatpush1.bf16.msra.mxu0 %v2644
        %2665 = vmatprep.subr.bf16.mxu0 0
        %2666 = vmatpush1.bf16.msra.mxu0 %v2643
        %2667 = vmatprep.subr.bf16.mxu0 0
        %2668 = vmatpush1.bf16.msra.mxu0 %v2642
        %2669 = vmatprep.subr.bf16.mxu0 0
        %2670 = vmatpush2.bf16.msra.mxu0 0
        %2671 = vmatprep.subr.bf16.mxu0 0
        %2672 = vmatpush2.bf16.msra.mxu0 0
        %2673 = vmatprep.subr.bf16.mxu0 0
        %2674 = vmatpush2.bf16.msra.mxu0 0
        %2675 = vmatprep.subr.bf16.mxu0 0
        %2676 = vmatpush2.bf16.msra.mxu0 0
        %2677 = vmatprep.subr.bf16.mxu0 0
        %2678 = vmatpush2.bf16.msra.mxu0 0
        %2679 = vmatprep.subr.bf16.mxu0 0
        %2680 = vmatpush2.bf16.msra.mxu0 0
        %2681 = vmatprep.subr.bf16.mxu0 0
        %2682 = vmatpush2.bf16.msra.mxu0 0
        %2683 = vmatprep.subr.bf16.mxu0 0
        %2684 = vmatpush2.bf16.msra.mxu0 0
        %2685 = vmatprep.mubr.bf16.mxu0 0
        %2686 = vmatmul.mubr.bf16.gmra.mxu0 %v1592
        %v2687 = vpop.f32.mrf.mxu0
        %v2688 = vadd.f32 0.0, %v2687
        %v2689 = vpop.f32.mrf.mxu0
        %v2690 = vpop.f32.mrf.mxu0
        %v2691 = vadd.f32 0.0, %v2690
        %v2692 = vpop.f32.mrf.mxu0
        %2693 = vmatprep.mubr.bf16.mxu0 0
        %2694 = vmatmul.mubr.bf16.gmra.mxu0 %v1595
        %v2695 = vpop.f32.mrf.mxu0
        %v2696 = vadd.f32 0.0, %v2695
        %v2697 = vpop.f32.mrf.mxu0
        %v2698 = vpop.f32.mrf.mxu0
        %v2699 = vadd.f32 0.0, %v2698
        %v2700 = vpop.f32.mrf.mxu0
        %2701 = vmatprep.mubr.bf16.mxu0 0
        %2702 = vmatmul.mubr.bf16.gmra.mxu0 %v1598
        %v2703 = vpop.f32.mrf.mxu0
        %v2704 = vadd.f32 0.0, %v2703
        %v2705 = vpop.f32.mrf.mxu0
        %v2706 = vpop.f32.mrf.mxu0
        %v2707 = vadd.f32 0.0, %v2706
        %v2708 = vpop.f32.mrf.mxu0
        %2709 = vmatprep.mubr.bf16.mxu0 0
        %2710 = vmatmul.mubr.bf16.gmra.mxu0 %v1601
        %v2711 = vpop.f32.mrf.mxu0
        %v2712 = vadd.f32 0.0, %v2711
        %v2713 = vpop.f32.mrf.mxu0
        %v2714 = vpop.f32.mrf.mxu0
        %v2715 = vadd.f32 0.0, %v2714
        %v2716 = vpop.f32.mrf.mxu0
        %2717 = vmatprep.mubr.bf16.mxu0 0
        %2718 = vmatmul.mubr.bf16.gmra.mxu0 %v1604
        %v2719 = vpop.f32.mrf.mxu0
        %v2720 = vadd.f32 0.0, %v2719
        %v2721 = vpop.f32.mrf.mxu0
        %v2722 = vpop.f32.mrf.mxu0
        %v2723 = vadd.f32 0.0, %v2722
        %v2724 = vpop.f32.mrf.mxu0
        %2725 = vmatprep.mubr.bf16.mxu0 0
        %2726 = vmatmul.mubr.bf16.gmra.mxu0 %v1607
        %v2727 = vpop.f32.mrf.mxu0
        %v2728 = vadd.f32 0.0, %v2727
        %v2729 = vpop.f32.mrf.mxu0
        %v2730 = vpop.f32.mrf.mxu0
        %v2731 = vadd.f32 0.0, %v2730
        %v2732 = vpop.f32.mrf.mxu0
        %2733 = vmatprep.mubr.bf16.mxu0 0
        %2734 = vmatmul.mubr.bf16.gmra.mxu0 %v2204
        %v2735 = vpop.f32.mrf.mxu0
        %v2736 = vadd.f32 0.0, %v2735
        %v2737 = vpop.f32.mrf.mxu0
        %v2738 = vpop.f32.mrf.mxu0
        %v2739 = vadd.f32 0.0, %v2738
        %v2740 = vpop.f32.mrf.mxu0
        %2741 = vmatprep.mubr.bf16.mxu0 0
        %2742 = vmatmul.mubr.bf16.gmra.mxu0 %v2651
        %v2743 = vpop.f32.mrf.mxu0
        %v2744 = vadd.f32 0.0, %v2743
        %v2745 = vpop.f32.mrf.mxu0
        %v2746 = vpop.f32.mrf.mxu0
        %v2747 = vadd.f32 0.0, %v2746
        %v2748 = vpop.f32.mrf.mxu0
        %2749 = vdwg.mxu0
        %v2750 = vadd.f32 %v2601, %v2688
        %v2751 = vadd.f32 %v2602, %v2691
        %v2752 = vadd.f32 %v2603, %v2696
        %v2753 = vadd.f32 %v2604, %v2699
        %v2754 = vadd.f32 %v2605, %v2704
        %v2755 = vadd.f32 %v2606, %v2707
        %v2756 = vadd.f32 %v2607, %v2712
        %v2757 = vadd.f32 %v2608, %v2715
        %v2758 = vadd.f32 %v2609, %v2720
        %v2759 = vadd.f32 %v2610, %v2723
        %v2760 = vadd.f32 %v2611, %v2728
        %v2761 = vadd.f32 %v2612, %v2731
        %v2762 = vadd.f32 %v2613, %v2736
        %v2763 = vadd.f32 %v2614, %v2739
        %v2764 = vadd.f32 %v2615, %v2744
        %v2765 = vadd.f32 %v2616, %v2747
        %s2766 = scalar_lea.vmem [#allocation6], 256
        %v2767 = vld [vmem:[%s2766] sm:$0xf]
        %v2768 = vld [vmem:[%s2766 + $0x4] sm:$0xf]
        %v2769 = vld [vmem:[%s2766 + $0x8] sm:$0xf]
        %v2770 = vld [vmem:[%s2766 + $0xc] sm:$0xf]
        %v2771 = vld [vmem:[%s2766 + $0x10] sm:$0xf]
        %v2772 = vld [vmem:[%s2766 + $0x14] sm:$0xf]
        %v2773 = vld [vmem:[%s2766 + $0x18] sm:$0xf]
        %v2774 = vld [vmem:[%s2766 + $0x1c] sm:$0xf]
        %v2783 = vunpack.c.l.b16 %v2767
        %v2784 = vunpack.c.l.b16 %v2768
        %v2785 = vunpack.c.l.b16 %v2769
        %v2786 = vunpack.c.l.b16 %v2770
        %v2787 = vunpack.c.l.b16 %v2771
        %v2788 = vunpack.c.l.b16 %v2772
        %v2789 = vunpack.c.l.b16 %v2773
        %v2790 = vunpack.c.l.b16 %v2774
        %v2791 = vpack.c.b16 %v2784, %v2783
        %v2792 = vpack.c.b16 %v2786, %v2785
        %v2793 = vpack.c.b16 %v2788, %v2787
        %v2794 = vpack.c.b16 %v2790, %v2789
        %v2800 = vsel %vm827, %v1543, 0
        %2802 = vmatprep.subr.bf16.mxu0 0
        %2803 = vmatpush1.bf16.msra.mxu0 0
        %2804 = vmatprep.subr.bf16.mxu0 0
        %2805 = vmatpush1.bf16.msra.mxu0 0
        %2806 = vmatprep.subr.bf16.mxu0 0
        %2807 = vmatpush1.bf16.msra.mxu0 0
        %2808 = vmatprep.subr.bf16.mxu0 0
        %2809 = vmatpush1.bf16.msra.mxu0 0
        %2810 = vmatprep.subr.bf16.mxu0 0
        %2811 = vmatpush1.bf16.msra.mxu0 %v2794
        %2812 = vmatprep.subr.bf16.mxu0 0
        %2813 = vmatpush1.bf16.msra.mxu0 %v2793
        %2814 = vmatprep.subr.bf16.mxu0 0
        %2815 = vmatpush1.bf16.msra.mxu0 %v2792
        %2816 = vmatprep.subr.bf16.mxu0 0
        %2817 = vmatpush1.bf16.msra.mxu0 %v2791
        %2818 = vmatprep.subr.bf16.mxu0 0
        %2819 = vmatpush2.bf16.msra.mxu0 0
        %2820 = vmatprep.subr.bf16.mxu0 0
        %2821 = vmatpush2.bf16.msra.mxu0 0
        %2822 = vmatprep.subr.bf16.mxu0 0
        %2823 = vmatpush2.bf16.msra.mxu0 0
        %2824 = vmatprep.subr.bf16.mxu0 0
        %2825 = vmatpush2.bf16.msra.mxu0 0
        %2826 = vmatprep.subr.bf16.mxu0 0
        %2827 = vmatpush2.bf16.msra.mxu0 0
        %2828 = vmatprep.subr.bf16.mxu0 0
        %2829 = vmatpush2.bf16.msra.mxu0 0
        %2830 = vmatprep.subr.bf16.mxu0 0
        %2831 = vmatpush2.bf16.msra.mxu0 0
        %2832 = vmatprep.subr.bf16.mxu0 0
        %2833 = vmatpush2.bf16.msra.mxu0 0
        %2834 = vmatprep.mubr.bf16.mxu0 0
        %2835 = vmatmul.mubr.bf16.gmra.mxu0 %v1891
        %v2836 = vpop.f32.mrf.mxu0
        %v2837 = vadd.f32 0.0, %v2836
        %v2838 = vpop.f32.mrf.mxu0
        %v2839 = vpop.f32.mrf.mxu0
        %v2840 = vadd.f32 0.0, %v2839
        %v2841 = vpop.f32.mrf.mxu0
        %2842 = vmatprep.mubr.bf16.mxu0 0
        %2843 = vmatmul.mubr.bf16.gmra.mxu0 %v1894
        %v2844 = vpop.f32.mrf.mxu0
        %v2845 = vadd.f32 0.0, %v2844
        %v2846 = vpop.f32.mrf.mxu0
        %v2847 = vpop.f32.mrf.mxu0
        %v2848 = vadd.f32 0.0, %v2847
        %v2849 = vpop.f32.mrf.mxu0
        %2850 = vmatprep.mubr.bf16.mxu0 0
        %2851 = vmatmul.mubr.bf16.gmra.mxu0 %v1897
        %v2852 = vpop.f32.mrf.mxu0
        %v2853 = vadd.f32 0.0, %v2852
        %v2854 = vpop.f32.mrf.mxu0
        %v2855 = vpop.f32.mrf.mxu0
        %v2856 = vadd.f32 0.0, %v2855
        %v2857 = vpop.f32.mrf.mxu0
        %2858 = vmatprep.mubr.bf16.mxu0 0
        %2859 = vmatmul.mubr.bf16.gmra.mxu0 %v1900
        %v2860 = vpop.f32.mrf.mxu0
        %v2861 = vadd.f32 0.0, %v2860
        %v2862 = vpop.f32.mrf.mxu0
        %v2863 = vpop.f32.mrf.mxu0
        %v2864 = vadd.f32 0.0, %v2863
        %v2865 = vpop.f32.mrf.mxu0
        %2866 = vmatprep.mubr.bf16.mxu0 0
        %2867 = vmatmul.mubr.bf16.gmra.mxu0 %v1903
        %v2868 = vpop.f32.mrf.mxu0
        %v2869 = vadd.f32 0.0, %v2868
        %v2870 = vpop.f32.mrf.mxu0
        %v2871 = vpop.f32.mrf.mxu0
        %v2872 = vadd.f32 0.0, %v2871
        %v2873 = vpop.f32.mrf.mxu0
        %2874 = vmatprep.mubr.bf16.mxu0 0
        %2875 = vmatmul.mubr.bf16.gmra.mxu0 %v1906
        %v2876 = vpop.f32.mrf.mxu0
        %v2877 = vadd.f32 0.0, %v2876
        %v2878 = vpop.f32.mrf.mxu0
        %v2879 = vpop.f32.mrf.mxu0
        %v2880 = vadd.f32 0.0, %v2879
        %v2881 = vpop.f32.mrf.mxu0
        %2882 = vmatprep.mubr.bf16.mxu0 0
        %2883 = vmatmul.mubr.bf16.gmra.mxu0 %v2353
        %v2884 = vpop.f32.mrf.mxu0
        %v2885 = vadd.f32 0.0, %v2884
        %v2886 = vpop.f32.mrf.mxu0
        %v2887 = vpop.f32.mrf.mxu0
        %v2888 = vadd.f32 0.0, %v2887
        %v2889 = vpop.f32.mrf.mxu0
        %2890 = vmatprep.mubr.bf16.mxu0 0
        %2891 = vmatmul.mubr.bf16.gmra.mxu0 %v2800
        %v2892 = vpop.f32.mrf.mxu0
        %v2893 = vadd.f32 0.0, %v2892
        %v2894 = vpop.f32.mrf.mxu0
        %v2895 = vpop.f32.mrf.mxu0
        %v2896 = vadd.f32 0.0, %v2895
        %v2897 = vpop.f32.mrf.mxu0
        %2898 = vdwg.mxu0
        %v2899 = vadd.f32 %v2750, %v2837
        %v2900 = vadd.f32 %v2751, %v2840
        %v2901 = vadd.f32 %v2752, %v2845
        %v2902 = vadd.f32 %v2753, %v2848
        %v2903 = vadd.f32 %v2754, %v2853
        %v2904 = vadd.f32 %v2755, %v2856
        %v2905 = vadd.f32 %v2756, %v2861
        %v2906 = vadd.f32 %v2757, %v2864
        %v2907 = vadd.f32 %v2758, %v2869
        %v2908 = vadd.f32 %v2759, %v2872
        %v2909 = vadd.f32 %v2760, %v2877
        %v2910 = vadd.f32 %v2761, %v2880
        %v2911 = vadd.f32 %v2762, %v2885
        %v2912 = vadd.f32 %v2763, %v2888
        %v2913 = vadd.f32 %v2764, %v2893
        %v2914 = vadd.f32 %v2765, %v2896
        %v2915 = vld [vmem:[%s5] sm:$0x1]
        %v2917 = vlaneseq
        %v2918 = vshrl.u32 %v2917, 7
        %v2919 = vsub.s32 0, %v2918
        %v2920 = vrot.slane %v2915, %v2919
        %v2922 = vadd.f32 %v2899, %v2920
        %v2923 = vadd.f32 %v2900, %v2920
        %v2924 = vadd.f32 %v2901, %v2920
        %v2925 = vadd.f32 %v2902, %v2920
        %v2926 = vadd.f32 %v2903, %v2920
        %v2927 = vadd.f32 %v2904, %v2920
        %v2928 = vadd.f32 %v2905, %v2920
        %v2929 = vadd.f32 %v2906, %v2920
        %v2930 = vadd.f32 %v2907, %v2920
        %v2931 = vadd.f32 %v2908, %v2920
        %v2932 = vadd.f32 %v2909, %v2920
        %v2933 = vadd.f32 %v2910, %v2920
        %v2934 = vadd.f32 %v2911, %v2920
        %v2935 = vadd.f32 %v2912, %v2920
        %v2936 = vadd.f32 %v2913, %v2920
        %v2937 = vadd.f32 %v2914, %v2920
        %v2938 = vmax.f32 %v2922, 0.0
        %v2939 = vmax.f32 %v2923, 0.0
        %v2940 = vmax.f32 %v2924, 0.0
        %v2941 = vmax.f32 %v2925, 0.0
        %v2942 = vmax.f32 %v2926, 0.0
        %v2943 = vmax.f32 %v2927, 0.0
        %v2944 = vmax.f32 %v2928, 0.0
        %v2945 = vmax.f32 %v2929, 0.0
        %v2946 = vmax.f32 %v2930, 0.0
        %v2947 = vmax.f32 %v2931, 0.0
        %v2948 = vmax.f32 %v2932, 0.0
        %v2949 = vmax.f32 %v2933, 0.0
        %v2950 = vmax.f32 %v2934, 0.0
        %v2951 = vmax.f32 %v2935, 0.0
        %v2952 = vmax.f32 %v2936, 0.0
        %v2953 = vmax.f32 %v2937, 0.0
        %v2954 = vpack.c.bf16 %v2939, %v2938
        %v2955 = vpack.c.bf16 %v2941, %v2940
        %v2956 = vpack.c.bf16 %v2943, %v2942
        %v2957 = vpack.c.bf16 %v2945, %v2944
        %v2958 = vpack.c.bf16 %v2947, %v2946
        %v2959 = vpack.c.bf16 %v2949, %v2948
        %v2960 = vpack.c.bf16 %v2951, %v2950
        %v2961 = vpack.c.bf16 %v2953, %v2952
        %v2962 = vld [vmem:[%s6] sm:$0xff]
        %v2963 = vld [vmem:[%s6 + $0x8] sm:$0xff]
        %v2964 = vld [vmem:[%s6 + $0x10] sm:$0xff]
        %v2965 = vld [vmem:[%s6 + $0x18] sm:$0xff]
        %v2966 = vld [vmem:[%s6 + $0x20] sm:$0xff]
        %v2967 = vld [vmem:[%s6 + $0x28] sm:$0xff]
        %v2968 = vld [vmem:[%s6 + $0x30] sm:$0xff]
        %v2969 = vld [vmem:[%s6 + $0x38] sm:$0xff]
        %v2970 = vld [vmem:[%s7] sm:$0x3]
        %v2972 = vlaneseq
        %v2973 = vshrl.u32 %v2972, 7
        %v2974 = vsub.s32 0, %v2973
        %v2975 = vrot.slane %v2970, %v2974
        %v2976 = vlaneseq
        %v2977 = vshrl.u32 %v2976, 7
        %v2978 = vsub.s32 1, %v2977
        %v2979 = vrot.slane %v2970, %v2978
        %v2990 = vunpack.c.l.b16 %v2962
        %v2991 = vunpack.c.h.b16 %v2962
        %v2992 = vunpack.c.l.b16 %v2963
        %v2993 = vunpack.c.h.b16 %v2963
        %v2994 = vunpack.c.l.b16 %v2964
        %v2995 = vunpack.c.h.b16 %v2964
        %v2996 = vunpack.c.l.b16 %v2965
        %v2997 = vunpack.c.h.b16 %v2965
        %v2998 = vunpack.c.l.b16 %v2966
        %v2999 = vunpack.c.h.b16 %v2966
        %v3000 = vunpack.c.l.b16 %v2967
        %v3001 = vunpack.c.h.b16 %v2967
        %v3002 = vunpack.c.l.b16 %v2968
        %v3003 = vunpack.c.h.b16 %v2968
        %v3004 = vunpack.c.l.b16 %v2969
        %v3005 = vunpack.c.h.b16 %v2969
        %v3006 = vpack.c.b16 %v2992, %v2990
        %v3007 = vpack.c.b16 %v2993, %v2991
        %v3008 = vpack.c.b16 %v2996, %v2994
        %v3009 = vpack.c.b16 %v2997, %v2995
        %v3010 = vpack.c.b16 %v3000, %v2998
        %v3011 = vpack.c.b16 %v3001, %v2999
        %v3012 = vpack.c.b16 %v3004, %v3002
        %v3013 = vpack.c.b16 %v3005, %v3003
        %v3023 = vsel %vm827, %v2954, 0
        %v3026 = vsel %vm827, %v2955, 0
        %v3029 = vsel %vm827, %v2956, 0
        %v3032 = vsel %vm827, %v2957, 0
        %v3035 = vsel %vm827, %v2958, 0
        %v3038 = vsel %vm827, %v2959, 0
        %v3041 = vsel %vm827, %v2960, 0
        %v3044 = vsel %vm827, %v2961, 0
        %3046 = vmatprep.subr.bf16.mxu0 0
        %3047 = vmatpush1.bf16.msra.mxu0 0
        %3048 = vmatprep.subr.bf16.mxu0 0
        %3049 = vmatpush1.bf16.msra.mxu0 0
        %3050 = vmatprep.subr.bf16.mxu0 0
        %3051 = vmatpush1.bf16.msra.mxu0 0
        %3052 = vmatprep.subr.bf16.mxu0 0
        %3053 = vmatpush1.bf16.msra.mxu0 0
        %3054 = vmatprep.subr.bf16.mxu0 %v3013
        %3055 = vmatpush1.bf16.msra.mxu0 %v3012
        %3056 = vmatprep.subr.bf16.mxu0 %v3011
        %3057 = vmatpush1.bf16.msra.mxu0 %v3010
        %3058 = vmatprep.subr.bf16.mxu0 %v3009
        %3059 = vmatpush1.bf16.msra.mxu0 %v3008
        %3060 = vmatprep.subr.bf16.mxu0 %v3007
        %3061 = vmatpush1.bf16.msra.mxu0 %v3006
        %3062 = vmatprep.subr.bf16.mxu0 0
        %3063 = vmatpush2.bf16.msra.mxu0 0
        %3064 = vmatprep.subr.bf16.mxu0 0
        %3065 = vmatpush2.bf16.msra.mxu0 0
        %3066 = vmatprep.subr.bf16.mxu0 0
        %3067 = vmatpush2.bf16.msra.mxu0 0
        %3068 = vmatprep.subr.bf16.mxu0 0
        %3069 = vmatpush2.bf16.msra.mxu0 0
        %3070 = vmatprep.subr.bf16.mxu0 0
        %3071 = vmatpush2.bf16.msra.mxu0 0
        %3072 = vmatprep.subr.bf16.mxu0 0
        %3073 = vmatpush2.bf16.msra.mxu0 0
        %3074 = vmatprep.subr.bf16.mxu0 0
        %3075 = vmatpush2.bf16.msra.mxu0 0
        %3076 = vmatprep.subr.bf16.mxu0 0
        %3077 = vmatpush2.bf16.msra.mxu0 0
        %3078 = vmatprep.mubr.bf16.mxu0 0
        %3079 = vmatmul.mubr.bf16.gmra.mxu0 %v3023
        %v3080 = vpop.f32.mrf.mxu0
        %v3081 = vadd.f32 %v2975, %v3080
        %v3082 = vpop.f32.mrf.mxu0
        %v3083 = vadd.f32 %v2979, %v3082
        %v3084 = vpop.f32.mrf.mxu0
        %v3085 = vadd.f32 %v2975, %v3084
        %v3086 = vpop.f32.mrf.mxu0
        %v3087 = vadd.f32 %v2979, %v3086
        %3088 = vmatprep.mubr.bf16.mxu0 0
        %3089 = vmatmul.mubr.bf16.gmra.mxu0 %v3026
        %v3090 = vpop.f32.mrf.mxu0
        %v3091 = vadd.f32 %v2975, %v3090
        %v3092 = vpop.f32.mrf.mxu0
        %v3093 = vadd.f32 %v2979, %v3092
        %v3094 = vpop.f32.mrf.mxu0
        %v3095 = vadd.f32 %v2975, %v3094
        %v3096 = vpop.f32.mrf.mxu0
        %v3097 = vadd.f32 %v2979, %v3096
        %3098 = vmatprep.mubr.bf16.mxu0 0
        %3099 = vmatmul.mubr.bf16.gmra.mxu0 %v3029
        %v3100 = vpop.f32.mrf.mxu0
        %v3101 = vadd.f32 %v2975, %v3100
        %v3102 = vpop.f32.mrf.mxu0
        %v3103 = vadd.f32 %v2979, %v3102
        %v3104 = vpop.f32.mrf.mxu0
        %v3105 = vadd.f32 %v2975, %v3104
        %v3106 = vpop.f32.mrf.mxu0
        %v3107 = vadd.f32 %v2979, %v3106
        %3108 = vmatprep.mubr.bf16.mxu0 0
        %3109 = vmatmul.mubr.bf16.gmra.mxu0 %v3032
        %v3110 = vpop.f32.mrf.mxu0
        %v3111 = vadd.f32 %v2975, %v3110
        %v3112 = vpop.f32.mrf.mxu0
        %v3113 = vadd.f32 %v2979, %v3112
        %v3114 = vpop.f32.mrf.mxu0
        %v3115 = vadd.f32 %v2975, %v3114
        %v3116 = vpop.f32.mrf.mxu0
        %v3117 = vadd.f32 %v2979, %v3116
        %3118 = vmatprep.mubr.bf16.mxu0 0
        %3119 = vmatmul.mubr.bf16.gmra.mxu0 %v3035
        %v3120 = vpop.f32.mrf.mxu0
        %v3121 = vadd.f32 %v2975, %v3120
        %v3122 = vpop.f32.mrf.mxu0
        %v3123 = vadd.f32 %v2979, %v3122
        %v3124 = vpop.f32.mrf.mxu0
        %v3125 = vadd.f32 %v2975, %v3124
        %v3126 = vpop.f32.mrf.mxu0
        %v3127 = vadd.f32 %v2979, %v3126
        %3128 = vmatprep.mubr.bf16.mxu0 0
        %3129 = vmatmul.mubr.bf16.gmra.mxu0 %v3038
        %v3130 = vpop.f32.mrf.mxu0
        %v3131 = vadd.f32 %v2975, %v3130
        %v3132 = vpop.f32.mrf.mxu0
        %v3133 = vadd.f32 %v2979, %v3132
        %v3134 = vpop.f32.mrf.mxu0
        %v3135 = vadd.f32 %v2975, %v3134
        %v3136 = vpop.f32.mrf.mxu0
        %v3137 = vadd.f32 %v2979, %v3136
        %3138 = vmatprep.mubr.bf16.mxu0 0
        %3139 = vmatmul.mubr.bf16.gmra.mxu0 %v3041
        %v3140 = vpop.f32.mrf.mxu0
        %v3141 = vadd.f32 %v2975, %v3140
        %v3142 = vpop.f32.mrf.mxu0
        %v3143 = vadd.f32 %v2979, %v3142
        %v3144 = vpop.f32.mrf.mxu0
        %v3145 = vadd.f32 %v2975, %v3144
        %v3146 = vpop.f32.mrf.mxu0
        %v3147 = vadd.f32 %v2979, %v3146
        %3148 = vmatprep.mubr.bf16.mxu0 0
        %3149 = vmatmul.mubr.bf16.gmra.mxu0 %v3044
        %v3150 = vpop.f32.mrf.mxu0
        %v3151 = vadd.f32 %v2975, %v3150
        %v3152 = vpop.f32.mrf.mxu0
        %v3153 = vadd.f32 %v2979, %v3152
        %v3154 = vpop.f32.mrf.mxu0
        %v3155 = vadd.f32 %v2975, %v3154
        %v3156 = vpop.f32.mrf.mxu0
        %v3157 = vadd.f32 %v2979, %v3156
        %3158 = vdwg.mxu0
        %v3159 = vunpack.c.l.bf16 %v397
        %v3160 = vunpack.c.h.bf16 %v397
        %v3161 = vunpack.c.l.bf16 %v398
        %v3162 = vunpack.c.h.bf16 %v398
        %v3163 = vunpack.c.l.bf16 %v399
        %v3164 = vunpack.c.h.bf16 %v399
        %v3165 = vunpack.c.l.bf16 %v400
        %v3166 = vunpack.c.h.bf16 %v400
        %v3167 = vunpack.c.l.bf16 %v401
        %v3168 = vunpack.c.h.bf16 %v401
        %v3169 = vunpack.c.l.bf16 %v402
        %v3170 = vunpack.c.h.bf16 %v402
        %v3171 = vunpack.c.l.bf16 %v403
        %v3172 = vunpack.c.h.bf16 %v403
        %v3173 = vunpack.c.l.bf16 %v404
        %v3174 = vunpack.c.h.bf16 %v404
        %v3175 = vunpack.c.l.bf16 %v405
        %v3176 = vunpack.c.h.bf16 %v405
        %v3177 = vunpack.c.l.bf16 %v406
        %v3178 = vunpack.c.h.bf16 %v406
        %v3179 = vunpack.c.l.bf16 %v407
        %v3180 = vunpack.c.h.bf16 %v407
        %v3181 = vunpack.c.l.bf16 %v408
        %v3182 = vunpack.c.h.bf16 %v408
        %v3183 = vunpack.c.l.bf16 %v409
        %v3184 = vunpack.c.h.bf16 %v409
        %v3185 = vunpack.c.l.bf16 %v410
        %v3186 = vunpack.c.h.bf16 %v410
        %v3187 = vunpack.c.l.bf16 %v411
        %v3188 = vunpack.c.h.bf16 %v411
        %v3189 = vunpack.c.l.bf16 %v412
        %v3190 = vunpack.c.h.bf16 %v412
        %v3191 = vadd.f32 %v3081, %v3159
        %v3192 = vadd.f32 %v3083, %v3160
        %v3193 = vadd.f32 %v3085, %v3161
        %v3194 = vadd.f32 %v3087, %v3162
        %v3195 = vadd.f32 %v3091, %v3163
        %v3196 = vadd.f32 %v3093, %v3164
        %v3197 = vadd.f32 %v3095, %v3165
        %v3198 = vadd.f32 %v3097, %v3166
        %v3199 = vadd.f32 %v3101, %v3167
        %v3200 = vadd.f32 %v3103, %v3168
        %v3201 = vadd.f32 %v3105, %v3169
        %v3202 = vadd.f32 %v3107, %v3170
        %v3203 = vadd.f32 %v3111, %v3171
        %v3204 = vadd.f32 %v3113, %v3172
        %v3205 = vadd.f32 %v3115, %v3173
        %v3206 = vadd.f32 %v3117, %v3174
        %v3207 = vadd.f32 %v3121, %v3175
        %v3208 = vadd.f32 %v3123, %v3176
        %v3209 = vadd.f32 %v3125, %v3177
        %v3210 = vadd.f32 %v3127, %v3178
        %v3211 = vadd.f32 %v3131, %v3179
        %v3212 = vadd.f32 %v3133, %v3180
        %v3213 = vadd.f32 %v3135, %v3181
        %v3214 = vadd.f32 %v3137, %v3182
        %v3215 = vadd.f32 %v3141, %v3183
        %v3216 = vadd.f32 %v3143, %v3184
        %v3217 = vadd.f32 %v3145, %v3185
        %v3218 = vadd.f32 %v3147, %v3186
        %v3219 = vadd.f32 %v3151, %v3187
        %v3220 = vadd.f32 %v3153, %v3188
        %v3221 = vadd.f32 %v3155, %v3189
        %v3222 = vadd.f32 %v3157, %v3190
        %v3223 = vmax.f32 %v3191, 0.0
        %v3224 = vmax.f32 %v3192, 0.0
        %v3225 = vmax.f32 %v3193, 0.0
        %v3226 = vmax.f32 %v3194, 0.0
        %v3227 = vmax.f32 %v3195, 0.0
        %v3228 = vmax.f32 %v3196, 0.0
        %v3229 = vmax.f32 %v3197, 0.0
        %v3230 = vmax.f32 %v3198, 0.0
        %v3231 = vmax.f32 %v3199, 0.0
        %v3232 = vmax.f32 %v3200, 0.0
        %v3233 = vmax.f32 %v3201, 0.0
        %v3234 = vmax.f32 %v3202, 0.0
        %v3235 = vmax.f32 %v3203, 0.0
        %v3236 = vmax.f32 %v3204, 0.0
        %v3237 = vmax.f32 %v3205, 0.0
        %v3238 = vmax.f32 %v3206, 0.0
        %v3239 = vmax.f32 %v3207, 0.0
        %v3240 = vmax.f32 %v3208, 0.0
        %v3241 = vmax.f32 %v3209, 0.0
        %v3242 = vmax.f32 %v3210, 0.0
        %v3243 = vmax.f32 %v3211, 0.0
        %v3244 = vmax.f32 %v3212, 0.0
        %v3245 = vmax.f32 %v3213, 0.0
        %v3246 = vmax.f32 %v3214, 0.0
        %v3247 = vmax.f32 %v3215, 0.0
        %v3248 = vmax.f32 %v3216, 0.0
        %v3249 = vmax.f32 %v3217, 0.0
        %v3250 = vmax.f32 %v3218, 0.0
        %v3251 = vmax.f32 %v3219, 0.0
        %v3252 = vmax.f32 %v3220, 0.0
        %v3253 = vmax.f32 %v3221, 0.0
        %v3254 = vmax.f32 %v3222, 0.0
        %v3255 = vpack.c.bf16 %v3225, %v3223
        %v3256 = vpack.c.bf16 %v3226, %v3224
        %v3257 = vpack.c.bf16 %v3229, %v3227
        %v3258 = vpack.c.bf16 %v3230, %v3228
        %v3259 = vpack.c.bf16 %v3233, %v3231
        %v3260 = vpack.c.bf16 %v3234, %v3232
        %v3261 = vpack.c.bf16 %v3237, %v3235
        %v3262 = vpack.c.bf16 %v3238, %v3236
        %v3263 = vpack.c.bf16 %v3241, %v3239
        %v3264 = vpack.c.bf16 %v3242, %v3240
        %v3265 = vpack.c.bf16 %v3245, %v3243
        %v3266 = vpack.c.bf16 %v3246, %v3244
        %v3267 = vpack.c.bf16 %v3249, %v3247
        %v3268 = vpack.c.bf16 %v3250, %v3248
        %v3269 = vpack.c.bf16 %v3253, %v3251
        %v3270 = vpack.c.bf16 %v3254, %v3252
        %v3287 = vunpack.c.l.b16 %v3255
        %v3288 = vunpack.c.l.b16 %v3256
        %v3289 = vunpack.c.h.b16 %v3255
        %v3290 = vunpack.c.h.b16 %v3256
        %v3291 = vunpack.c.l.b16 %v3257
        %v3292 = vunpack.c.l.b16 %v3258
        %v3293 = vunpack.c.h.b16 %v3257
        %v3294 = vunpack.c.h.b16 %v3258
        %v3295 = vunpack.c.l.b16 %v3259
        %v3296 = vunpack.c.l.b16 %v3260
        %v3297 = vunpack.c.h.b16 %v3259
        %v3298 = vunpack.c.h.b16 %v3260
        %v3299 = vunpack.c.l.b16 %v3261
        %v3300 = vunpack.c.l.b16 %v3262
        %v3301 = vunpack.c.h.b16 %v3261
        %v3302 = vunpack.c.h.b16 %v3262
        %v3303 = vunpack.c.l.b16 %v3263
        %v3304 = vunpack.c.l.b16 %v3264
        %v3305 = vunpack.c.h.b16 %v3263
        %v3306 = vunpack.c.h.b16 %v3264
        %v3307 = vunpack.c.l.b16 %v3265
        %v3308 = vunpack.c.l.b16 %v3266
        %v3309 = vunpack.c.h.b16 %v3265
        %v3310 = vunpack.c.h.b16 %v3266
        %v3311 = vunpack.c.l.b16 %v3267
        %v3312 = vunpack.c.l.b16 %v3268
        %v3313 = vunpack.c.h.b16 %v3267
        %v3314 = vunpack.c.h.b16 %v3268
        %v3315 = vunpack.c.l.b16 %v3269
        %v3316 = vunpack.c.l.b16 %v3270
        %v3317 = vunpack.c.h.b16 %v3269
        %v3318 = vunpack.c.h.b16 %v3270
        %v3319 = vpack.c.b16 %v3288, %v3287
        %v3320 = vpack.c.b16 %v3290, %v3289
        %v3321 = vpack.c.b16 %v3292, %v3291
        %v3322 = vpack.c.b16 %v3294, %v3293
        %v3323 = vpack.c.b16 %v3296, %v3295
        %v3324 = vpack.c.b16 %v3298, %v3297
        %v3325 = vpack.c.b16 %v3300, %v3299
        %v3326 = vpack.c.b16 %v3302, %v3301
        %v3327 = vpack.c.b16 %v3304, %v3303
        %v3328 = vpack.c.b16 %v3306, %v3305
        %v3329 = vpack.c.b16 %v3308, %v3307
        %v3330 = vpack.c.b16 %v3310, %v3309
        %v3331 = vpack.c.b16 %v3312, %v3311
        %v3332 = vpack.c.b16 %v3314, %v3313
        %v3333 = vpack.c.b16 %v3316, %v3315
        %v3334 = vpack.c.b16 %v3318, %v3317
        %3351 = vst [vmem:[%s382] sm:$0xff] %v3319
        %3352 = vst [vmem:[%s382 + $0x8] sm:$0xff] %v3320
        %3353 = vst [vmem:[%s382 + $0x10] sm:$0xff] %v3321
        %3354 = vst [vmem:[%s382 + $0x18] sm:$0xff] %v3322
        %3355 = vst [vmem:[%s382 + $0x20] sm:$0xff] %v3323
        %3356 = vst [vmem:[%s382 + $0x28] sm:$0xff] %v3324
        %3357 = vst [vmem:[%s382 + $0x30] sm:$0xff] %v3325
        %3358 = vst [vmem:[%s382 + $0x38] sm:$0xff] %v3326
        %3359 = vst [vmem:[%s382 + $0x40] sm:$0xff] %v3327
        %3360 = vst [vmem:[%s382 + $0x48] sm:$0xff] %v3328
        %3361 = vst [vmem:[%s382 + $0x50] sm:$0xff] %v3329
        %3362 = vst [vmem:[%s382 + $0x58] sm:$0xff] %v3330
        %3363 = vst [vmem:[%s382 + $0x60] sm:$0xff] %v3331
        %3364 = vst [vmem:[%s382 + $0x68] sm:$0xff] %v3332
        %3365 = vst [vmem:[%s382 + $0x70] sm:$0xff] %v3333
        %3366 = vst [vmem:[%s382 + $0x78] sm:$0xff] %v3334
        %s3367 = sand.u32 %s230, 1
        %s3368 = scalar_lea.sflag [#allocation5], %s3367
        %s3369 = sand.u32 %s230, 1
        %s3370 = smul.addr %s3369, 128
        %s3371 = scalar_lea.vmem [#allocation8], %s3370
        // Predicated region
        $region61: #{tpu_custom_call.1} parent=51 // pred_check
          %p3372 = pneg %p240
        $region62: #{tpu_custom_call.1} parent=51 // pred_check_branch
          %3374 = sbr.rel (%p3372) target = $region64
        $region63: #{tpu_custom_call.1} parent=51 // pred_region
          %s3375 = smul.u32 8, %s31
          %s3377 = ssub.s32 2048, 2048
          %3378 = vsyncadd %s3368, %s3377
          %s3379 = smul.addr %s3375, 4
          %s3380 = smul.addr %s30, 64
          %s3381 = sadd.s32 %s3379, %s3380
          %s3382 = smul.addr %s3381, 64
          %s3383 = scalar_lea.hbm %s8, %s3382
          %s3384 = sshll.u32 %s3371, 4
          %s3385 = int_to_ptr.vmem [resolvable:$true] %s3384
          %3390 = dma.vmem_to_hbm [thread:$0]  %s3385, 2048, %s3383, %s3368, 128, 128, 8
        $region64: #{tpu_custom_call.1} parent=51 // pred_fallthru
          _
      $region52: #{tpu_custom_call.1} parent=5 // pred_fallthru
        _
      %p3391 = scmp.le.s32.totalorder 2, %s21
      // Predicated region
      $region65: #{tpu_custom_call.1} parent=5 // pred_check
        %p3392 = pneg %p3391
      $region66: #{tpu_custom_call.1} parent=5 // pred_check_branch
        %3394 = sbr.rel (%p3392) target = $region68
      $region67: #{tpu_custom_call.1} parent=5 // pred_region
        %s3395 = ssub.s32 %s21, 2
        // Predicated region
        $region69: #{tpu_custom_call.1} parent=67 // pred_check
          %p3396 = pneg %p246
        $region70: #{tpu_custom_call.1} parent=67 // pred_check_branch
          %3398 = sbr.rel (%p3396) target = $region72
        $region71: #{tpu_custom_call.1} parent=67 // pred_region
          %s3399 = sand.u32 %s231, 1
          %s3400 = scalar_lea.sflag [#allocation5], %s3399
          %s3401 = sand.u32 %s231, 1
          %s3402 = smul.addr %s3401, 128
          %s3403 = scalar_lea.vmem [#allocation8], %s3402
          %3404 = dma.done %s3400, 2048
        $region72: #{tpu_custom_call.1} parent=67 // pred_fallthru
          _
      $region68: #{tpu_custom_call.1} parent=5 // pred_fallthru
        _
    $region6: #{tpu_custom_call.1} parent=1 // loop_footer
      %s25 = sadd.s32 1, %s21
    $region7: #{tpu_custom_call.1} parent=1 // loop_footer_branch
      %20 = sbr.rel target = $region3
    $region8: #{tpu_custom_call.1} parent=1 // loop_exit
      _
    %3405 = vsyncpa [#allocation4], 1
    %s3406 = scalar_lea.sflag [#allocation4], 1
    %3407 = vsyncpa %s3406, 1
    %3408 = vsyncpa [#allocation7], 1
    %3409 = vsyncpa [#allocation5], 1
    %s3410 = scalar_lea.sflag [#allocation5], 1
    %3411 = vsyncpa %s3410, 1

</llo_original>
